<compile_context>
chip_gen: v6e
topology: v6e:2x2x1
jax: 0.10.0
libtpu: 0.0.40
codegen_flags: <defaults>
</compile_context>

<pallas_src>
import functools

import jax
import jax.numpy as jnp
from jax.experimental import pallas as pl
from jax.experimental.pallas import tpu as pltpu


def _visual_attention_kernel(w_ref, b_ref, x_ref, o_ref, xpad_ref, *, H, W, NB, WP):
    """One grid step == NB batch elements, packed along the lane axis.

    w_ref:    SMEM f32[81]               flattened (q|k|v) x (3 cin, 3 kh, 3 kw)
    b_ref:    SMEM f32[3]                bias per conv (queries, keys, values)
    x_ref:    VMEM f32[NB, 3, H, W]      raw (unpadded) images for this block
    o_ref:    VMEM f32[H, NB*W]          packed attended values (lane-dense)
    xpad_ref: VMEM f32[3, 3, H+2, NB*WP] scratch: [dj-rolled copy, cin, row, lanes]
    """
    L = NB * WP

    # ---- Build the zero-padded, lane-packed slab (dj = 0 copy). -------------
    # Image b occupies lanes [b*WP, b*WP + W + 2): col 0 / col W+1 are the
    # conv zero padding, rows 0 / H+1 likewise; the rest of the WP span is 0.
    xpad_ref[0] = jnp.zeros((3, H + 2, L), jnp.float32)
    for b in range(NB):
        lo = b * WP
        xpad_ref[0, :, 1:H + 1, lo + 1:lo + 1 + W] = x_ref[b]

    # ---- Two lane rolls give the dj = 1, 2 column taps for ALL images. ------
    # roll(x, L - dj) => out[l] = in[l + dj]; since j + dj <= W + 1 < WP the
    # shift never crosses an image's WP span for the lanes we keep.
    base = xpad_ref[0]
    xpad_ref[1] = pltpu.roll(base, L - 1, axis=2)
    xpad_ref[2] = pltpu.roll(base, L - 2, axis=2)

    # ---- Fused 3x3 convolutions: one tap loop feeds q, k and v. -------------
    w = [w_ref[i] for i in range(81)]          # hoisted SMEM scalar reads
    q = jnp.zeros((H, L), jnp.float32)
    k = jnp.zeros((H, L), jnp.float32)
    v = jnp.zeros((H, L), jnp.float32)
    for di in range(3):
        for dj in range(3):
            sl = xpad_ref[dj, :, di:di + H, :]         # (3, H, L) shared slice
            for c in range(3):
                t = sl[c]
                idx = c * 9 + di * 3 + dj
                q = q + w[idx] * t
                k = k + w[27 + idx] * t
                v = v + w[54 + idx] * t
    q = q + b_ref[0]
    k = k + b_ref[1]
    v = v + b_ref[2]

    # ---- Per-image row attention: softmax(q @ k^T) @ v. ---------------------
    outs = []
    for b in range(NB):
        lo = b * WP
        qb = q[:, lo:lo + W]                           # (H, W) valid lanes only
        kb = k[:, lo:lo + W]
        vb = v[:, lo:lo + W]
        # Contract last dims directly (no explicit transpose of k).
        s = jax.lax.dot_general(qb, kb, (((1,), (1,)), ((), ())),
                                preferred_element_type=jnp.float32)   # (H, H)
        s = s - jnp.max(s, axis=-1, keepdims=True)
        p = jnp.exp(s)
        p = p * pl.reciprocal(jnp.sum(p, axis=-1, keepdims=True), approx=True)
        outs.append(jnp.dot(p, vb, preferred_element_type=jnp.float32))  # (H, W)

    # Lane-dense (H, NB*W) output slab, single unmasked store.
    o_ref[...] = jnp.concatenate(outs, axis=-1)


def visual_attention(x, w_q, b_q, w_k, b_k, w_v, b_v, *, nb=8):
    """x: (N, 3, H, W) f32.  conv weights: (1, 3, 3, 3); biases: (1,).
    Returns (N, 1, H, W) f32, matching the PyTorch forward."""
    N, C, H, W = x.shape
    assert C == 3

    # Per-image lane span (power of two >= W + 2) so column rolls stay in-image.
    WP = 1
    while WP < W + 2:
        WP *= 2

    NB = min(nb, N)
    G = -(-N // NB)                  # ceil
    Np = G * NB
    if Np != N:                      # pad batch to a multiple of NB
        x = jnp.concatenate(
            [x, jnp.zeros((Np - N, C, H, W), x.dtype)], axis=0)
    L = NB * WP

    # Flatten conv weights / biases into SMEM scalar tables.
    w_flat = jnp.concatenate(
        [w_q.reshape(-1), w_k.reshape(-1), w_v.reshape(-1)]
    ).astype(jnp.float32)                                           # (81,)
    b_flat = jnp.concatenate([b_q, b_k, b_v]).astype(jnp.float32)   # (3,)

    kernel = functools.partial(_visual_attention_kernel, H=H, W=W, NB=NB, WP=WP)

    out_packed = pl.pallas_call(
        kernel,
        out_shape=jax.ShapeDtypeStruct((G, H, NB * W), jnp.float32),
        grid_spec=pltpu.PrefetchScalarGridSpec(
            num_scalar_prefetch=0,
            grid=(G,),
            in_specs=[
                pl.BlockSpec(memory_space=pltpu.SMEM),              # w_flat
                pl.BlockSpec(memory_space=pltpu.SMEM),              # b_flat
                pl.BlockSpec((NB, 3, H, W), lambda g: (g, 0, 0, 0)),  # raw x block
            ],
            out_specs=pl.BlockSpec(
                (pl.Squeezed(), H, NB * W), lambda g: (g, 0, 0)),
            scratch_shapes=[pltpu.VMEM((3, 3, H + 2, L), jnp.float32)],
        ),
        compiler_params=pltpu.CompilerParams(
            dimension_semantics=("parallel",)
        ),
    )(w_flat, b_flat, x.astype(jnp.float32))

    # Un-pack (G, H, NB*W) -> (N, 1, H, W).
    out = (out_packed.reshape(G, H, NB, W)
           .transpose(0, 2, 1, 3)
           .reshape(Np, 1, H, W))
    return out[:N]


def _reference(x, w_q, b_q, w_k, b_k, w_v, b_v):
    """Pure-JAX reference mirroring the PyTorch module (for verification)."""
    def conv(xx, w, b):
        y = jax.lax.conv_general_dilated(
            xx, w, window_strides=(1, 1), padding=((1, 1), (1, 1)),
            dimension_numbers=("NCHW", "OIHW", "NCHW"))
        return y + b.reshape(1, -1, 1, 1)

    q = conv(x, w_q, b_q)          # (N, 1, H, W)
    k = conv(x, w_k, b_k)
    v = conv(x, w_v, b_v)
    scores = jnp.einsum("nchw,ncvw->nchv", q, k)      # q @ k^T over last two dims
    p = jax.nn.softmax(scores, axis=-1)
    return jnp.einsum("nchv,ncvw->nchw", p, v)


if __name__ == "__main__":
    key = jax.random.PRNGKey(0)
    kx, k1, k2, k3, k4, k5, k6 = jax.random.split(key, 7)

    N, C, H, W = 16, 3, 16, 16
    x = jax.random.normal(kx, (N, C, H, W), jnp.float32)

    # Deterministic parameter init (shapes from nn.Conv2d(3, 1, 3, padding=1)).
    scale = 1.0 / jnp.sqrt(3.0 * 3.0 * 3.0)
    w_q = jax.random.uniform(k1, (1, 3, 3, 3), jnp.float32, -scale, scale)
    b_q = jax.random.uniform(k2, (1,), jnp.float32, -scale, scale)
    w_k = jax.random.uniform(k3, (1, 3, 3, 3), jnp.float32, -scale, scale)
    b_k = jax.random.uniform(k4, (1,), jnp.float32, -scale, scale)
    w_v = jax.random.uniform(k5, (1, 3, 3, 3), jnp.float32, -scale, scale)
    b_v = jax.random.uniform(k6, (1,), jnp.float32, -scale, scale)

    out = visual_attention(x, w_q, b_q, w_k, b_k, w_v, b_v)
    out = jax.block_until_ready(out)

    ref = _reference(x, w_q, b_q, w_k, b_k, w_v, b_v)
    assert out.shape == (N, 1, H, W)
    # approx=True reciprocal in the softmax => slightly looser tolerance.
    assert jnp.allclose(out, ref, atol=2e-3, rtol=2e-3), "mismatch vs reference"

    print("KERNEL_OK")
</pallas_src>

<mosaic_0001>
module attributes {stable_mosaic.version = 11 : i64} {
  func.func @_visual_attention_kernel(%arg0: i32, %arg1: memref<81xf32, #tpu.memory_space<smem>>, %arg2: memref<3xf32, #tpu.memory_space<smem>>, %arg3: memref<8x3x16x16xf32, #tpu.memory_space<vmem>>, %arg4: memref<1x16x128xf32, #tpu.memory_space<vmem>>, %arg5: memref<3x3x18x256xf32, #tpu.memory_space<vmem>>) attributes {dimension_semantics = [#tpu.dimension_semantics<parallel>], iteration_bounds = array<i64: 2>, scalar_prefetch = 0 : i64, scratch_operands = 1 : i64, tpu.core_type = #tpu.core_type<tc>, window_params = [{transform_indices = @transform_0, window_bounds = array<i64: 81>}, {transform_indices = @transform_1, window_bounds = array<i64: 3>}, {transform_indices = @transform_2, window_bounds = array<i64: 8, 3, 16, 16>}, {transform_indices = @transform_3, window_bounds = array<i64: 1, 16, 128>}]} {
    %cst = arith.constant 0.000000e+00 : f32
    %0 = vector.broadcast %cst : f32 to vector<3x18x256xf32>
    %c0 = arith.constant 0 : index
    %c0_0 = arith.constant 0 : index
    %c0_1 = arith.constant 0 : index
    %c0_2 = arith.constant 0 : index
    %1 = vector.load %arg5[%c0, %c0_0, %c0_1, %c0_2] : memref<3x3x18x256xf32, #tpu.memory_space<vmem>>, vector<1x3x18x256xf32>
    %2 = vector.shape_cast %1 : vector<1x3x18x256xf32> to vector<3x18x256xf32>
    %3 = vector.shape_cast %0 : vector<3x18x256xf32> to vector<1x3x18x256xf32>
    tpu.vector_store %arg5[%c0, %c0_0, %c0_1, %c0_2], %3 {strides = array<i32>} : memref<3x3x18x256xf32, #tpu.memory_space<vmem>>, vector<1x3x18x256xf32>,
    %c0_3 = arith.constant 0 : index
    %c0_4 = arith.constant 0 : index
    %c0_5 = arith.constant 0 : index
    %c0_6 = arith.constant 0 : index
    %4 = vector.load %arg3[%c0_3, %c0_4, %c0_5, %c0_6] : memref<8x3x16x16xf32, #tpu.memory_space<vmem>>, vector<1x3x16x16xf32>
    %5 = vector.shape_cast %4 : vector<1x3x16x16xf32> to vector<3x16x16xf32>
    %c0_7 = arith.constant 0 : index
    %c0_8 = arith.constant 0 : index
    %c1 = arith.constant 1 : index
    %c1_9 = arith.constant 1 : index
    %6 = vector.load %arg5[%c0_7, %c0_8, %c1, %c1_9] : memref<3x3x18x256xf32, #tpu.memory_space<vmem>>, vector<1x3x16x16xf32>
    %7 = vector.shape_cast %6 : vector<1x3x16x16xf32> to vector<3x16x16xf32>
    %8 = vector.shape_cast %5 : vector<3x16x16xf32> to vector<1x3x16x16xf32>
    tpu.vector_store %arg5[%c0_7, %c0_8, %c1, %c1_9], %8 {strides = array<i32>} : memref<3x3x18x256xf32, #tpu.memory_space<vmem>>, vector<1x3x16x16xf32>,
    %c1_10 = arith.constant 1 : index
    %c0_11 = arith.constant 0 : index
    %c0_12 = arith.constant 0 : index
    %c0_13 = arith.constant 0 : index
    %9 = vector.load %arg3[%c1_10, %c0_11, %c0_12, %c0_13] : memref<8x3x16x16xf32, #tpu.memory_space<vmem>>, vector<1x3x16x16xf32>
    %10 = vector.shape_cast %9 : vector<1x3x16x16xf32> to vector<3x16x16xf32>
    %c0_14 = arith.constant 0 : index
    %c0_15 = arith.constant 0 : index
    %c1_16 = arith.constant 1 : index
    %c33 = arith.constant 33 : index
    %11 = vector.load %arg5[%c0_14, %c0_15, %c1_16, %c33] : memref<3x3x18x256xf32, #tpu.memory_space<vmem>>, vector<1x3x16x16xf32>
    %12 = vector.shape_cast %11 : vector<1x3x16x16xf32> to vector<3x16x16xf32>
    %13 = vector.shape_cast %10 : vector<3x16x16xf32> to vector<1x3x16x16xf32>
    tpu.vector_store %arg5[%c0_14, %c0_15, %c1_16, %c33], %13 {strides = array<i32>} : memref<3x3x18x256xf32, #tpu.memory_space<vmem>>, vector<1x3x16x16xf32>,
    %c2 = arith.constant 2 : index
    %c0_17 = arith.constant 0 : index
    %c0_18 = arith.constant 0 : index
    %c0_19 = arith.constant 0 : index
    %14 = vector.load %arg3[%c2, %c0_17, %c0_18, %c0_19] : memref<8x3x16x16xf32, #tpu.memory_space<vmem>>, vector<1x3x16x16xf32>
    %15 = vector.shape_cast %14 : vector<1x3x16x16xf32> to vector<3x16x16xf32>
    %c0_20 = arith.constant 0 : index
    %c0_21 = arith.constant 0 : index
    %c1_22 = arith.constant 1 : index
    %c65 = arith.constant 65 : index
    %16 = vector.load %arg5[%c0_20, %c0_21, %c1_22, %c65] : memref<3x3x18x256xf32, #tpu.memory_space<vmem>>, vector<1x3x16x16xf32>
    %17 = vector.shape_cast %16 : vector<1x3x16x16xf32> to vector<3x16x16xf32>
    %18 = vector.shape_cast %15 : vector<3x16x16xf32> to vector<1x3x16x16xf32>
    tpu.vector_store %arg5[%c0_20, %c0_21, %c1_22, %c65], %18 {strides = array<i32>} : memref<3x3x18x256xf32, #tpu.memory_space<vmem>>, vector<1x3x16x16xf32>,
    %c3 = arith.constant 3 : index
    %c0_23 = arith.constant 0 : index
    %c0_24 = arith.constant 0 : index
    %c0_25 = arith.constant 0 : index
    %19 = vector.load %arg3[%c3, %c0_23, %c0_24, %c0_25] : memref<8x3x16x16xf32, #tpu.memory_space<vmem>>, vector<1x3x16x16xf32>
    %20 = vector.shape_cast %19 : vector<1x3x16x16xf32> to vector<3x16x16xf32>
    %c0_26 = arith.constant 0 : index
    %c0_27 = arith.constant 0 : index
    %c1_28 = arith.constant 1 : index
    %c97 = arith.constant 97 : index
    %21 = vector.load %arg5[%c0_26, %c0_27, %c1_28, %c97] : memref<3x3x18x256xf32, #tpu.memory_space<vmem>>, vector<1x3x16x16xf32>
    %22 = vector.shape_cast %21 : vector<1x3x16x16xf32> to vector<3x16x16xf32>
    %23 = vector.shape_cast %20 : vector<3x16x16xf32> to vector<1x3x16x16xf32>
    tpu.vector_store %arg5[%c0_26, %c0_27, %c1_28, %c97], %23 {strides = array<i32>} : memref<3x3x18x256xf32, #tpu.memory_space<vmem>>, vector<1x3x16x16xf32>,
    %c4 = arith.constant 4 : index
    %c0_29 = arith.constant 0 : index
    %c0_30 = arith.constant 0 : index
    %c0_31 = arith.constant 0 : index
    %24 = vector.load %arg3[%c4, %c0_29, %c0_30, %c0_31] : memref<8x3x16x16xf32, #tpu.memory_space<vmem>>, vector<1x3x16x16xf32>
    %25 = vector.shape_cast %24 : vector<1x3x16x16xf32> to vector<3x16x16xf32>
    %c0_32 = arith.constant 0 : index
    %c0_33 = arith.constant 0 : index
    %c1_34 = arith.constant 1 : index
    %c129 = arith.constant 129 : index
    %26 = vector.load %arg5[%c0_32, %c0_33, %c1_34, %c129] : memref<3x3x18x256xf32, #tpu.memory_space<vmem>>, vector<1x3x16x16xf32>
    %27 = vector.shape_cast %26 : vector<1x3x16x16xf32> to vector<3x16x16xf32>
    %28 = vector.shape_cast %25 : vector<3x16x16xf32> to vector<1x3x16x16xf32>
    tpu.vector_store %arg5[%c0_32, %c0_33, %c1_34, %c129], %28 {strides = array<i32>} : memref<3x3x18x256xf32, #tpu.memory_space<vmem>>, vector<1x3x16x16xf32>,
    %c5 = arith.constant 5 : index
    %c0_35 = arith.constant 0 : index
    %c0_36 = arith.constant 0 : index
    %c0_37 = arith.constant 0 : index
    %29 = vector.load %arg3[%c5, %c0_35, %c0_36, %c0_37] : memref<8x3x16x16xf32, #tpu.memory_space<vmem>>, vector<1x3x16x16xf32>
    %30 = vector.shape_cast %29 : vector<1x3x16x16xf32> to vector<3x16x16xf32>
    %c0_38 = arith.constant 0 : index
    %c0_39 = arith.constant 0 : index
    %c1_40 = arith.constant 1 : index
    %c161 = arith.constant 161 : index
    %31 = vector.load %arg5[%c0_38, %c0_39, %c1_40, %c161] : memref<3x3x18x256xf32, #tpu.memory_space<vmem>>, vector<1x3x16x16xf32>
    %32 = vector.shape_cast %31 : vector<1x3x16x16xf32> to vector<3x16x16xf32>
    %33 = vector.shape_cast %30 : vector<3x16x16xf32> to vector<1x3x16x16xf32>
    tpu.vector_store %arg5[%c0_38, %c0_39, %c1_40, %c161], %33 {strides = array<i32>} : memref<3x3x18x256xf32, #tpu.memory_space<vmem>>, vector<1x3x16x16xf32>,
    %c6 = arith.constant 6 : index
    %c0_41 = arith.constant 0 : index
    %c0_42 = arith.constant 0 : index
    %c0_43 = arith.constant 0 : index
    %34 = vector.load %arg3[%c6, %c0_41, %c0_42, %c0_43] : memref<8x3x16x16xf32, #tpu.memory_space<vmem>>, vector<1x3x16x16xf32>
    %35 = vector.shape_cast %34 : vector<1x3x16x16xf32> to vector<3x16x16xf32>
    %c0_44 = arith.constant 0 : index
    %c0_45 = arith.constant 0 : index
    %c1_46 = arith.constant 1 : index
    %c193 = arith.constant 193 : index
    %36 = vector.load %arg5[%c0_44, %c0_45, %c1_46, %c193] : memref<3x3x18x256xf32, #tpu.memory_space<vmem>>, vector<1x3x16x16xf32>
    %37 = vector.shape_cast %36 : vector<1x3x16x16xf32> to vector<3x16x16xf32>
    %38 = vector.shape_cast %35 : vector<3x16x16xf32> to vector<1x3x16x16xf32>
    tpu.vector_store %arg5[%c0_44, %c0_45, %c1_46, %c193], %38 {strides = array<i32>} : memref<3x3x18x256xf32, #tpu.memory_space<vmem>>, vector<1x3x16x16xf32>,
    %c7 = arith.constant 7 : index
    %c0_47 = arith.constant 0 : index
    %c0_48 = arith.constant 0 : index
    %c0_49 = arith.constant 0 : index
    %39 = vector.load %arg3[%c7, %c0_47, %c0_48, %c0_49] : memref<8x3x16x16xf32, #tpu.memory_space<vmem>>, vector<1x3x16x16xf32>
    %40 = vector.shape_cast %39 : vector<1x3x16x16xf32> to vector<3x16x16xf32>
    %c0_50 = arith.constant 0 : index
    %c0_51 = arith.constant 0 : index
    %c1_52 = arith.constant 1 : index
    %c225 = arith.constant 225 : index
    %41 = vector.load %arg5[%c0_50, %c0_51, %c1_52, %c225] : memref<3x3x18x256xf32, #tpu.memory_space<vmem>>, vector<1x3x16x16xf32>
    %42 = vector.shape_cast %41 : vector<1x3x16x16xf32> to vector<3x16x16xf32>
    %43 = vector.shape_cast %40 : vector<3x16x16xf32> to vector<1x3x16x16xf32>
    tpu.vector_store %arg5[%c0_50, %c0_51, %c1_52, %c225], %43 {strides = array<i32>} : memref<3x3x18x256xf32, #tpu.memory_space<vmem>>, vector<1x3x16x16xf32>,
    %c0_53 = arith.constant 0 : index
    %c0_54 = arith.constant 0 : index
    %c0_55 = arith.constant 0 : index
    %c0_56 = arith.constant 0 : index
    %44 = vector.load %arg5[%c0_53, %c0_54, %c0_55, %c0_56] : memref<3x3x18x256xf32, #tpu.memory_space<vmem>>, vector<1x3x18x256xf32>
    %45 = vector.shape_cast %44 : vector<1x3x18x256xf32> to vector<3x18x256xf32>
    %c255_i32 = arith.constant 255 : i32
    %46 = tpu.dynamic_rotate %45 by %c255_i32 dim 2 : vector<3x18x256xf32>, i32 -> vector<3x18x256xf32>
    %c1_57 = arith.constant 1 : index
    %c0_58 = arith.constant 0 : index
    %c0_59 = arith.constant 0 : index
    %c0_60 = arith.constant 0 : index
    %47 = vector.load %arg5[%c1_57, %c0_58, %c0_59, %c0_60] : memref<3x3x18x256xf32, #tpu.memory_space<vmem>>, vector<1x3x18x256xf32>
    %48 = vector.shape_cast %47 : vector<1x3x18x256xf32> to vector<3x18x256xf32>
    %49 = vector.shape_cast %46 : vector<3x18x256xf32> to vector<1x3x18x256xf32>
    tpu.vector_store %arg5[%c1_57, %c0_58, %c0_59, %c0_60], %49 {strides = array<i32>} : memref<3x3x18x256xf32, #tpu.memory_space<vmem>>, vector<1x3x18x256xf32>,
    %c254_i32 = arith.constant 254 : i32
    %50 = tpu.dynamic_rotate %45 by %c254_i32 dim 2 : vector<3x18x256xf32>, i32 -> vector<3x18x256xf32>
    %c2_61 = arith.constant 2 : index
    %c0_62 = arith.constant 0 : index
    %c0_63 = arith.constant 0 : index
    %c0_64 = arith.constant 0 : index
    %51 = vector.load %arg5[%c2_61, %c0_62, %c0_63, %c0_64] : memref<3x3x18x256xf32, #tpu.memory_space<vmem>>, vector<1x3x18x256xf32>
    %52 = vector.shape_cast %51 : vector<1x3x18x256xf32> to vector<3x18x256xf32>
    %53 = vector.shape_cast %50 : vector<3x18x256xf32> to vector<1x3x18x256xf32>
    tpu.vector_store %arg5[%c2_61, %c0_62, %c0_63, %c0_64], %53 {strides = array<i32>} : memref<3x3x18x256xf32, #tpu.memory_space<vmem>>, vector<1x3x18x256xf32>,
    %c0_65 = arith.constant 0 : index
    %54 = memref.load %arg1[%c0_65] : memref<81xf32, #tpu.memory_space<smem>>
    %c1_66 = arith.constant 1 : index
    %55 = memref.load %arg1[%c1_66] : memref<81xf32, #tpu.memory_space<smem>>
    %c2_67 = arith.constant 2 : index
    %56 = memref.load %arg1[%c2_67] : memref<81xf32, #tpu.memory_space<smem>>
    %c3_68 = arith.constant 3 : index
    %57 = memref.load %arg1[%c3_68] : memref<81xf32, #tpu.memory_space<smem>>
    %c4_69 = arith.constant 4 : index
    %58 = memref.load %arg1[%c4_69] : memref<81xf32, #tpu.memory_space<smem>>
    %c5_70 = arith.constant 5 : index
    %59 = memref.load %arg1[%c5_70] : memref<81xf32, #tpu.memory_space<smem>>
    %c6_71 = arith.constant 6 : index
    %60 = memref.load %arg1[%c6_71] : memref<81xf32, #tpu.memory_space<smem>>
    %c7_72 = arith.constant 7 : index
    %61 = memref.load %arg1[%c7_72] : memref<81xf32, #tpu.memory_space<smem>>
    %c8 = arith.constant 8 : index
    %62 = memref.load %arg1[%c8] : memref<81xf32, #tpu.memory_space<smem>>
    %c9 = arith.constant 9 : index
    %63 = memref.load %arg1[%c9] : memref<81xf32, #tpu.memory_space<smem>>
    %c10 = arith.constant 10 : index
    %64 = memref.load %arg1[%c10] : memref<81xf32, #tpu.memory_space<smem>>
    %c11 = arith.constant 11 : index
    %65 = memref.load %arg1[%c11] : memref<81xf32, #tpu.memory_space<smem>>
    %c12 = arith.constant 12 : index
    %66 = memref.load %arg1[%c12] : memref<81xf32, #tpu.memory_space<smem>>
    %c13 = arith.constant 13 : index
    %67 = memref.load %arg1[%c13] : memref<81xf32, #tpu.memory_space<smem>>
    %c14 = arith.constant 14 : index
    %68 = memref.load %arg1[%c14] : memref<81xf32, #tpu.memory_space<smem>>
    %c15 = arith.constant 15 : index
    %69 = memref.load %arg1[%c15] : memref<81xf32, #tpu.memory_space<smem>>
    %c16 = arith.constant 16 : index
    %70 = memref.load %arg1[%c16] : memref<81xf32, #tpu.memory_space<smem>>
    %c17 = arith.constant 17 : index
    %71 = memref.load %arg1[%c17] : memref<81xf32, #tpu.memory_space<smem>>
    %c18 = arith.constant 18 : index
    %72 = memref.load %arg1[%c18] : memref<81xf32, #tpu.memory_space<smem>>
    %c19 = arith.constant 19 : index
    %73 = memref.load %arg1[%c19] : memref<81xf32, #tpu.memory_space<smem>>
    %c20 = arith.constant 20 : index
    %74 = memref.load %arg1[%c20] : memref<81xf32, #tpu.memory_space<smem>>
    %c21 = arith.constant 21 : index
    %75 = memref.load %arg1[%c21] : memref<81xf32, #tpu.memory_space<smem>>
    %c22 = arith.constant 22 : index
    %76 = memref.load %arg1[%c22] : memref<81xf32, #tpu.memory_space<smem>>
    %c23 = arith.constant 23 : index
    %77 = memref.load %arg1[%c23] : memref<81xf32, #tpu.memory_space<smem>>
    %c24 = arith.constant 24 : index
    %78 = memref.load %arg1[%c24] : memref<81xf32, #tpu.memory_space<smem>>
    %c25 = arith.constant 25 : index
    %79 = memref.load %arg1[%c25] : memref<81xf32, #tpu.memory_space<smem>>
    %c26 = arith.constant 26 : index
    %80 = memref.load %arg1[%c26] : memref<81xf32, #tpu.memory_space<smem>>
    %c27 = arith.constant 27 : index
    %81 = memref.load %arg1[%c27] : memref<81xf32, #tpu.memory_space<smem>>
    %c28 = arith.constant 28 : index
    %82 = memref.load %arg1[%c28] : memref<81xf32, #tpu.memory_space<smem>>
    %c29 = arith.constant 29 : index
    %83 = memref.load %arg1[%c29] : memref<81xf32, #tpu.memory_space<smem>>
    %c30 = arith.constant 30 : index
    %84 = memref.load %arg1[%c30] : memref<81xf32, #tpu.memory_space<smem>>
    %c31 = arith.constant 31 : index
    %85 = memref.load %arg1[%c31] : memref<81xf32, #tpu.memory_space<smem>>
    %c32 = arith.constant 32 : index
    %86 = memref.load %arg1[%c32] : memref<81xf32, #tpu.memory_space<smem>>
    %c33_73 = arith.constant 33 : index
    %87 = memref.load %arg1[%c33_73] : memref<81xf32, #tpu.memory_space<smem>>
    %c34 = arith.constant 34 : index
    %88 = memref.load %arg1[%c34] : memref<81xf32, #tpu.memory_space<smem>>
    %c35 = arith.constant 35 : index
    %89 = memref.load %arg1[%c35] : memref<81xf32, #tpu.memory_space<smem>>
    %c36 = arith.constant 36 : index
    %90 = memref.load %arg1[%c36] : memref<81xf32, #tpu.memory_space<smem>>
    %c37 = arith.constant 37 : index
    %91 = memref.load %arg1[%c37] : memref<81xf32, #tpu.memory_space<smem>>
    %c38 = arith.constant 38 : index
    %92 = memref.load %arg1[%c38] : memref<81xf32, #tpu.memory_space<smem>>
    %c39 = arith.constant 39 : index
    %93 = memref.load %arg1[%c39] : memref<81xf32, #tpu.memory_space<smem>>
    %c40 = arith.constant 40 : index
    %94 = memref.load %arg1[%c40] : memref<81xf32, #tpu.memory_space<smem>>
    %c41 = arith.constant 41 : index
    %95 = memref.load %arg1[%c41] : memref<81xf32, #tpu.memory_space<smem>>
    %c42 = arith.constant 42 : index
    %96 = memref.load %arg1[%c42] : memref<81xf32, #tpu.memory_space<smem>>
    %c43 = arith.constant 43 : index
    %97 = memref.load %arg1[%c43] : memref<81xf32, #tpu.memory_space<smem>>
    %c44 = arith.constant 44 : index
    %98 = memref.load %arg1[%c44] : memref<81xf32, #tpu.memory_space<smem>>
    %c45 = arith.constant 45 : index
    %99 = memref.load %arg1[%c45] : memref<81xf32, #tpu.memory_space<smem>>
    %c46 = arith.constant 46 : index
    %100 = memref.load %arg1[%c46] : memref<81xf32, #tpu.memory_space<smem>>
    %c47 = arith.constant 47 : index
    %101 = memref.load %arg1[%c47] : memref<81xf32, #tpu.memory_space<smem>>
    %c48 = arith.constant 48 : index
    %102 = memref.load %arg1[%c48] : memref<81xf32, #tpu.memory_space<smem>>
    %c49 = arith.constant 49 : index
    %103 = memref.load %arg1[%c49] : memref<81xf32, #tpu.memory_space<smem>>
    %c50 = arith.constant 50 : index
    %104 = memref.load %arg1[%c50] : memref<81xf32, #tpu.memory_space<smem>>
    %c51 = arith.constant 51 : index
    %105 = memref.load %arg1[%c51] : memref<81xf32, #tpu.memory_space<smem>>
    %c52 = arith.constant 52 : index
    %106 = memref.load %arg1[%c52] : memref<81xf32, #tpu.memory_space<smem>>
    %c53 = arith.constant 53 : index
    %107 = memref.load %arg1[%c53] : memref<81xf32, #tpu.memory_space<smem>>
    %c54 = arith.constant 54 : index
    %108 = memref.load %arg1[%c54] : memref<81xf32, #tpu.memory_space<smem>>
    %c55 = arith.constant 55 : index
    %109 = memref.load %arg1[%c55] : memref<81xf32, #tpu.memory_space<smem>>
    %c56 = arith.constant 56 : index
    %110 = memref.load %arg1[%c56] : memref<81xf32, #tpu.memory_space<smem>>
    %c57 = arith.constant 57 : index
    %111 = memref.load %arg1[%c57] : memref<81xf32, #tpu.memory_space<smem>>
    %c58 = arith.constant 58 : index
    %112 = memref.load %arg1[%c58] : memref<81xf32, #tpu.memory_space<smem>>
    %c59 = arith.constant 59 : index
    %113 = memref.load %arg1[%c59] : memref<81xf32, #tpu.memory_space<smem>>
    %c60 = arith.constant 60 : index
    %114 = memref.load %arg1[%c60] : memref<81xf32, #tpu.memory_space<smem>>
    %c61 = arith.constant 61 : index
    %115 = memref.load %arg1[%c61] : memref<81xf32, #tpu.memory_space<smem>>
    %c62 = arith.constant 62 : index
    %116 = memref.load %arg1[%c62] : memref<81xf32, #tpu.memory_space<smem>>
    %c63 = arith.constant 63 : index
    %117 = memref.load %arg1[%c63] : memref<81xf32, #tpu.memory_space<smem>>
    %c64 = arith.constant 64 : index
    %118 = memref.load %arg1[%c64] : memref<81xf32, #tpu.memory_space<smem>>
    %c65_74 = arith.constant 65 : index
    %119 = memref.load %arg1[%c65_74] : memref<81xf32, #tpu.memory_space<smem>>
    %c66 = arith.constant 66 : index
    %120 = memref.load %arg1[%c66] : memref<81xf32, #tpu.memory_space<smem>>
    %c67 = arith.constant 67 : index
    %121 = memref.load %arg1[%c67] : memref<81xf32, #tpu.memory_space<smem>>
    %c68 = arith.constant 68 : index
    %122 = memref.load %arg1[%c68] : memref<81xf32, #tpu.memory_space<smem>>
    %c69 = arith.constant 69 : index
    %123 = memref.load %arg1[%c69] : memref<81xf32, #tpu.memory_space<smem>>
    %c70 = arith.constant 70 : index
    %124 = memref.load %arg1[%c70] : memref<81xf32, #tpu.memory_space<smem>>
    %c71 = arith.constant 71 : index
    %125 = memref.load %arg1[%c71] : memref<81xf32, #tpu.memory_space<smem>>
    %c72 = arith.constant 72 : index
    %126 = memref.load %arg1[%c72] : memref<81xf32, #tpu.memory_space<smem>>
    %c73 = arith.constant 73 : index
    %127 = memref.load %arg1[%c73] : memref<81xf32, #tpu.memory_space<smem>>
    %c74 = arith.constant 74 : index
    %128 = memref.load %arg1[%c74] : memref<81xf32, #tpu.memory_space<smem>>
    %c75 = arith.constant 75 : index
    %129 = memref.load %arg1[%c75] : memref<81xf32, #tpu.memory_space<smem>>
    %c76 = arith.constant 76 : index
    %130 = memref.load %arg1[%c76] : memref<81xf32, #tpu.memory_space<smem>>
    %c77 = arith.constant 77 : index
    %131 = memref.load %arg1[%c77] : memref<81xf32, #tpu.memory_space<smem>>
    %c78 = arith.constant 78 : index
    %132 = memref.load %arg1[%c78] : memref<81xf32, #tpu.memory_space<smem>>
    %c79 = arith.constant 79 : index
    %133 = memref.load %arg1[%c79] : memref<81xf32, #tpu.memory_space<smem>>
    %c80 = arith.constant 80 : index
    %134 = memref.load %arg1[%c80] : memref<81xf32, #tpu.memory_space<smem>>
    %cst_75 = arith.constant 0.000000e+00 : f32
    %135 = vector.broadcast %cst_75 : f32 to vector<16x256xf32>
    %cst_76 = arith.constant 0.000000e+00 : f32
    %136 = vector.broadcast %cst_76 : f32 to vector<16x256xf32>
    %cst_77 = arith.constant 0.000000e+00 : f32
    %137 = vector.broadcast %cst_77 : f32 to vector<16x256xf32>
    %c0_78 = arith.constant 0 : index
    %c0_79 = arith.constant 0 : index
    %c0_80 = arith.constant 0 : index
    %c0_81 = arith.constant 0 : index
    %138 = vector.load %arg5[%c0_78, %c0_79, %c0_80, %c0_81] : memref<3x3x18x256xf32, #tpu.memory_space<vmem>>, vector<1x3x16x256xf32>
    %139 = vector.shape_cast %138 : vector<1x3x16x256xf32> to vector<3x16x256xf32>
    %140 = vector.extract_strided_slice %139 {offsets = [0, 0, 0], sizes = [1, 16, 256], strides = [1, 1, 1]} : vector<3x16x256xf32> to vector<1x16x256xf32>
    %141 = vector.shape_cast %140 : vector<1x16x256xf32> to vector<16x256xf32>
    %142 = vector.broadcast %54 : f32 to vector<16x256xf32>
    %143 = arith.mulf %142, %141 : vector<16x256xf32>
    %144 = arith.addf %135, %143 : vector<16x256xf32>
    %145 = vector.broadcast %81 : f32 to vector<16x256xf32>
    %146 = arith.mulf %145, %141 : vector<16x256xf32>
    %147 = arith.addf %136, %146 : vector<16x256xf32>
    %148 = vector.broadcast %108 : f32 to vector<16x256xf32>
    %149 = arith.mulf %148, %141 : vector<16x256xf32>
    %150 = arith.addf %137, %149 : vector<16x256xf32>
    %151 = vector.extract_strided_slice %139 {offsets = [1, 0, 0], sizes = [1, 16, 256], strides = [1, 1, 1]} : vector<3x16x256xf32> to vector<1x16x256xf32>
    %152 = vector.shape_cast %151 : vector<1x16x256xf32> to vector<16x256xf32>
    %153 = vector.broadcast %63 : f32 to vector<16x256xf32>
    %154 = arith.mulf %153, %152 : vector<16x256xf32>
    %155 = arith.addf %144, %154 : vector<16x256xf32>
    %156 = vector.broadcast %90 : f32 to vector<16x256xf32>
    %157 = arith.mulf %156, %152 : vector<16x256xf32>
    %158 = arith.addf %147, %157 : vector<16x256xf32>
    %159 = vector.broadcast %117 : f32 to vector<16x256xf32>
    %160 = arith.mulf %159, %152 : vector<16x256xf32>
    %161 = arith.addf %150, %160 : vector<16x256xf32>
    %162 = vector.extract_strided_slice %139 {offsets = [2, 0, 0], sizes = [1, 16, 256], strides = [1, 1, 1]} : vector<3x16x256xf32> to vector<1x16x256xf32>
    %163 = vector.shape_cast %162 : vector<1x16x256xf32> to vector<16x256xf32>
    %164 = vector.broadcast %72 : f32 to vector<16x256xf32>
    %165 = arith.mulf %164, %163 : vector<16x256xf32>
    %166 = arith.addf %155, %165 : vector<16x256xf32>
    %167 = vector.broadcast %99 : f32 to vector<16x256xf32>
    %168 = arith.mulf %167, %163 : vector<16x256xf32>
    %169 = arith.addf %158, %168 : vector<16x256xf32>
    %170 = vector.broadcast %126 : f32 to vector<16x256xf32>
    %171 = arith.mulf %170, %163 : vector<16x256xf32>
    %172 = arith.addf %161, %171 : vector<16x256xf32>
    %c1_82 = arith.constant 1 : index
    %c0_83 = arith.constant 0 : index
    %c0_84 = arith.constant 0 : index
    %c0_85 = arith.constant 0 : index
    %173 = vector.load %arg5[%c1_82, %c0_83, %c0_84, %c0_85] : memref<3x3x18x256xf32, #tpu.memory_space<vmem>>, vector<1x3x16x256xf32>
    %174 = vector.shape_cast %173 : vector<1x3x16x256xf32> to vector<3x16x256xf32>
    %175 = vector.extract_strided_slice %174 {offsets = [0, 0, 0], sizes = [1, 16, 256], strides = [1, 1, 1]} : vector<3x16x256xf32> to vector<1x16x256xf32>
    %176 = vector.shape_cast %175 : vector<1x16x256xf32> to vector<16x256xf32>
    %177 = vector.broadcast %55 : f32 to vector<16x256xf32>
    %178 = arith.mulf %177, %176 : vector<16x256xf32>
    %179 = arith.addf %166, %178 : vector<16x256xf32>
    %180 = vector.broadcast %82 : f32 to vector<16x256xf32>
    %181 = arith.mulf %180, %176 : vector<16x256xf32>
    %182 = arith.addf %169, %181 : vector<16x256xf32>
    %183 = vector.broadcast %109 : f32 to vector<16x256xf32>
    %184 = arith.mulf %183, %176 : vector<16x256xf32>
    %185 = arith.addf %172, %184 : vector<16x256xf32>
    %186 = vector.extract_strided_slice %174 {offsets = [1, 0, 0], sizes = [1, 16, 256], strides = [1, 1, 1]} : vector<3x16x256xf32> to vector<1x16x256xf32>
    %187 = vector.shape_cast %186 : vector<1x16x256xf32> to vector<16x256xf32>
    %188 = vector.broadcast %64 : f32 to vector<16x256xf32>
    %189 = arith.mulf %188, %187 : vector<16x256xf32>
    %190 = arith.addf %179, %189 : vector<16x256xf32>
    %191 = vector.broadcast %91 : f32 to vector<16x256xf32>
    %192 = arith.mulf %191, %187 : vector<16x256xf32>
    %193 = arith.addf %182, %192 : vector<16x256xf32>
    %194 = vector.broadcast %118 : f32 to vector<16x256xf32>
    %195 = arith.mulf %194, %187 : vector<16x256xf32>
    %196 = arith.addf %185, %195 : vector<16x256xf32>
    %197 = vector.extract_strided_slice %174 {offsets = [2, 0, 0], sizes = [1, 16, 256], strides = [1, 1, 1]} : vector<3x16x256xf32> to vector<1x16x256xf32>
    %198 = vector.shape_cast %197 : vector<1x16x256xf32> to vector<16x256xf32>
    %199 = vector.broadcast %73 : f32 to vector<16x256xf32>
    %200 = arith.mulf %199, %198 : vector<16x256xf32>
    %201 = arith.addf %190, %200 : vector<16x256xf32>
    %202 = vector.broadcast %100 : f32 to vector<16x256xf32>
    %203 = arith.mulf %202, %198 : vector<16x256xf32>
    %204 = arith.addf %193, %203 : vector<16x256xf32>
    %205 = vector.broadcast %127 : f32 to vector<16x256xf32>
    %206 = arith.mulf %205, %198 : vector<16x256xf32>
    %207 = arith.addf %196, %206 : vector<16x256xf32>
    %c2_86 = arith.constant 2 : index
    %c0_87 = arith.constant 0 : index
    %c0_88 = arith.constant 0 : index
    %c0_89 = arith.constant 0 : index
    %208 = vector.load %arg5[%c2_86, %c0_87, %c0_88, %c0_89] : memref<3x3x18x256xf32, #tpu.memory_space<vmem>>, vector<1x3x16x256xf32>
    %209 = vector.shape_cast %208 : vector<1x3x16x256xf32> to vector<3x16x256xf32>
    %210 = vector.extract_strided_slice %209 {offsets = [0, 0, 0], sizes = [1, 16, 256], strides = [1, 1, 1]} : vector<3x16x256xf32> to vector<1x16x256xf32>
    %211 = vector.shape_cast %210 : vector<1x16x256xf32> to vector<16x256xf32>
    %212 = vector.broadcast %56 : f32 to vector<16x256xf32>
    %213 = arith.mulf %212, %211 : vector<16x256xf32>
    %214 = arith.addf %201, %213 : vector<16x256xf32>
    %215 = vector.broadcast %83 : f32 to vector<16x256xf32>
    %216 = arith.mulf %215, %211 : vector<16x256xf32>
    %217 = arith.addf %204, %216 : vector<16x256xf32>
    %218 = vector.broadcast %110 : f32 to vector<16x256xf32>
    %219 = arith.mulf %218, %211 : vector<16x256xf32>
    %220 = arith.addf %207, %219 : vector<16x256xf32>
    %221 = vector.extract_strided_slice %209 {offsets = [1, 0, 0], sizes = [1, 16, 256], strides = [1, 1, 1]} : vector<3x16x256xf32> to vector<1x16x256xf32>
    %222 = vector.shape_cast %221 : vector<1x16x256xf32> to vector<16x256xf32>
    %223 = vector.broadcast %65 : f32 to vector<16x256xf32>
    %224 = arith.mulf %223, %222 : vector<16x256xf32>
    %225 = arith.addf %214, %224 : vector<16x256xf32>
    %226 = vector.broadcast %92 : f32 to vector<16x256xf32>
    %227 = arith.mulf %226, %222 : vector<16x256xf32>
    %228 = arith.addf %217, %227 : vector<16x256xf32>
    %229 = vector.broadcast %119 : f32 to vector<16x256xf32>
    %230 = arith.mulf %229, %222 : vector<16x256xf32>
    %231 = arith.addf %220, %230 : vector<16x256xf32>
    %232 = vector.extract_strided_slice %209 {offsets = [2, 0, 0], sizes = [1, 16, 256], strides = [1, 1, 1]} : vector<3x16x256xf32> to vector<1x16x256xf32>
    %233 = vector.shape_cast %232 : vector<1x16x256xf32> to vector<16x256xf32>
    %234 = vector.broadcast %74 : f32 to vector<16x256xf32>
    %235 = arith.mulf %234, %233 : vector<16x256xf32>
    %236 = arith.addf %225, %235 : vector<16x256xf32>
    %237 = vector.broadcast %101 : f32 to vector<16x256xf32>
    %238 = arith.mulf %237, %233 : vector<16x256xf32>
    %239 = arith.addf %228, %238 : vector<16x256xf32>
    %240 = vector.broadcast %128 : f32 to vector<16x256xf32>
    %241 = arith.mulf %240, %233 : vector<16x256xf32>
    %242 = arith.addf %231, %241 : vector<16x256xf32>
    %c0_90 = arith.constant 0 : index
    %c0_91 = arith.constant 0 : index
    %c1_92 = arith.constant 1 : index
    %c0_93 = arith.constant 0 : index
    %243 = vector.load %arg5[%c0_90, %c0_91, %c1_92, %c0_93] : memref<3x3x18x256xf32, #tpu.memory_space<vmem>>, vector<1x3x16x256xf32>
    %244 = vector.shape_cast %243 : vector<1x3x16x256xf32> to vector<3x16x256xf32>
    %245 = vector.extract_strided_slice %244 {offsets = [0, 0, 0], sizes = [1, 16, 256], strides = [1, 1, 1]} : vector<3x16x256xf32> to vector<1x16x256xf32>
    %246 = vector.shape_cast %245 : vector<1x16x256xf32> to vector<16x256xf32>
    %247 = vector.broadcast %57 : f32 to vector<16x256xf32>
    %248 = arith.mulf %247, %246 : vector<16x256xf32>
    %249 = arith.addf %236, %248 : vector<16x256xf32>
    %250 = vector.broadcast %84 : f32 to vector<16x256xf32>
    %251 = arith.mulf %250, %246 : vector<16x256xf32>
    %252 = arith.addf %239, %251 : vector<16x256xf32>
    %253 = vector.broadcast %111 : f32 to vector<16x256xf32>
    %254 = arith.mulf %253, %246 : vector<16x256xf32>
    %255 = arith.addf %242, %254 : vector<16x256xf32>
    %256 = vector.extract_strided_slice %244 {offsets = [1, 0, 0], sizes = [1, 16, 256], strides = [1, 1, 1]} : vector<3x16x256xf32> to vector<1x16x256xf32>
    %257 = vector.shape_cast %256 : vector<1x16x256xf32> to vector<16x256xf32>
    %258 = vector.broadcast %66 : f32 to vector<16x256xf32>
    %259 = arith.mulf %258, %257 : vector<16x256xf32>
    %260 = arith.addf %249, %259 : vector<16x256xf32>
    %261 = vector.broadcast %93 : f32 to vector<16x256xf32>
    %262 = arith.mulf %261, %257 : vector<16x256xf32>
    %263 = arith.addf %252, %262 : vector<16x256xf32>
    %264 = vector.broadcast %120 : f32 to vector<16x256xf32>
    %265 = arith.mulf %264, %257 : vector<16x256xf32>
    %266 = arith.addf %255, %265 : vector<16x256xf32>
    %267 = vector.extract_strided_slice %244 {offsets = [2, 0, 0], sizes = [1, 16, 256], strides = [1, 1, 1]} : vector<3x16x256xf32> to vector<1x16x256xf32>
    %268 = vector.shape_cast %267 : vector<1x16x256xf32> to vector<16x256xf32>
    %269 = vector.broadcast %75 : f32 to vector<16x256xf32>
    %270 = arith.mulf %269, %268 : vector<16x256xf32>
    %271 = arith.addf %260, %270 : vector<16x256xf32>
    %272 = vector.broadcast %102 : f32 to vector<16x256xf32>
    %273 = arith.mulf %272, %268 : vector<16x256xf32>
    %274 = arith.addf %263, %273 : vector<16x256xf32>
    %275 = vector.broadcast %129 : f32 to vector<16x256xf32>
    %276 = arith.mulf %275, %268 : vector<16x256xf32>
    %277 = arith.addf %266, %276 : vector<16x256xf32>
    %c1_94 = arith.constant 1 : index
    %c0_95 = arith.constant 0 : index
    %c1_96 = arith.constant 1 : index
    %c0_97 = arith.constant 0 : index
    %278 = vector.load %arg5[%c1_94, %c0_95, %c1_96, %c0_97] : memref<3x3x18x256xf32, #tpu.memory_space<vmem>>, vector<1x3x16x256xf32>
    %279 = vector.shape_cast %278 : vector<1x3x16x256xf32> to vector<3x16x256xf32>
    %280 = vector.extract_strided_slice %279 {offsets = [0, 0, 0], sizes = [1, 16, 256], strides = [1, 1, 1]} : vector<3x16x256xf32> to vector<1x16x256xf32>
    %281 = vector.shape_cast %280 : vector<1x16x256xf32> to vector<16x256xf32>
    %282 = vector.broadcast %58 : f32 to vector<16x256xf32>
    %283 = arith.mulf %282, %281 : vector<16x256xf32>
    %284 = arith.addf %271, %283 : vector<16x256xf32>
    %285 = vector.broadcast %85 : f32 to vector<16x256xf32>
    %286 = arith.mulf %285, %281 : vector<16x256xf32>
    %287 = arith.addf %274, %286 : vector<16x256xf32>
    %288 = vector.broadcast %112 : f32 to vector<16x256xf32>
    %289 = arith.mulf %288, %281 : vector<16x256xf32>
    %290 = arith.addf %277, %289 : vector<16x256xf32>
    %291 = vector.extract_strided_slice %279 {offsets = [1, 0, 0], sizes = [1, 16, 256], strides = [1, 1, 1]} : vector<3x16x256xf32> to vector<1x16x256xf32>
    %292 = vector.shape_cast %291 : vector<1x16x256xf32> to vector<16x256xf32>
    %293 = vector.broadcast %67 : f32 to vector<16x256xf32>
    %294 = arith.mulf %293, %292 : vector<16x256xf32>
    %295 = arith.addf %284, %294 : vector<16x256xf32>
    %296 = vector.broadcast %94 : f32 to vector<16x256xf32>
    %297 = arith.mulf %296, %292 : vector<16x256xf32>
    %298 = arith.addf %287, %297 : vector<16x256xf32>
    %299 = vector.broadcast %121 : f32 to vector<16x256xf32>
    %300 = arith.mulf %299, %292 : vector<16x256xf32>
    %301 = arith.addf %290, %300 : vector<16x256xf32>
    %302 = vector.extract_strided_slice %279 {offsets = [2, 0, 0], sizes = [1, 16, 256], strides = [1, 1, 1]} : vector<3x16x256xf32> to vector<1x16x256xf32>
    %303 = vector.shape_cast %302 : vector<1x16x256xf32> to vector<16x256xf32>
    %304 = vector.broadcast %76 : f32 to vector<16x256xf32>
    %305 = arith.mulf %304, %303 : vector<16x256xf32>
    %306 = arith.addf %295, %305 : vector<16x256xf32>
    %307 = vector.broadcast %103 : f32 to vector<16x256xf32>
    %308 = arith.mulf %307, %303 : vector<16x256xf32>
    %309 = arith.addf %298, %308 : vector<16x256xf32>
    %310 = vector.broadcast %130 : f32 to vector<16x256xf32>
    %311 = arith.mulf %310, %303 : vector<16x256xf32>
    %312 = arith.addf %301, %311 : vector<16x256xf32>
    %c2_98 = arith.constant 2 : index
    %c0_99 = arith.constant 0 : index
    %c1_100 = arith.constant 1 : index
    %c0_101 = arith.constant 0 : index
    %313 = vector.load %arg5[%c2_98, %c0_99, %c1_100, %c0_101] : memref<3x3x18x256xf32, #tpu.memory_space<vmem>>, vector<1x3x16x256xf32>
    %314 = vector.shape_cast %313 : vector<1x3x16x256xf32> to vector<3x16x256xf32>
    %315 = vector.extract_strided_slice %314 {offsets = [0, 0, 0], sizes = [1, 16, 256], strides = [1, 1, 1]} : vector<3x16x256xf32> to vector<1x16x256xf32>
    %316 = vector.shape_cast %315 : vector<1x16x256xf32> to vector<16x256xf32>
    %317 = vector.broadcast %59 : f32 to vector<16x256xf32>
    %318 = arith.mulf %317, %316 : vector<16x256xf32>
    %319 = arith.addf %306, %318 : vector<16x256xf32>
    %320 = vector.broadcast %86 : f32 to vector<16x256xf32>
    %321 = arith.mulf %320, %316 : vector<16x256xf32>
    %322 = arith.addf %309, %321 : vector<16x256xf32>
    %323 = vector.broadcast %113 : f32 to vector<16x256xf32>
    %324 = arith.mulf %323, %316 : vector<16x256xf32>
    %325 = arith.addf %312, %324 : vector<16x256xf32>
    %326 = vector.extract_strided_slice %314 {offsets = [1, 0, 0], sizes = [1, 16, 256], strides = [1, 1, 1]} : vector<3x16x256xf32> to vector<1x16x256xf32>
    %327 = vector.shape_cast %326 : vector<1x16x256xf32> to vector<16x256xf32>
    %328 = vector.broadcast %68 : f32 to vector<16x256xf32>
    %329 = arith.mulf %328, %327 : vector<16x256xf32>
    %330 = arith.addf %319, %329 : vector<16x256xf32>
    %331 = vector.broadcast %95 : f32 to vector<16x256xf32>
    %332 = arith.mulf %331, %327 : vector<16x256xf32>
    %333 = arith.addf %322, %332 : vector<16x256xf32>
    %334 = vector.broadcast %122 : f32 to vector<16x256xf32>
    %335 = arith.mulf %334, %327 : vector<16x256xf32>
    %336 = arith.addf %325, %335 : vector<16x256xf32>
    %337 = vector.extract_strided_slice %314 {offsets = [2, 0, 0], sizes = [1, 16, 256], strides = [1, 1, 1]} : vector<3x16x256xf32> to vector<1x16x256xf32>
    %338 = vector.shape_cast %337 : vector<1x16x256xf32> to vector<16x256xf32>
    %339 = vector.broadcast %77 : f32 to vector<16x256xf32>
    %340 = arith.mulf %339, %338 : vector<16x256xf32>
    %341 = arith.addf %330, %340 : vector<16x256xf32>
    %342 = vector.broadcast %104 : f32 to vector<16x256xf32>
    %343 = arith.mulf %342, %338 : vector<16x256xf32>
    %344 = arith.addf %333, %343 : vector<16x256xf32>
    %345 = vector.broadcast %131 : f32 to vector<16x256xf32>
    %346 = arith.mulf %345, %338 : vector<16x256xf32>
    %347 = arith.addf %336, %346 : vector<16x256xf32>
    %c0_102 = arith.constant 0 : index
    %c0_103 = arith.constant 0 : index
    %c2_104 = arith.constant 2 : index
    %c0_105 = arith.constant 0 : index
    %348 = vector.load %arg5[%c0_102, %c0_103, %c2_104, %c0_105] : memref<3x3x18x256xf32, #tpu.memory_space<vmem>>, vector<1x3x16x256xf32>
    %349 = vector.shape_cast %348 : vector<1x3x16x256xf32> to vector<3x16x256xf32>
    %350 = vector.extract_strided_slice %349 {offsets = [0, 0, 0], sizes = [1, 16, 256], strides = [1, 1, 1]} : vector<3x16x256xf32> to vector<1x16x256xf32>
    %351 = vector.shape_cast %350 : vector<1x16x256xf32> to vector<16x256xf32>
    %352 = vector.broadcast %60 : f32 to vector<16x256xf32>
    %353 = arith.mulf %352, %351 : vector<16x256xf32>
    %354 = arith.addf %341, %353 : vector<16x256xf32>
    %355 = vector.broadcast %87 : f32 to vector<16x256xf32>
    %356 = arith.mulf %355, %351 : vector<16x256xf32>
    %357 = arith.addf %344, %356 : vector<16x256xf32>
    %358 = vector.broadcast %114 : f32 to vector<16x256xf32>
    %359 = arith.mulf %358, %351 : vector<16x256xf32>
    %360 = arith.addf %347, %359 : vector<16x256xf32>
    %361 = vector.extract_strided_slice %349 {offsets = [1, 0, 0], sizes = [1, 16, 256], strides = [1, 1, 1]} : vector<3x16x256xf32> to vector<1x16x256xf32>
    %362 = vector.shape_cast %361 : vector<1x16x256xf32> to vector<16x256xf32>
    %363 = vector.broadcast %69 : f32 to vector<16x256xf32>
    %364 = arith.mulf %363, %362 : vector<16x256xf32>
    %365 = arith.addf %354, %364 : vector<16x256xf32>
    %366 = vector.broadcast %96 : f32 to vector<16x256xf32>
    %367 = arith.mulf %366, %362 : vector<16x256xf32>
    %368 = arith.addf %357, %367 : vector<16x256xf32>
    %369 = vector.broadcast %123 : f32 to vector<16x256xf32>
    %370 = arith.mulf %369, %362 : vector<16x256xf32>
    %371 = arith.addf %360, %370 : vector<16x256xf32>
    %372 = vector.extract_strided_slice %349 {offsets = [2, 0, 0], sizes = [1, 16, 256], strides = [1, 1, 1]} : vector<3x16x256xf32> to vector<1x16x256xf32>
    %373 = vector.shape_cast %372 : vector<1x16x256xf32> to vector<16x256xf32>
    %374 = vector.broadcast %78 : f32 to vector<16x256xf32>
    %375 = arith.mulf %374, %373 : vector<16x256xf32>
    %376 = arith.addf %365, %375 : vector<16x256xf32>
    %377 = vector.broadcast %105 : f32 to vector<16x256xf32>
    %378 = arith.mulf %377, %373 : vector<16x256xf32>
    %379 = arith.addf %368, %378 : vector<16x256xf32>
    %380 = vector.broadcast %132 : f32 to vector<16x256xf32>
    %381 = arith.mulf %380, %373 : vector<16x256xf32>
    %382 = arith.addf %371, %381 : vector<16x256xf32>
    %c1_106 = arith.constant 1 : index
    %c0_107 = arith.constant 0 : index
    %c2_108 = arith.constant 2 : index
    %c0_109 = arith.constant 0 : index
    %383 = vector.load %arg5[%c1_106, %c0_107, %c2_108, %c0_109] : memref<3x3x18x256xf32, #tpu.memory_space<vmem>>, vector<1x3x16x256xf32>
    %384 = vector.shape_cast %383 : vector<1x3x16x256xf32> to vector<3x16x256xf32>
    %385 = vector.extract_strided_slice %384 {offsets = [0, 0, 0], sizes = [1, 16, 256], strides = [1, 1, 1]} : vector<3x16x256xf32> to vector<1x16x256xf32>
    %386 = vector.shape_cast %385 : vector<1x16x256xf32> to vector<16x256xf32>
    %387 = vector.broadcast %61 : f32 to vector<16x256xf32>
    %388 = arith.mulf %387, %386 : vector<16x256xf32>
    %389 = arith.addf %376, %388 : vector<16x256xf32>
    %390 = vector.broadcast %88 : f32 to vector<16x256xf32>
    %391 = arith.mulf %390, %386 : vector<16x256xf32>
    %392 = arith.addf %379, %391 : vector<16x256xf32>
    %393 = vector.broadcast %115 : f32 to vector<16x256xf32>
    %394 = arith.mulf %393, %386 : vector<16x256xf32>
    %395 = arith.addf %382, %394 : vector<16x256xf32>
    %396 = vector.extract_strided_slice %384 {offsets = [1, 0, 0], sizes = [1, 16, 256], strides = [1, 1, 1]} : vector<3x16x256xf32> to vector<1x16x256xf32>
    %397 = vector.shape_cast %396 : vector<1x16x256xf32> to vector<16x256xf32>
    %398 = vector.broadcast %70 : f32 to vector<16x256xf32>
    %399 = arith.mulf %398, %397 : vector<16x256xf32>
    %400 = arith.addf %389, %399 : vector<16x256xf32>
    %401 = vector.broadcast %97 : f32 to vector<16x256xf32>
    %402 = arith.mulf %401, %397 : vector<16x256xf32>
    %403 = arith.addf %392, %402 : vector<16x256xf32>
    %404 = vector.broadcast %124 : f32 to vector<16x256xf32>
    %405 = arith.mulf %404, %397 : vector<16x256xf32>
    %406 = arith.addf %395, %405 : vector<16x256xf32>
    %407 = vector.extract_strided_slice %384 {offsets = [2, 0, 0], sizes = [1, 16, 256], strides = [1, 1, 1]} : vector<3x16x256xf32> to vector<1x16x256xf32>
    %408 = vector.shape_cast %407 : vector<1x16x256xf32> to vector<16x256xf32>
    %409 = vector.broadcast %79 : f32 to vector<16x256xf32>
    %410 = arith.mulf %409, %408 : vector<16x256xf32>
    %411 = arith.addf %400, %410 : vector<16x256xf32>
    %412 = vector.broadcast %106 : f32 to vector<16x256xf32>
    %413 = arith.mulf %412, %408 : vector<16x256xf32>
    %414 = arith.addf %403, %413 : vector<16x256xf32>
    %415 = vector.broadcast %133 : f32 to vector<16x256xf32>
    %416 = arith.mulf %415, %408 : vector<16x256xf32>
    %417 = arith.addf %406, %416 : vector<16x256xf32>
    %c2_110 = arith.constant 2 : index
    %c0_111 = arith.constant 0 : index
    %c2_112 = arith.constant 2 : index
    %c0_113 = arith.constant 0 : index
    %418 = vector.load %arg5[%c2_110, %c0_111, %c2_112, %c0_113] : memref<3x3x18x256xf32, #tpu.memory_space<vmem>>, vector<1x3x16x256xf32>
    %419 = vector.shape_cast %418 : vector<1x3x16x256xf32> to vector<3x16x256xf32>
    %420 = vector.extract_strided_slice %419 {offsets = [0, 0, 0], sizes = [1, 16, 256], strides = [1, 1, 1]} : vector<3x16x256xf32> to vector<1x16x256xf32>
    %421 = vector.shape_cast %420 : vector<1x16x256xf32> to vector<16x256xf32>
    %422 = vector.broadcast %62 : f32 to vector<16x256xf32>
    %423 = arith.mulf %422, %421 : vector<16x256xf32>
    %424 = arith.addf %411, %423 : vector<16x256xf32>
    %425 = vector.broadcast %89 : f32 to vector<16x256xf32>
    %426 = arith.mulf %425, %421 : vector<16x256xf32>
    %427 = arith.addf %414, %426 : vector<16x256xf32>
    %428 = vector.broadcast %116 : f32 to vector<16x256xf32>
    %429 = arith.mulf %428, %421 : vector<16x256xf32>
    %430 = arith.addf %417, %429 : vector<16x256xf32>
    %431 = vector.extract_strided_slice %419 {offsets = [1, 0, 0], sizes = [1, 16, 256], strides = [1, 1, 1]} : vector<3x16x256xf32> to vector<1x16x256xf32>
    %432 = vector.shape_cast %431 : vector<1x16x256xf32> to vector<16x256xf32>
    %433 = vector.broadcast %71 : f32 to vector<16x256xf32>
    %434 = arith.mulf %433, %432 : vector<16x256xf32>
    %435 = arith.addf %424, %434 : vector<16x256xf32>
    %436 = vector.broadcast %98 : f32 to vector<16x256xf32>
    %437 = arith.mulf %436, %432 : vector<16x256xf32>
    %438 = arith.addf %427, %437 : vector<16x256xf32>
    %439 = vector.broadcast %125 : f32 to vector<16x256xf32>
    %440 = arith.mulf %439, %432 : vector<16x256xf32>
    %441 = arith.addf %430, %440 : vector<16x256xf32>
    %442 = vector.extract_strided_slice %419 {offsets = [2, 0, 0], sizes = [1, 16, 256], strides = [1, 1, 1]} : vector<3x16x256xf32> to vector<1x16x256xf32>
    %443 = vector.shape_cast %442 : vector<1x16x256xf32> to vector<16x256xf32>
    %444 = vector.broadcast %80 : f32 to vector<16x256xf32>
    %445 = arith.mulf %444, %443 : vector<16x256xf32>
    %446 = arith.addf %435, %445 : vector<16x256xf32>
    %447 = vector.broadcast %107 : f32 to vector<16x256xf32>
    %448 = arith.mulf %447, %443 : vector<16x256xf32>
    %449 = arith.addf %438, %448 : vector<16x256xf32>
    %450 = vector.broadcast %134 : f32 to vector<16x256xf32>
    %451 = arith.mulf %450, %443 : vector<16x256xf32>
    %452 = arith.addf %441, %451 : vector<16x256xf32>
    %c0_114 = arith.constant 0 : index
    %453 = memref.load %arg2[%c0_114] : memref<3xf32, #tpu.memory_space<smem>>
    %454 = vector.broadcast %453 : f32 to vector<16x256xf32>
    %455 = arith.addf %446, %454 : vector<16x256xf32>
    %c1_115 = arith.constant 1 : index
    %456 = memref.load %arg2[%c1_115] : memref<3xf32, #tpu.memory_space<smem>>
    %457 = vector.broadcast %456 : f32 to vector<16x256xf32>
    %458 = arith.addf %449, %457 : vector<16x256xf32>
    %c2_116 = arith.constant 2 : index
    %459 = memref.load %arg2[%c2_116] : memref<3xf32, #tpu.memory_space<smem>>
    %460 = vector.broadcast %459 : f32 to vector<16x256xf32>
    %461 = arith.addf %452, %460 : vector<16x256xf32>
    %462 = vector.extract_strided_slice %455 {offsets = [0, 0], sizes = [16, 16], strides = [1, 1]} : vector<16x256xf32> to vector<16x16xf32>
    %463 = vector.extract_strided_slice %458 {offsets = [0, 0], sizes = [16, 16], strides = [1, 1]} : vector<16x256xf32> to vector<16x16xf32>
    %464 = vector.extract_strided_slice %461 {offsets = [0, 0], sizes = [16, 16], strides = [1, 1]} : vector<16x256xf32> to vector<16x16xf32>
    %cst_117 = arith.constant dense<0.000000e+00> : vector<16x16xf32>
    %465 = tpu.matmul %462, %463, %cst_117 {dimension_numbers = #tpu.dot_dimension_numbers<[1], [1], [0], [0], [0, 0, 1, 0], [], []>} : vector<16x16xf32>, vector<16x16xf32>, vector<16x16xf32> -> vector<16x16xf32>
    %cst_118 = arith.constant dense<0xFF800000> : vector<16xf32>
    %466 = vector.multi_reduction <maximumf>, %465, %cst_118 [1] : vector<16x16xf32> to vector<16xf32>
    %467 = vector.shape_cast %466 : vector<16xf32> to vector<16x1xf32>
    %468 = vector.broadcast %467 : vector<16x1xf32> to vector<16x16xf32>
    %469 = arith.subf %465, %468 : vector<16x16xf32>
    %470 = math.exp %469 : vector<16x16xf32>
    %cst_119 = arith.constant dense<0.000000e+00> : vector<16xf32>
    %471 = vector.multi_reduction <add>, %470, %cst_119 [1] : vector<16x16xf32> to vector<16xf32>
    %472 = vector.shape_cast %471 : vector<16xf32> to vector<16x1xf32>
    %473 = tpu.reciprocal %472 {approx = true} : vector<16x1xf32> -> vector<16x1xf32>
    %474 = vector.broadcast %473 : vector<16x1xf32> to vector<16x16xf32>
    %475 = arith.mulf %470, %474 : vector<16x16xf32>
    %cst_120 = arith.constant dense<0.000000e+00> : vector<16x16xf32>
    %476 = tpu.matmul %475, %464, %cst_120 {dimension_numbers = #tpu.dot_dimension_numbers<[1], [0], [0], [1], [0, 0, 1, 1], [], []>} : vector<16x16xf32>, vector<16x16xf32>, vector<16x16xf32> -> vector<16x16xf32>
    %477 = vector.extract_strided_slice %455 {offsets = [0, 32], sizes = [16, 16], strides = [1, 1]} : vector<16x256xf32> to vector<16x16xf32>
    %478 = vector.extract_strided_slice %458 {offsets = [0, 32], sizes = [16, 16], strides = [1, 1]} : vector<16x256xf32> to vector<16x16xf32>
    %479 = vector.extract_strided_slice %461 {offsets = [0, 32], sizes = [16, 16], strides = [1, 1]} : vector<16x256xf32> to vector<16x16xf32>
    %cst_121 = arith.constant dense<0.000000e+00> : vector<16x16xf32>
    %480 = tpu.matmul %477, %478, %cst_121 {dimension_numbers = #tpu.dot_dimension_numbers<[1], [1], [0], [0], [0, 0, 1, 0], [], []>} : vector<16x16xf32>, vector<16x16xf32>, vector<16x16xf32> -> vector<16x16xf32>
    %cst_122 = arith.constant dense<0xFF800000> : vector<16xf32>
    %481 = vector.multi_reduction <maximumf>, %480, %cst_122 [1] : vector<16x16xf32> to vector<16xf32>
    %482 = vector.shape_cast %481 : vector<16xf32> to vector<16x1xf32>
    %483 = vector.broadcast %482 : vector<16x1xf32> to vector<16x16xf32>
    %484 = arith.subf %480, %483 : vector<16x16xf32>
    %485 = math.exp %484 : vector<16x16xf32>
    %cst_123 = arith.constant dense<0.000000e+00> : vector<16xf32>
    %486 = vector.multi_reduction <add>, %485, %cst_123 [1] : vector<16x16xf32> to vector<16xf32>
    %487 = vector.shape_cast %486 : vector<16xf32> to vector<16x1xf32>
    %488 = tpu.reciprocal %487 {approx = true} : vector<16x1xf32> -> vector<16x1xf32>
    %489 = vector.broadcast %488 : vector<16x1xf32> to vector<16x16xf32>
    %490 = arith.mulf %485, %489 : vector<16x16xf32>
    %cst_124 = arith.constant dense<0.000000e+00> : vector<16x16xf32>
    %491 = tpu.matmul %490, %479, %cst_124 {dimension_numbers = #tpu.dot_dimension_numbers<[1], [0], [0], [1], [0, 0, 1, 1], [], []>} : vector<16x16xf32>, vector<16x16xf32>, vector<16x16xf32> -> vector<16x16xf32>
    %492 = vector.extract_strided_slice %455 {offsets = [0, 64], sizes = [16, 16], strides = [1, 1]} : vector<16x256xf32> to vector<16x16xf32>
    %493 = vector.extract_strided_slice %458 {offsets = [0, 64], sizes = [16, 16], strides = [1, 1]} : vector<16x256xf32> to vector<16x16xf32>
    %494 = vector.extract_strided_slice %461 {offsets = [0, 64], sizes = [16, 16], strides = [1, 1]} : vector<16x256xf32> to vector<16x16xf32>
    %cst_125 = arith.constant dense<0.000000e+00> : vector<16x16xf32>
    %495 = tpu.matmul %492, %493, %cst_125 {dimension_numbers = #tpu.dot_dimension_numbers<[1], [1], [0], [0], [0, 0, 1, 0], [], []>} : vector<16x16xf32>, vector<16x16xf32>, vector<16x16xf32> -> vector<16x16xf32>
    %cst_126 = arith.constant dense<0xFF800000> : vector<16xf32>
    %496 = vector.multi_reduction <maximumf>, %495, %cst_126 [1] : vector<16x16xf32> to vector<16xf32>
    %497 = vector.shape_cast %496 : vector<16xf32> to vector<16x1xf32>
    %498 = vector.broadcast %497 : vector<16x1xf32> to vector<16x16xf32>
    %499 = arith.subf %495, %498 : vector<16x16xf32>
    %500 = math.exp %499 : vector<16x16xf32>
    %cst_127 = arith.constant dense<0.000000e+00> : vector<16xf32>
    %501 = vector.multi_reduction <add>, %500, %cst_127 [1] : vector<16x16xf32> to vector<16xf32>
    %502 = vector.shape_cast %501 : vector<16xf32> to vector<16x1xf32>
    %503 = tpu.reciprocal %502 {approx = true} : vector<16x1xf32> -> vector<16x1xf32>
    %504 = vector.broadcast %503 : vector<16x1xf32> to vector<16x16xf32>
    %505 = arith.mulf %500, %504 : vector<16x16xf32>
    %cst_128 = arith.constant dense<0.000000e+00> : vector<16x16xf32>
    %506 = tpu.matmul %505, %494, %cst_128 {dimension_numbers = #tpu.dot_dimension_numbers<[1], [0], [0], [1], [0, 0, 1, 1], [], []>} : vector<16x16xf32>, vector<16x16xf32>, vector<16x16xf32> -> vector<16x16xf32>
    %507 = vector.extract_strided_slice %455 {offsets = [0, 96], sizes = [16, 16], strides = [1, 1]} : vector<16x256xf32> to vector<16x16xf32>
    %508 = vector.extract_strided_slice %458 {offsets = [0, 96], sizes = [16, 16], strides = [1, 1]} : vector<16x256xf32> to vector<16x16xf32>
    %509 = vector.extract_strided_slice %461 {offsets = [0, 96], sizes = [16, 16], strides = [1, 1]} : vector<16x256xf32> to vector<16x16xf32>
    %cst_129 = arith.constant dense<0.000000e+00> : vector<16x16xf32>
    %510 = tpu.matmul %507, %508, %cst_129 {dimension_numbers = #tpu.dot_dimension_numbers<[1], [1], [0], [0], [0, 0, 1, 0], [], []>} : vector<16x16xf32>, vector<16x16xf32>, vector<16x16xf32> -> vector<16x16xf32>
    %cst_130 = arith.constant dense<0xFF800000> : vector<16xf32>
    %511 = vector.multi_reduction <maximumf>, %510, %cst_130 [1] : vector<16x16xf32> to vector<16xf32>
    %512 = vector.shape_cast %511 : vector<16xf32> to vector<16x1xf32>
    %513 = vector.broadcast %512 : vector<16x1xf32> to vector<16x16xf32>
    %514 = arith.subf %510, %513 : vector<16x16xf32>
    %515 = math.exp %514 : vector<16x16xf32>
    %cst_131 = arith.constant dense<0.000000e+00> : vector<16xf32>
    %516 = vector.multi_reduction <add>, %515, %cst_131 [1] : vector<16x16xf32> to vector<16xf32>
    %517 = vector.shape_cast %516 : vector<16xf32> to vector<16x1xf32>
    %518 = tpu.reciprocal %517 {approx = true} : vector<16x1xf32> -> vector<16x1xf32>
    %519 = vector.broadcast %518 : vector<16x1xf32> to vector<16x16xf32>
    %520 = arith.mulf %515, %519 : vector<16x16xf32>
    %cst_132 = arith.constant dense<0.000000e+00> : vector<16x16xf32>
    %521 = tpu.matmul %520, %509, %cst_132 {dimension_numbers = #tpu.dot_dimension_numbers<[1], [0], [0], [1], [0, 0, 1, 1], [], []>} : vector<16x16xf32>, vector<16x16xf32>, vector<16x16xf32> -> vector<16x16xf32>
    %522 = vector.extract_strided_slice %455 {offsets = [0, 128], sizes = [16, 16], strides = [1, 1]} : vector<16x256xf32> to vector<16x16xf32>
    %523 = vector.extract_strided_slice %458 {offsets = [0, 128], sizes = [16, 16], strides = [1, 1]} : vector<16x256xf32> to vector<16x16xf32>
    %524 = vector.extract_strided_slice %461 {offsets = [0, 128], sizes = [16, 16], strides = [1, 1]} : vector<16x256xf32> to vector<16x16xf32>
    %cst_133 = arith.constant dense<0.000000e+00> : vector<16x16xf32>
    %525 = tpu.matmul %522, %523, %cst_133 {dimension_numbers = #tpu.dot_dimension_numbers<[1], [1], [0], [0], [0, 0, 1, 0], [], []>} : vector<16x16xf32>, vector<16x16xf32>, vector<16x16xf32> -> vector<16x16xf32>
    %cst_134 = arith.constant dense<0xFF800000> : vector<16xf32>
    %526 = vector.multi_reduction <maximumf>, %525, %cst_134 [1] : vector<16x16xf32> to vector<16xf32>
    %527 = vector.shape_cast %526 : vector<16xf32> to vector<16x1xf32>
    %528 = vector.broadcast %527 : vector<16x1xf32> to vector<16x16xf32>
    %529 = arith.subf %525, %528 : vector<16x16xf32>
    %530 = math.exp %529 : vector<16x16xf32>
    %cst_135 = arith.constant dense<0.000000e+00> : vector<16xf32>
    %531 = vector.multi_reduction <add>, %530, %cst_135 [1] : vector<16x16xf32> to vector<16xf32>
    %532 = vector.shape_cast %531 : vector<16xf32> to vector<16x1xf32>
    %533 = tpu.reciprocal %532 {approx = true} : vector<16x1xf32> -> vector<16x1xf32>
    %534 = vector.broadcast %533 : vector<16x1xf32> to vector<16x16xf32>
    %535 = arith.mulf %530, %534 : vector<16x16xf32>
    %cst_136 = arith.constant dense<0.000000e+00> : vector<16x16xf32>
    %536 = tpu.matmul %535, %524, %cst_136 {dimension_numbers = #tpu.dot_dimension_numbers<[1], [0], [0], [1], [0, 0, 1, 1], [], []>} : vector<16x16xf32>, vector<16x16xf32>, vector<16x16xf32> -> vector<16x16xf32>
    %537 = vector.extract_strided_slice %455 {offsets = [0, 160], sizes = [16, 16], strides = [1, 1]} : vector<16x256xf32> to vector<16x16xf32>
    %538 = vector.extract_strided_slice %458 {offsets = [0, 160], sizes = [16, 16], strides = [1, 1]} : vector<16x256xf32> to vector<16x16xf32>
    %539 = vector.extract_strided_slice %461 {offsets = [0, 160], sizes = [16, 16], strides = [1, 1]} : vector<16x256xf32> to vector<16x16xf32>
    %cst_137 = arith.constant dense<0.000000e+00> : vector<16x16xf32>
    %540 = tpu.matmul %537, %538, %cst_137 {dimension_numbers = #tpu.dot_dimension_numbers<[1], [1], [0], [0], [0, 0, 1, 0], [], []>} : vector<16x16xf32>, vector<16x16xf32>, vector<16x16xf32> -> vector<16x16xf32>
    %cst_138 = arith.constant dense<0xFF800000> : vector<16xf32>
    %541 = vector.multi_reduction <maximumf>, %540, %cst_138 [1] : vector<16x16xf32> to vector<16xf32>
    %542 = vector.shape_cast %541 : vector<16xf32> to vector<16x1xf32>
    %543 = vector.broadcast %542 : vector<16x1xf32> to vector<16x16xf32>
    %544 = arith.subf %540, %543 : vector<16x16xf32>
    %545 = math.exp %544 : vector<16x16xf32>
    %cst_139 = arith.constant dense<0.000000e+00> : vector<16xf32>
    %546 = vector.multi_reduction <add>, %545, %cst_139 [1] : vector<16x16xf32> to vector<16xf32>
    %547 = vector.shape_cast %546 : vector<16xf32> to vector<16x1xf32>
    %548 = tpu.reciprocal %547 {approx = true} : vector<16x1xf32> -> vector<16x1xf32>
    %549 = vector.broadcast %548 : vector<16x1xf32> to vector<16x16xf32>
    %550 = arith.mulf %545, %549 : vector<16x16xf32>
    %cst_140 = arith.constant dense<0.000000e+00> : vector<16x16xf32>
    %551 = tpu.matmul %550, %539, %cst_140 {dimension_numbers = #tpu.dot_dimension_numbers<[1], [0], [0], [1], [0, 0, 1, 1], [], []>} : vector<16x16xf32>, vector<16x16xf32>, vector<16x16xf32> -> vector<16x16xf32>
    %552 = vector.extract_strided_slice %455 {offsets = [0, 192], sizes = [16, 16], strides = [1, 1]} : vector<16x256xf32> to vector<16x16xf32>
    %553 = vector.extract_strided_slice %458 {offsets = [0, 192], sizes = [16, 16], strides = [1, 1]} : vector<16x256xf32> to vector<16x16xf32>
    %554 = vector.extract_strided_slice %461 {offsets = [0, 192], sizes = [16, 16], strides = [1, 1]} : vector<16x256xf32> to vector<16x16xf32>
    %cst_141 = arith.constant dense<0.000000e+00> : vector<16x16xf32>
    %555 = tpu.matmul %552, %553, %cst_141 {dimension_numbers = #tpu.dot_dimension_numbers<[1], [1], [0], [0], [0, 0, 1, 0], [], []>} : vector<16x16xf32>, vector<16x16xf32>, vector<16x16xf32> -> vector<16x16xf32>
    %cst_142 = arith.constant dense<0xFF800000> : vector<16xf32>
    %556 = vector.multi_reduction <maximumf>, %555, %cst_142 [1] : vector<16x16xf32> to vector<16xf32>
    %557 = vector.shape_cast %556 : vector<16xf32> to vector<16x1xf32>
    %558 = vector.broadcast %557 : vector<16x1xf32> to vector<16x16xf32>
    %559 = arith.subf %555, %558 : vector<16x16xf32>
    %560 = math.exp %559 : vector<16x16xf32>
    %cst_143 = arith.constant dense<0.000000e+00> : vector<16xf32>
    %561 = vector.multi_reduction <add>, %560, %cst_143 [1] : vector<16x16xf32> to vector<16xf32>
    %562 = vector.shape_cast %561 : vector<16xf32> to vector<16x1xf32>
    %563 = tpu.reciprocal %562 {approx = true} : vector<16x1xf32> -> vector<16x1xf32>
    %564 = vector.broadcast %563 : vector<16x1xf32> to vector<16x16xf32>
    %565 = arith.mulf %560, %564 : vector<16x16xf32>
    %cst_144 = arith.constant dense<0.000000e+00> : vector<16x16xf32>
    %566 = tpu.matmul %565, %554, %cst_144 {dimension_numbers = #tpu.dot_dimension_numbers<[1], [0], [0], [1], [0, 0, 1, 1], [], []>} : vector<16x16xf32>, vector<16x16xf32>, vector<16x16xf32> -> vector<16x16xf32>
    %567 = vector.extract_strided_slice %455 {offsets = [0, 224], sizes = [16, 16], strides = [1, 1]} : vector<16x256xf32> to vector<16x16xf32>
    %568 = vector.extract_strided_slice %458 {offsets = [0, 224], sizes = [16, 16], strides = [1, 1]} : vector<16x256xf32> to vector<16x16xf32>
    %569 = vector.extract_strided_slice %461 {offsets = [0, 224], sizes = [16, 16], strides = [1, 1]} : vector<16x256xf32> to vector<16x16xf32>
    %cst_145 = arith.constant dense<0.000000e+00> : vector<16x16xf32>
    %570 = tpu.matmul %567, %568, %cst_145 {dimension_numbers = #tpu.dot_dimension_numbers<[1], [1], [0], [0], [0, 0, 1, 0], [], []>} : vector<16x16xf32>, vector<16x16xf32>, vector<16x16xf32> -> vector<16x16xf32>
    %cst_146 = arith.constant dense<0xFF800000> : vector<16xf32>
    %571 = vector.multi_reduction <maximumf>, %570, %cst_146 [1] : vector<16x16xf32> to vector<16xf32>
    %572 = vector.shape_cast %571 : vector<16xf32> to vector<16x1xf32>
    %573 = vector.broadcast %572 : vector<16x1xf32> to vector<16x16xf32>
    %574 = arith.subf %570, %573 : vector<16x16xf32>
    %575 = math.exp %574 : vector<16x16xf32>
    %cst_147 = arith.constant dense<0.000000e+00> : vector<16xf32>
    %576 = vector.multi_reduction <add>, %575, %cst_147 [1] : vector<16x16xf32> to vector<16xf32>
    %577 = vector.shape_cast %576 : vector<16xf32> to vector<16x1xf32>
    %578 = tpu.reciprocal %577 {approx = true} : vector<16x1xf32> -> vector<16x1xf32>
    %579 = vector.broadcast %578 : vector<16x1xf32> to vector<16x16xf32>
    %580 = arith.mulf %575, %579 : vector<16x16xf32>
    %cst_148 = arith.constant dense<0.000000e+00> : vector<16x16xf32>
    %581 = tpu.matmul %580, %569, %cst_148 {dimension_numbers = #tpu.dot_dimension_numbers<[1], [0], [0], [1], [0, 0, 1, 1], [], []>} : vector<16x16xf32>, vector<16x16xf32>, vector<16x16xf32> -> vector<16x16xf32>
    %582 = tpu.concatenate %476, %491, %506, %521, %536, %551, %566, %581 in 1 : vector<16x16xf32>, vector<16x16xf32>, vector<16x16xf32>, vector<16x16xf32>, vector<16x16xf32>, vector<16x16xf32>, vector<16x16xf32>, vector<16x16xf32> -> vector<16x128xf32>
    %c0_149 = arith.constant 0 : index
    %c0_150 = arith.constant 0 : index
    %c0_151 = arith.constant 0 : index
    %583 = vector.load %arg4[%c0_149, %c0_150, %c0_151] : memref<1x16x128xf32, #tpu.memory_space<vmem>>, vector<1x16x128xf32>
    %584 = vector.shape_cast %583 : vector<1x16x128xf32> to vector<16x128xf32>
    %585 = vector.shape_cast %582 : vector<16x128xf32> to vector<1x16x128xf32>
    tpu.vector_store %arg4[%c0_149, %c0_150, %c0_151], %585 {strides = array<i32>} : memref<1x16x128xf32, #tpu.memory_space<vmem>>, vector<1x16x128xf32>,
    return
  }
  func.func @transform_0(%arg0: i32) -> i32 {
    %c0_i32 = arith.constant 0 : i32
    %c0_i32_0 = arith.constant 0 : i32
    return %c0_i32 : i32
  }
  func.func @transform_1(%arg0: i32) -> i32 {
    %c0_i32 = arith.constant 0 : i32
    %c0_i32_0 = arith.constant 0 : i32
    return %c0_i32 : i32
  }
  func.func @transform_2(%arg0: i32) -> (i32, i32, i32, i32) {
    %c0_i32 = arith.constant 0 : i32
    %c0_i32_0 = arith.constant 0 : i32
    %c0_i32_1 = arith.constant 0 : i32
    %c0_i32_2 = arith.constant 0 : i32
    return %arg0, %c0_i32, %c0_i32_0, %c0_i32_1 : i32, i32, i32, i32
  }
  func.func @transform_3(%arg0: i32) -> (i32, i32, i32) {
    %c0_i32 = arith.constant 0 : i32
    %c0_i32_0 = arith.constant 0 : i32
    %c0_i32_1 = arith.constant 0 : i32
    return %arg0, %c0_i32, %c0_i32_0 : i32, i32, i32
  }
}

</mosaic_0001>

<llo_original>
// kernel: tpu_custom_call.1
$region0: #{tpu_custom_call.1}
  #allocation0 [shape = 'u32[]', space=smem, size = 0x4, offset = 0x4, fixed_abs, tag = 'smem constant byte address 0x4 - core index']
  #allocation1 [shape = 'u32[144,128]{1,0:T(1,128)}', space=vmem, size = 0x12000, scoped, tag = 'internal scratch']
  #allocation2 [shape = 'f32[3,3,18,256]{3,2,1,0:T(8,128)}', space=vmem, size = 0x36000, scoped, tag = 'scratch operand']
  %s0 = inlined_call_operand.hbm [shape: f32[81], index: 0, kind: input, shape index: {}]
  %s1 = inlined_call_operand.vmem [shape: f32[3], index: 1, kind: input, shape index: {}]
  %s2 = inlined_call_operand.hbm [shape: f32[16,3,16,16], index: 2, kind: input, shape index: {}]
  %s3 = inlined_call_operand.hbm [shape: f32[2,16,128], index: 3, kind: output, shape index: {}]
  %s4 = sld [smem:[#allocation0]]
  $region57: #{tpu_custom_call.1} parent=0
    _
  %s6 = ssub.s32 1, %s4
  %s7 = scalar_select 0, %s6, %s4
  $region1: #{tpu_custom_call.1} parent=0
    #allocation3 [shape = 'u8[512]{0}', space=smem, size = 0x200, scoped, tag = 'input window, operand 0, single buffered']
    #allocation4 [shape = 's32[2]{0}', space=sflag, size = 0x8, scoped, tag = 'scoped memory for tpu_custom_call.1']
    #allocation5 [shape = 's32[2]{0}', space=sflag, size = 0x8, scoped, tag = 'scoped memory for tpu_custom_call.1']
    #allocation6 [shape = 's32[2]{0}', space=sflag, size = 0x8, scoped, tag = 'scoped memory for tpu_custom_call.1']
    #allocation7 [shape = 's32[2]{0}', space=sflag, size = 0x8, scoped, tag = 'scoped memory for tpu_custom_call.1']
    #allocation8 [shape = 'u8[512]{0}', space=smem, size = 0x200, scoped, tag = 'input window, operand 1, single buffered']
    #allocation9 [shape = 'u8[393216]{0}', space=vmem, size = 0x60000, scoped, tag = 'input window, operand 2']
    #allocation10 [shape = 'u8[16384]{0}', space=vmem, size = 0x4000, scoped, tag = 'output window, operand 0']
    %8 = vsyncpa [#allocation6], 0
    %9 = vsyncpa [#allocation7], 0
    %10 = vsyncpa [#allocation4], 0
    %s11 = scalar_lea.sflag [#allocation4], 1
    %12 = vsyncpa %s11, 0
    %13 = vsyncpa [#allocation5], 0
    %s14 = scalar_lea.sflag [#allocation5], 1
    %15 = vsyncpa %s14, 0
    loop: start=0, step=1, limit=4
    $region2: #{tpu_custom_call.1} parent=1 // loop_pre_header
      _
    $region3: #{tpu_custom_call.1} parent=1 // loop_header
      %s17 = sphi 0, %s21
      %p18 = scmp.ge.s32.totalorder %s17, 4
      %s25 = sphi 0, %s25
      %s27 = sphi 0, %s25
      %s28 = sphi 0, %s27
      %s42 = sphi 0, %s28
      %s46 = sphi 0, %s46
      %s48 = sphi 0, %s46
      %s49 = sphi 0, %s48
      %s63 = sphi 0, %s49
      %s69 = sphi 0, %s71
      %s72 = sphi 0, %s69
      %s73 = sphi 0, %s72
      %s89 = sphi 0, %s73
      %s95 = sphi 0, %s97
      %s98 = sphi 0, %s95
      %s99 = sphi 0, %s98
      %s115 = sphi 0, %s99
    $region4: #{tpu_custom_call.1} parent=1 // loop_header_branch
      %20 = sbr.rel (%p18) target = $region8
    $region5: #{tpu_custom_call.1} parent=1 // loop_body
      %s22 = ssub.s32 %s17, 1
      %s23 = ssub.s32 %s17, 2
      %s24 = sadd.s32 %s17, 1
      %s26 = sadd.s32 %s25, 1
      %p29 = scmp.eq.s32.totalorder %s17, 1
      %p30 = scmp.ne.s32.totalorder %s25, %s27
      %p31 = scmp.eq.s32.totalorder %s17, 0
      %p32 = por %p30, %p31
      %p33 = scmp.ne.s32.totalorder %s25, %s27
      %p34 = scmp.eq.s32.totalorder %s22, 1
      %p35 = por %p33, %p34
      %p36 = scmp.ne.s32.totalorder %s27, %s28
      %p37 = scmp.eq.s32.totalorder %s22, 0
      %p38 = por %p36, %p37
      %p39 = scmp.ne.s32.totalorder %s27, %s28
      %p40 = scmp.eq.s32.totalorder %s23, 1
      %p41 = por %p39, %p40
      %p43 = scmp.ne.s32.totalorder %s28, %s42
      %p44 = scmp.eq.s32.totalorder %s23, 0
      %p45 = por %p43, %p44
      %s47 = sadd.s32 %s46, 1
      %p50 = scmp.eq.s32.totalorder %s17, 1
      %p51 = scmp.ne.s32.totalorder %s46, %s48
      %p52 = scmp.eq.s32.totalorder %s17, 0
      %p53 = por %p51, %p52
      %p54 = scmp.ne.s32.totalorder %s46, %s48
      %p55 = scmp.eq.s32.totalorder %s22, 1
      %p56 = por %p54, %p55
      %p57 = scmp.ne.s32.totalorder %s48, %s49
      %p58 = scmp.eq.s32.totalorder %s22, 0
      %p59 = por %p57, %p58
      %p60 = scmp.ne.s32.totalorder %s48, %s49
      %p61 = scmp.eq.s32.totalorder %s23, 1
      %p62 = por %p60, %p61
      %p64 = scmp.ne.s32.totalorder %s49, %s63
      %p65 = scmp.eq.s32.totalorder %s23, 0
      %p66 = por %p64, %p65
      %s67 = ssub.s32 %s17, %s24
      %p68 = scmp.eq.s32.totalorder %s67, 0
      %s70 = sadd.s32 %s69, 1
      %s71 = scalar_select %p68, %s69, %s70
      %p74 = pneg %p68
      %p75 = scmp.eq.s32.totalorder %s17, 1
      %p76 = por %p74, %p75
      %p77 = scmp.ne.s32.totalorder %s69, %s72
      %p78 = scmp.eq.s32.totalorder %s17, 0
      %p79 = por %p77, %p78
      %p80 = scmp.ne.s32.totalorder %s69, %s72
      %p81 = scmp.eq.s32.totalorder %s22, 1
      %p82 = por %p80, %p81
      %p83 = scmp.ne.s32.totalorder %s72, %s73
      %p84 = scmp.eq.s32.totalorder %s22, 0
      %p85 = por %p83, %p84
      %p86 = scmp.ne.s32.totalorder %s72, %s73
      %p87 = scmp.eq.s32.totalorder %s23, 1
      %p88 = por %p86, %p87
      %p90 = scmp.ne.s32.totalorder %s73, %s89
      %p91 = scmp.eq.s32.totalorder %s23, 0
      %p92 = por %p90, %p91
      %s93 = ssub.s32 %s17, %s24
      %p94 = scmp.eq.s32.totalorder %s93, 0
      %s96 = sadd.s32 %s95, 1
      %s97 = scalar_select %p94, %s95, %s96
      %p100 = pneg %p94
      %p101 = scmp.eq.s32.totalorder %s17, 1
      %p102 = por %p100, %p101
      %p103 = scmp.ne.s32.totalorder %s95, %s98
      %p104 = scmp.eq.s32.totalorder %s17, 0
      %p105 = por %p103, %p104
      %p106 = scmp.ne.s32.totalorder %s95, %s98
      %p107 = scmp.eq.s32.totalorder %s22, 1
      %p108 = por %p106, %p107
      %p109 = scmp.ne.s32.totalorder %s98, %s99
      %p110 = scmp.eq.s32.totalorder %s22, 0
      %p111 = por %p109, %p110
      %p112 = scmp.ne.s32.totalorder %s98, %s99
      %p113 = scmp.eq.s32.totalorder %s23, 1
      %p114 = por %p112, %p113
      %p116 = scmp.ne.s32.totalorder %s99, %s115
      %p117 = scmp.eq.s32.totalorder %s23, 0
      %p118 = por %p116, %p117
      %p119 = scmp.le.s32.totalorder 1, %s17
      %p120 = scmp.lt.s32.totalorder %s17, 3
      %p121 = pnand %p119, %p120
      %p122 = pneg %p121
      // Predicated region
      $region9: #{tpu_custom_call.1} parent=5 // pred_check
        _
      $region10: #{tpu_custom_call.1} parent=5 // pred_check_branch
        %124 = sbr.rel (%p121) target = $region12
      $region11: #{tpu_custom_call.1} parent=5 // pred_region
        %s125 = ssub.s32 %s17, 1
        // Predicated region
        $region13: #{tpu_custom_call.1} parent=11 // pred_check
          %p126 = pneg %p38
        $region14: #{tpu_custom_call.1} parent=11 // pred_check_branch
          %128 = sbr.rel (%p126) target = $region16
        $region15: #{tpu_custom_call.1} parent=11 // pred_region
          %s130 = ssub.s32 16, 16
          %131 = vsyncadd [#allocation6], %s130
          %134 = dma.hbm_to_smem %s0, 16, [#allocation3], [#allocation6]
        $region16: #{tpu_custom_call.1} parent=11 // pred_fallthru
          _
        // Predicated region
        $region17: #{tpu_custom_call.1} parent=11 // pred_check
          %p135 = pneg %p59
        $region18: #{tpu_custom_call.1} parent=11 // pred_check_branch
          %137 = sbr.rel (%p135) target = $region20
        $region19: #{tpu_custom_call.1} parent=11 // pred_region
          %s139 = ssub.s32 16, 16
          %140 = vsyncadd [#allocation7], %s139
          %s142 = sshll.u32 %s1, 4
          %s143 = int_to_ptr.vmem [resolvable:$true] %s142
          %145 = dma.vmem_to_smem %s143, 16, [#allocation8], [#allocation7]
        $region20: #{tpu_custom_call.1} parent=11 // pred_fallthru
          _
      $region12: #{tpu_custom_call.1} parent=5 // pred_fallthru
        _
      %p146 = scmp.lt.s32.totalorder %s17, 2
      // Predicated region
      $region21: #{tpu_custom_call.1} parent=5 // pred_check
        %p147 = pneg %p146
      $region22: #{tpu_custom_call.1} parent=5 // pred_check_branch
        %149 = sbr.rel (%p147) target = $region24
      $region23: #{tpu_custom_call.1} parent=5 // pred_region
        // Predicated region
        $region25: #{tpu_custom_call.1} parent=23 // pred_check
          %p150 = pneg %p79
        $region26: #{tpu_custom_call.1} parent=23 // pred_check_branch
          %152 = sbr.rel (%p150) target = $region28
        $region27: #{tpu_custom_call.1} parent=23 // pred_region
          %s153 = sand.u32 %s69, 1
          %s154 = scalar_lea.sflag [#allocation4], %s153
          %s155 = sand.u32 %s69, 1
          %s156 = smul.addr %s155, 384
          %s157 = scalar_lea.vmem [#allocation9], %s156
          %s158 = smul.u32 8, %s17
          %s160 = ssub.s32 6144, 6144
          %161 = vsyncadd %s154, %s160
          %s162 = smul.addr %s158, 6
          %s163 = smul.addr %s162, 128
          %s164 = scalar_lea.hbm %s2, %s163
          %s165 = sshll.u32 %s157, 4
          %s166 = int_to_ptr.vmem [resolvable:$true] %s165
          %171 = dma.hbm_to_vmem [thread:$0]  %s164, 6144, %s166, %s154, 128, 128, 8
        $region28: #{tpu_custom_call.1} parent=23 // pred_fallthru
          _
      $region24: #{tpu_custom_call.1} parent=5 // pred_fallthru
        _
      %p172 = scmp.le.s32.totalorder 1, %s17
      %p173 = scmp.lt.s32.totalorder %s17, 3
      %p174 = pnand %p172, %p173
      %p175 = pneg %p174
      // Predicated region
      $region29: #{tpu_custom_call.1} parent=5 // pred_check
        _
      $region30: #{tpu_custom_call.1} parent=5 // pred_check_branch
        %177 = sbr.rel (%p174) target = $region32
      $region31: #{tpu_custom_call.1} parent=5 // pred_region
        %s178 = ssub.s32 %s17, 1
        // Predicated region
        $region33: #{tpu_custom_call.1} parent=31 // pred_check
          %p179 = pneg %p38
        $region34: #{tpu_custom_call.1} parent=31 // pred_check_branch
          %181 = sbr.rel (%p179) target = $region36
        $region35: #{tpu_custom_call.1} parent=31 // pred_region
          %182 = dma.done [#allocation6], 16
        $region36: #{tpu_custom_call.1} parent=31 // pred_fallthru
          _
        // Predicated region
        $region37: #{tpu_custom_call.1} parent=31 // pred_check
          %p183 = pneg %p59
        $region38: #{tpu_custom_call.1} parent=31 // pred_check_branch
          %185 = sbr.rel (%p183) target = $region40
        $region39: #{tpu_custom_call.1} parent=31 // pred_region
          %186 = dma.done [#allocation7], 16
        $region40: #{tpu_custom_call.1} parent=31 // pred_fallthru
          _
        %s187 = sand.u32 %s72, 1
        %s188 = scalar_lea.sflag [#allocation4], %s187
        %s189 = sand.u32 %s72, 1
        %s190 = smul.addr %s189, 384
        %s191 = scalar_lea.vmem [#allocation9], %s190
        // Predicated region
        $region41: #{tpu_custom_call.1} parent=31 // pred_check
          %p192 = pneg %p85
        $region42: #{tpu_custom_call.1} parent=31 // pred_check_branch
          %194 = sbr.rel (%p192) target = $region44
        $region43: #{tpu_custom_call.1} parent=31 // pred_region
          %195 = dma.done %s188, 6144
        $region44: #{tpu_custom_call.1} parent=31 // pred_fallthru
          _
        %196 = sfence
        %p197 = pneg %p38
        %p198 = pneg %p35
        %p199 = pneg %p59
        %p200 = pneg %p56
        %s201 = sand.u32 %s72, 1
        %s202 = scalar_lea.sflag [#allocation4], %s201
        %s203 = sand.u32 %s72, 1
        %s204 = smul.addr %s203, 384
        %s205 = scalar_lea.vmem [#allocation9], %s204
        %p206 = pneg %p85
        %p207 = pneg %p82
        %p208 = pneg %p111
        %p209 = pneg %p108
        %s210 = sand.u32 %s98, 1
        %s211 = scalar_lea.sflag [#allocation5], %s210
        %s212 = sand.u32 %s98, 1
        %s213 = smul.addr %s212, 16
        %s214 = scalar_lea.vmem [#allocation10], %s213
        %s215 = smul.u32 8, %s22
        %216 = vst [vmem:[#allocation2] sm:$0xff] 0.0
        %217 = vst [vmem:[#allocation2 + $0x8] sm:$0xff] 0.0
        %218 = vst [vmem:[#allocation2 + $0x10] sm:$0xff] 0.0
        %219 = vst [vmem:[#allocation2 + $0x18] sm:$0xff] 0.0
        %220 = vst [vmem:[#allocation2 + $0x20] sm:$0x3] 0.0
        %221 = vst [vmem:[#allocation2 + $0x28] sm:$0x3] 0.0
        %222 = vst [vmem:[#allocation2 + $0x30] sm:$0xff] 0.0
        %223 = vst [vmem:[#allocation2 + $0x38] sm:$0xff] 0.0
        %224 = vst [vmem:[#allocation2 + $0x40] sm:$0xff] 0.0
        %225 = vst [vmem:[#allocation2 + $0x48] sm:$0xff] 0.0
        %226 = vst [vmem:[#allocation2 + $0x50] sm:$0x3] 0.0
        %227 = vst [vmem:[#allocation2 + $0x58] sm:$0x3] 0.0
        %228 = vst [vmem:[#allocation2 + $0x60] sm:$0xff] 0.0
        %229 = vst [vmem:[#allocation2 + $0x68] sm:$0xff] 0.0
        %230 = vst [vmem:[#allocation2 + $0x70] sm:$0xff] 0.0
        %231 = vst [vmem:[#allocation2 + $0x78] sm:$0xff] 0.0
        %232 = vst [vmem:[#allocation2 + $0x80] sm:$0x3] 0.0
        %233 = vst [vmem:[#allocation2 + $0x88] sm:$0x3] 0.0
        %v234 = vld [vmem:[%s191] sm:$0xff]
        %v235 = vld [vmem:[%s191 + $0x8] sm:$0xff]
        %v236 = vld [vmem:[%s191 + $0x10] sm:$0xff]
        %v237 = vld [vmem:[%s191 + $0x18] sm:$0xff]
        %v238 = vld [vmem:[%s191 + $0x20] sm:$0xff]
        %v239 = vld [vmem:[%s191 + $0x28] sm:$0xff]
        %vm246 = vcmask 1040384
        %v247 = vrot.slane %v234, 7
        %v248 = vrot.slane %v235, 7
        %v249 = vsel %vm246, %v247, %v248
        %v250 = vrot.slane %v236, 7
        %v251 = vrot.slane %v237, 7
        %v252 = vsel %vm246, %v250, %v251
        %v253 = vrot.slane %v238, 7
        %v254 = vrot.slane %v239, 7
        %v255 = vsel %vm246, %v253, %v254
        %256 = vrot.lane.b32.xlu0 %v247, 1
        %v257 = vpop.permute.xlu0 %256
        %258 = vrot.lane.b32.xlu0 %v249, 1
        %v259 = vpop.permute.xlu0 %258
        %260 = vrot.lane.b32.xlu0 %v248, 1
        %v261 = vpop.permute.xlu0 %260
        %262 = vrot.lane.b32.xlu0 %v250, 1
        %v263 = vpop.permute.xlu0 %262
        %264 = vrot.lane.b32.xlu0 %v252, 1
        %v265 = vpop.permute.xlu0 %264
        %266 = vrot.lane.b32.xlu0 %v251, 1
        %v267 = vpop.permute.xlu0 %266
        %268 = vrot.lane.b32.xlu0 %v253, 1
        %v269 = vpop.permute.xlu0 %268
        %270 = vrot.lane.b32.xlu0 %v255, 1
        %v271 = vpop.permute.xlu0 %270
        %272 = vrot.lane.b32.xlu0 %v254, 1
        %v273 = vpop.permute.xlu0 %272
        %vm283 = vcmask 138249
        %284 = vst.msk [vmem:[#allocation2] sm:$0xfe] %vm283, %v257
        %vm285 = vcmask 138248
        %286 = vst.msk [vmem:[#allocation2 + $0x10] sm:$0xff] %vm285, %v259
        %vm287 = vcmask 131080
        %288 = vst.msk [vmem:[#allocation2 + $0x20] sm:$0x1] %vm287, %v261
        %289 = vst.msk [vmem:[#allocation2 + $0x30] sm:$0xfe] %vm283, %v263
        %290 = vst.msk [vmem:[#allocation2 + $0x40] sm:$0xff] %vm285, %v265
        %291 = vst.msk [vmem:[#allocation2 + $0x50] sm:$0x1] %vm287, %v267
        %292 = vst.msk [vmem:[#allocation2 + $0x60] sm:$0xfe] %vm283, %v269
        %293 = vst.msk [vmem:[#allocation2 + $0x70] sm:$0xff] %vm285, %v271
        %294 = vst.msk [vmem:[#allocation2 + $0x80] sm:$0x1] %vm287, %v273
        %s295 = scalar_lea.vmem %s191, 48 [#allocation9]
        %v296 = vld [vmem:[%s295] sm:$0xff]
        %v297 = vld [vmem:[%s295 + $0x8] sm:$0xff]
        %v298 = vld [vmem:[%s295 + $0x10] sm:$0xff]
        %v299 = vld [vmem:[%s295 + $0x18] sm:$0xff]
        %v300 = vld [vmem:[%s295 + $0x20] sm:$0xff]
        %v301 = vld [vmem:[%s295 + $0x28] sm:$0xff]
        %v308 = vrot.slane %v296, 7
        %v309 = vrot.slane %v297, 7
        %v310 = vsel %vm246, %v308, %v309
        %v311 = vrot.slane %v298, 7
        %v312 = vrot.slane %v299, 7
        %v313 = vsel %vm246, %v311, %v312
        %v314 = vrot.slane %v300, 7
        %v315 = vrot.slane %v301, 7
        %v316 = vsel %vm246, %v314, %v315
        %317 = vrot.lane.b32.xlu0 %v308, 33
        %v318 = vpop.permute.xlu0 %317
        %319 = vrot.lane.b32.xlu0 %v310, 33
        %v320 = vpop.permute.xlu0 %319
        %321 = vrot.lane.b32.xlu0 %v309, 33
        %v322 = vpop.permute.xlu0 %321
        %323 = vrot.lane.b32.xlu0 %v311, 33
        %v324 = vpop.permute.xlu0 %323
        %325 = vrot.lane.b32.xlu0 %v313, 33
        %v326 = vpop.permute.xlu0 %325
        %327 = vrot.lane.b32.xlu0 %v312, 33
        %v328 = vpop.permute.xlu0 %327
        %329 = vrot.lane.b32.xlu0 %v314, 33
        %v330 = vpop.permute.xlu0 %329
        %331 = vrot.lane.b32.xlu0 %v316, 33
        %v332 = vpop.permute.xlu0 %331
        %333 = vrot.lane.b32.xlu0 %v315, 33
        %v334 = vpop.permute.xlu0 %333
        %vm344 = vcmask 400649
        %345 = vst.msk [vmem:[#allocation2] sm:$0xfe] %vm344, %v318
        %vm346 = vcmask 400648
        %347 = vst.msk [vmem:[#allocation2 + $0x10] sm:$0xff] %vm346, %v320
        %vm348 = vcmask 393480
        %349 = vst.msk [vmem:[#allocation2 + $0x20] sm:$0x1] %vm348, %v322
        %350 = vst.msk [vmem:[#allocation2 + $0x30] sm:$0xfe] %vm344, %v324
        %351 = vst.msk [vmem:[#allocation2 + $0x40] sm:$0xff] %vm346, %v326
        %352 = vst.msk [vmem:[#allocation2 + $0x50] sm:$0x1] %vm348, %v328
        %353 = vst.msk [vmem:[#allocation2 + $0x60] sm:$0xfe] %vm344, %v330
        %354 = vst.msk [vmem:[#allocation2 + $0x70] sm:$0xff] %vm346, %v332
        %355 = vst.msk [vmem:[#allocation2 + $0x80] sm:$0x1] %vm348, %v334
        %s356 = scalar_lea.vmem %s191, 96 [#allocation9]
        %v357 = vld [vmem:[%s356] sm:$0xff]
        %v358 = vld [vmem:[%s356 + $0x8] sm:$0xff]
        %v359 = vld [vmem:[%s356 + $0x10] sm:$0xff]
        %v360 = vld [vmem:[%s356 + $0x18] sm:$0xff]
        %v361 = vld [vmem:[%s356 + $0x20] sm:$0xff]
        %v362 = vld [vmem:[%s356 + $0x28] sm:$0xff]
        %v369 = vrot.slane %v357, 7
        %v370 = vrot.slane %v358, 7
        %v371 = vsel %vm246, %v369, %v370
        %v372 = vrot.slane %v359, 7
        %v373 = vrot.slane %v360, 7
        %v374 = vsel %vm246, %v372, %v373
        %v375 = vrot.slane %v361, 7
        %v376 = vrot.slane %v362, 7
        %v377 = vsel %vm246, %v375, %v376
        %378 = vrot.lane.b32.xlu0 %v369, 65
        %v379 = vpop.permute.xlu0 %378
        %380 = vrot.lane.b32.xlu0 %v371, 65
        %v381 = vpop.permute.xlu0 %380
        %382 = vrot.lane.b32.xlu0 %v370, 65
        %v383 = vpop.permute.xlu0 %382
        %384 = vrot.lane.b32.xlu0 %v372, 65
        %v385 = vpop.permute.xlu0 %384
        %386 = vrot.lane.b32.xlu0 %v374, 65
        %v387 = vpop.permute.xlu0 %386
        %388 = vrot.lane.b32.xlu0 %v373, 65
        %v389 = vpop.permute.xlu0 %388
        %390 = vrot.lane.b32.xlu0 %v375, 65
        %v391 = vpop.permute.xlu0 %390
        %392 = vrot.lane.b32.xlu0 %v377, 65
        %v393 = vpop.permute.xlu0 %392
        %394 = vrot.lane.b32.xlu0 %v376, 65
        %v395 = vpop.permute.xlu0 %394
        %vm405 = vcmask 663049
        %406 = vst.msk [vmem:[#allocation2] sm:$0xfe] %vm405, %v379
        %vm407 = vcmask 663048
        %408 = vst.msk [vmem:[#allocation2 + $0x10] sm:$0xff] %vm407, %v381
        %vm409 = vcmask 655880
        %410 = vst.msk [vmem:[#allocation2 + $0x20] sm:$0x1] %vm409, %v383
        %411 = vst.msk [vmem:[#allocation2 + $0x30] sm:$0xfe] %vm405, %v385
        %412 = vst.msk [vmem:[#allocation2 + $0x40] sm:$0xff] %vm407, %v387
        %413 = vst.msk [vmem:[#allocation2 + $0x50] sm:$0x1] %vm409, %v389
        %414 = vst.msk [vmem:[#allocation2 + $0x60] sm:$0xfe] %vm405, %v391
        %415 = vst.msk [vmem:[#allocation2 + $0x70] sm:$0xff] %vm407, %v393
        %416 = vst.msk [vmem:[#allocation2 + $0x80] sm:$0x1] %vm409, %v395
        %s417 = scalar_lea.vmem %s191, 144 [#allocation9]
        %v418 = vld [vmem:[%s417] sm:$0xff]
        %v419 = vld [vmem:[%s417 + $0x8] sm:$0xff]
        %v420 = vld [vmem:[%s417 + $0x10] sm:$0xff]
        %v421 = vld [vmem:[%s417 + $0x18] sm:$0xff]
        %v422 = vld [vmem:[%s417 + $0x20] sm:$0xff]
        %v423 = vld [vmem:[%s417 + $0x28] sm:$0xff]
        %v430 = vrot.slane %v418, 7
        %v431 = vrot.slane %v419, 7
        %v432 = vsel %vm246, %v430, %v431
        %v433 = vrot.slane %v420, 7
        %v434 = vrot.slane %v421, 7
        %v435 = vsel %vm246, %v433, %v434
        %v436 = vrot.slane %v422, 7
        %v437 = vrot.slane %v423, 7
        %v438 = vsel %vm246, %v436, %v437
        %439 = vrot.lane.b32.xlu0 %v430, 97
        %v440 = vpop.permute.xlu0 %439
        %441 = vrot.lane.b32.xlu0 %v432, 97
        %v442 = vpop.permute.xlu0 %441
        %443 = vrot.lane.b32.xlu0 %v431, 97
        %v444 = vpop.permute.xlu0 %443
        %445 = vrot.lane.b32.xlu0 %v433, 97
        %v446 = vpop.permute.xlu0 %445
        %447 = vrot.lane.b32.xlu0 %v435, 97
        %v448 = vpop.permute.xlu0 %447
        %449 = vrot.lane.b32.xlu0 %v434, 97
        %v450 = vpop.permute.xlu0 %449
        %451 = vrot.lane.b32.xlu0 %v436, 97
        %v452 = vpop.permute.xlu0 %451
        %453 = vrot.lane.b32.xlu0 %v438, 97
        %v454 = vpop.permute.xlu0 %453
        %455 = vrot.lane.b32.xlu0 %v437, 97
        %v456 = vpop.permute.xlu0 %455
        %vm466 = vcmask 925449
        %467 = vst.msk [vmem:[#allocation2] sm:$0xfe] %vm466, %v440
        %vm468 = vcmask 925448
        %469 = vst.msk [vmem:[#allocation2 + $0x10] sm:$0xff] %vm468, %v442
        %vm470 = vcmask 918280
        %471 = vst.msk [vmem:[#allocation2 + $0x20] sm:$0x1] %vm470, %v444
        %472 = vst.msk [vmem:[#allocation2 + $0x30] sm:$0xfe] %vm466, %v446
        %473 = vst.msk [vmem:[#allocation2 + $0x40] sm:$0xff] %vm468, %v448
        %474 = vst.msk [vmem:[#allocation2 + $0x50] sm:$0x1] %vm470, %v450
        %475 = vst.msk [vmem:[#allocation2 + $0x60] sm:$0xfe] %vm466, %v452
        %476 = vst.msk [vmem:[#allocation2 + $0x70] sm:$0xff] %vm468, %v454
        %477 = vst.msk [vmem:[#allocation2 + $0x80] sm:$0x1] %vm470, %v456
        %s478 = scalar_lea.vmem %s191, 192 [#allocation9]
        %v479 = vld [vmem:[%s478] sm:$0xff]
        %v480 = vld [vmem:[%s478 + $0x8] sm:$0xff]
        %v481 = vld [vmem:[%s478 + $0x10] sm:$0xff]
        %v482 = vld [vmem:[%s478 + $0x18] sm:$0xff]
        %v483 = vld [vmem:[%s478 + $0x20] sm:$0xff]
        %v484 = vld [vmem:[%s478 + $0x28] sm:$0xff]
        %v491 = vrot.slane %v479, 7
        %v492 = vrot.slane %v480, 7
        %v493 = vsel %vm246, %v491, %v492
        %v494 = vrot.slane %v481, 7
        %v495 = vrot.slane %v482, 7
        %v496 = vsel %vm246, %v494, %v495
        %v497 = vrot.slane %v483, 7
        %v498 = vrot.slane %v484, 7
        %v499 = vsel %vm246, %v497, %v498
        %500 = vrot.lane.b32.xlu0 %v491, 1
        %v501 = vpop.permute.xlu0 %500
        %502 = vrot.lane.b32.xlu0 %v493, 1
        %v503 = vpop.permute.xlu0 %502
        %504 = vrot.lane.b32.xlu0 %v492, 1
        %v505 = vpop.permute.xlu0 %504
        %506 = vrot.lane.b32.xlu0 %v494, 1
        %v507 = vpop.permute.xlu0 %506
        %508 = vrot.lane.b32.xlu0 %v496, 1
        %v509 = vpop.permute.xlu0 %508
        %510 = vrot.lane.b32.xlu0 %v495, 1
        %v511 = vpop.permute.xlu0 %510
        %512 = vrot.lane.b32.xlu0 %v497, 1
        %v513 = vpop.permute.xlu0 %512
        %514 = vrot.lane.b32.xlu0 %v499, 1
        %v515 = vpop.permute.xlu0 %514
        %516 = vrot.lane.b32.xlu0 %v498, 1
        %v517 = vpop.permute.xlu0 %516
        %527 = vst.msk [vmem:[#allocation2 + $0x8] sm:$0xfe] %vm283, %v501
        %528 = vst.msk [vmem:[#allocation2 + $0x18] sm:$0xff] %vm285, %v503
        %529 = vst.msk [vmem:[#allocation2 + $0x28] sm:$0x1] %vm287, %v505
        %530 = vst.msk [vmem:[#allocation2 + $0x38] sm:$0xfe] %vm283, %v507
        %531 = vst.msk [vmem:[#allocation2 + $0x48] sm:$0xff] %vm285, %v509
        %532 = vst.msk [vmem:[#allocation2 + $0x58] sm:$0x1] %vm287, %v511
        %533 = vst.msk [vmem:[#allocation2 + $0x68] sm:$0xfe] %vm283, %v513
        %534 = vst.msk [vmem:[#allocation2 + $0x78] sm:$0xff] %vm285, %v515
        %535 = vst.msk [vmem:[#allocation2 + $0x88] sm:$0x1] %vm287, %v517
        %s536 = scalar_lea.vmem %s191, 240 [#allocation9]
        %v537 = vld [vmem:[%s536] sm:$0xff]
        %v538 = vld [vmem:[%s536 + $0x8] sm:$0xff]
        %v539 = vld [vmem:[%s536 + $0x10] sm:$0xff]
        %v540 = vld [vmem:[%s536 + $0x18] sm:$0xff]
        %v541 = vld [vmem:[%s536 + $0x20] sm:$0xff]
        %v542 = vld [vmem:[%s536 + $0x28] sm:$0xff]
        %v549 = vrot.slane %v537, 7
        %v550 = vrot.slane %v538, 7
        %v551 = vsel %vm246, %v549, %v550
        %v552 = vrot.slane %v539, 7
        %v553 = vrot.slane %v540, 7
        %v554 = vsel %vm246, %v552, %v553
        %v555 = vrot.slane %v541, 7
        %v556 = vrot.slane %v542, 7
        %v557 = vsel %vm246, %v555, %v556
        %558 = vrot.lane.b32.xlu0 %v549, 33
        %v559 = vpop.permute.xlu0 %558
        %560 = vrot.lane.b32.xlu0 %v551, 33
        %v561 = vpop.permute.xlu0 %560
        %562 = vrot.lane.b32.xlu0 %v550, 33
        %v563 = vpop.permute.xlu0 %562
        %564 = vrot.lane.b32.xlu0 %v552, 33
        %v565 = vpop.permute.xlu0 %564
        %566 = vrot.lane.b32.xlu0 %v554, 33
        %v567 = vpop.permute.xlu0 %566
        %568 = vrot.lane.b32.xlu0 %v553, 33
        %v569 = vpop.permute.xlu0 %568
        %570 = vrot.lane.b32.xlu0 %v555, 33
        %v571 = vpop.permute.xlu0 %570
        %572 = vrot.lane.b32.xlu0 %v557, 33
        %v573 = vpop.permute.xlu0 %572
        %574 = vrot.lane.b32.xlu0 %v556, 33
        %v575 = vpop.permute.xlu0 %574
        %585 = vst.msk [vmem:[#allocation2 + $0x8] sm:$0xfe] %vm344, %v559
        %586 = vst.msk [vmem:[#allocation2 + $0x18] sm:$0xff] %vm346, %v561
        %587 = vst.msk [vmem:[#allocation2 + $0x28] sm:$0x1] %vm348, %v563
        %588 = vst.msk [vmem:[#allocation2 + $0x38] sm:$0xfe] %vm344, %v565
        %589 = vst.msk [vmem:[#allocation2 + $0x48] sm:$0xff] %vm346, %v567
        %590 = vst.msk [vmem:[#allocation2 + $0x58] sm:$0x1] %vm348, %v569
        %591 = vst.msk [vmem:[#allocation2 + $0x68] sm:$0xfe] %vm344, %v571
        %592 = vst.msk [vmem:[#allocation2 + $0x78] sm:$0xff] %vm346, %v573
        %593 = vst.msk [vmem:[#allocation2 + $0x88] sm:$0x1] %vm348, %v575
        %s594 = scalar_lea.vmem %s191, 288 [#allocation9]
        %v595 = vld [vmem:[%s594] sm:$0xff]
        %v596 = vld [vmem:[%s594 + $0x8] sm:$0xff]
        %v597 = vld [vmem:[%s594 + $0x10] sm:$0xff]
        %v598 = vld [vmem:[%s594 + $0x18] sm:$0xff]
        %v599 = vld [vmem:[%s594 + $0x20] sm:$0xff]
        %v600 = vld [vmem:[%s594 + $0x28] sm:$0xff]
        %v607 = vrot.slane %v595, 7
        %v608 = vrot.slane %v596, 7
        %v609 = vsel %vm246, %v607, %v608
        %v610 = vrot.slane %v597, 7
        %v611 = vrot.slane %v598, 7
        %v612 = vsel %vm246, %v610, %v611
        %v613 = vrot.slane %v599, 7
        %v614 = vrot.slane %v600, 7
        %v615 = vsel %vm246, %v613, %v614
        %616 = vrot.lane.b32.xlu0 %v607, 65
        %v617 = vpop.permute.xlu0 %616
        %618 = vrot.lane.b32.xlu0 %v609, 65
        %v619 = vpop.permute.xlu0 %618
        %620 = vrot.lane.b32.xlu0 %v608, 65
        %v621 = vpop.permute.xlu0 %620
        %622 = vrot.lane.b32.xlu0 %v610, 65
        %v623 = vpop.permute.xlu0 %622
        %624 = vrot.lane.b32.xlu0 %v612, 65
        %v625 = vpop.permute.xlu0 %624
        %626 = vrot.lane.b32.xlu0 %v611, 65
        %v627 = vpop.permute.xlu0 %626
        %628 = vrot.lane.b32.xlu0 %v613, 65
        %v629 = vpop.permute.xlu0 %628
        %630 = vrot.lane.b32.xlu0 %v615, 65
        %v631 = vpop.permute.xlu0 %630
        %632 = vrot.lane.b32.xlu0 %v614, 65
        %v633 = vpop.permute.xlu0 %632
        %643 = vst.msk [vmem:[#allocation2 + $0x8] sm:$0xfe] %vm405, %v617
        %644 = vst.msk [vmem:[#allocation2 + $0x18] sm:$0xff] %vm407, %v619
        %645 = vst.msk [vmem:[#allocation2 + $0x28] sm:$0x1] %vm409, %v621
        %646 = vst.msk [vmem:[#allocation2 + $0x38] sm:$0xfe] %vm405, %v623
        %647 = vst.msk [vmem:[#allocation2 + $0x48] sm:$0xff] %vm407, %v625
        %648 = vst.msk [vmem:[#allocation2 + $0x58] sm:$0x1] %vm409, %v627
        %649 = vst.msk [vmem:[#allocation2 + $0x68] sm:$0xfe] %vm405, %v629
        %650 = vst.msk [vmem:[#allocation2 + $0x78] sm:$0xff] %vm407, %v631
        %651 = vst.msk [vmem:[#allocation2 + $0x88] sm:$0x1] %vm409, %v633
        %s652 = scalar_lea.vmem %s191, 336 [#allocation9]
        %v653 = vld [vmem:[%s652] sm:$0xff]
        %v654 = vld [vmem:[%s652 + $0x8] sm:$0xff]
        %v655 = vld [vmem:[%s652 + $0x10] sm:$0xff]
        %v656 = vld [vmem:[%s652 + $0x18] sm:$0xff]
        %v657 = vld [vmem:[%s652 + $0x20] sm:$0xff]
        %v658 = vld [vmem:[%s652 + $0x28] sm:$0xff]
        %v665 = vrot.slane %v653, 7
        %v666 = vrot.slane %v654, 7
        %v667 = vsel %vm246, %v665, %v666
        %v668 = vrot.slane %v655, 7
        %v669 = vrot.slane %v656, 7
        %v670 = vsel %vm246, %v668, %v669
        %v671 = vrot.slane %v657, 7
        %v672 = vrot.slane %v658, 7
        %v673 = vsel %vm246, %v671, %v672
        %674 = vrot.lane.b32.xlu0 %v665, 97
        %v675 = vpop.permute.xlu0 %674
        %676 = vrot.lane.b32.xlu0 %v667, 97
        %v677 = vpop.permute.xlu0 %676
        %678 = vrot.lane.b32.xlu0 %v666, 97
        %v679 = vpop.permute.xlu0 %678
        %680 = vrot.lane.b32.xlu0 %v668, 97
        %v681 = vpop.permute.xlu0 %680
        %682 = vrot.lane.b32.xlu0 %v670, 97
        %v683 = vpop.permute.xlu0 %682
        %684 = vrot.lane.b32.xlu0 %v669, 97
        %v685 = vpop.permute.xlu0 %684
        %686 = vrot.lane.b32.xlu0 %v671, 97
        %v687 = vpop.permute.xlu0 %686
        %688 = vrot.lane.b32.xlu0 %v673, 97
        %v689 = vpop.permute.xlu0 %688
        %690 = vrot.lane.b32.xlu0 %v672, 97
        %v691 = vpop.permute.xlu0 %690
        %701 = vst.msk [vmem:[#allocation2 + $0x8] sm:$0xfe] %vm466, %v675
        %702 = vst.msk [vmem:[#allocation2 + $0x18] sm:$0xff] %vm468, %v677
        %703 = vst.msk [vmem:[#allocation2 + $0x28] sm:$0x1] %vm470, %v679
        %704 = vst.msk [vmem:[#allocation2 + $0x38] sm:$0xfe] %vm466, %v681
        %705 = vst.msk [vmem:[#allocation2 + $0x48] sm:$0xff] %vm468, %v683
        %706 = vst.msk [vmem:[#allocation2 + $0x58] sm:$0x1] %vm470, %v685
        %707 = vst.msk [vmem:[#allocation2 + $0x68] sm:$0xfe] %vm466, %v687
        %708 = vst.msk [vmem:[#allocation2 + $0x78] sm:$0xff] %vm468, %v689
        %709 = vst.msk [vmem:[#allocation2 + $0x88] sm:$0x1] %vm470, %v691
        %v710 = vld [vmem:[#allocation2] sm:$0xff]
        %v711 = vld [vmem:[#allocation2 + $0x8] sm:$0xff]
        %v712 = vld [vmem:[#allocation2 + $0x10] sm:$0xff]
        %v713 = vld [vmem:[#allocation2 + $0x18] sm:$0xff]
        %v714 = vld [vmem:[#allocation2 + $0x20] sm:$0x3]
        %v715 = vld [vmem:[#allocation2 + $0x28] sm:$0x3]
        %v716 = vld [vmem:[#allocation2 + $0x30] sm:$0xff]
        %v717 = vld [vmem:[#allocation2 + $0x38] sm:$0xff]
        %v718 = vld [vmem:[#allocation2 + $0x40] sm:$0xff]
        %v719 = vld [vmem:[#allocation2 + $0x48] sm:$0xff]
        %v720 = vld [vmem:[#allocation2 + $0x50] sm:$0x3]
        %v721 = vld [vmem:[#allocation2 + $0x58] sm:$0x3]
        %v722 = vld [vmem:[#allocation2 + $0x60] sm:$0xff]
        %v723 = vld [vmem:[#allocation2 + $0x68] sm:$0xff]
        %v724 = vld [vmem:[#allocation2 + $0x70] sm:$0xff]
        %v725 = vld [vmem:[#allocation2 + $0x78] sm:$0xff]
        %v726 = vld [vmem:[#allocation2 + $0x80] sm:$0x3]
        %v727 = vld [vmem:[#allocation2 + $0x88] sm:$0x3]
        %728 = vrot.lane.b32.xlu0 %v710, 127
        %v729 = vpop.permute.xlu0 %728
        %730 = vrot.lane.b32.xlu0 %v712, 127
        %v731 = vpop.permute.xlu0 %730
        %732 = vrot.lane.b32.xlu0 %v714, 127
        %v733 = vpop.permute.xlu0 %732
        %734 = vrot.lane.b32.xlu0 %v716, 127
        %v735 = vpop.permute.xlu0 %734
        %736 = vrot.lane.b32.xlu0 %v718, 127
        %v737 = vpop.permute.xlu0 %736
        %738 = vrot.lane.b32.xlu0 %v720, 127
        %v739 = vpop.permute.xlu0 %738
        %740 = vrot.lane.b32.xlu0 %v722, 127
        %v741 = vpop.permute.xlu0 %740
        %742 = vrot.lane.b32.xlu0 %v724, 127
        %v743 = vpop.permute.xlu0 %742
        %744 = vrot.lane.b32.xlu0 %v726, 127
        %v745 = vpop.permute.xlu0 %744
        %746 = vrot.lane.b32.xlu0 %v711, 127
        %v747 = vpop.permute.xlu0 %746
        %748 = vrot.lane.b32.xlu0 %v713, 127
        %v749 = vpop.permute.xlu0 %748
        %750 = vrot.lane.b32.xlu0 %v715, 127
        %v751 = vpop.permute.xlu0 %750
        %752 = vrot.lane.b32.xlu0 %v717, 127
        %v753 = vpop.permute.xlu0 %752
        %754 = vrot.lane.b32.xlu0 %v719, 127
        %v755 = vpop.permute.xlu0 %754
        %756 = vrot.lane.b32.xlu0 %v721, 127
        %v757 = vpop.permute.xlu0 %756
        %758 = vrot.lane.b32.xlu0 %v723, 127
        %v759 = vpop.permute.xlu0 %758
        %760 = vrot.lane.b32.xlu0 %v725, 127
        %v761 = vpop.permute.xlu0 %760
        %762 = vrot.lane.b32.xlu0 %v727, 127
        %v763 = vpop.permute.xlu0 %762
        %v764 = vlaneseq
        %v765 = vand.u32 %v764, 127
        %vm766 = vcmp.lt.s32.totalorder %v765, 127
        %v767 = vsel %vm766, %v729, %v747
        %v768 = vsel %vm766, %v731, %v749
        %v769 = vsel %vm766, %v733, %v751
        %v770 = vsel %vm766, %v735, %v753
        %v771 = vsel %vm766, %v737, %v755
        %v772 = vsel %vm766, %v739, %v757
        %v773 = vsel %vm766, %v741, %v759
        %v774 = vsel %vm766, %v743, %v761
        %v775 = vsel %vm766, %v745, %v763
        %v776 = vsel %vm766, %v747, %v729
        %v777 = vsel %vm766, %v749, %v731
        %v778 = vsel %vm766, %v751, %v733
        %v779 = vsel %vm766, %v753, %v735
        %v780 = vsel %vm766, %v755, %v737
        %v781 = vsel %vm766, %v757, %v739
        %v782 = vsel %vm766, %v759, %v741
        %v783 = vsel %vm766, %v761, %v743
        %v784 = vsel %vm766, %v763, %v745
        %s785 = scalar_lea.vmem [#allocation2], 144
        %786 = vst [vmem:[%s785] sm:$0xff] %v767
        %787 = vst [vmem:[%s785 + $0x8] sm:$0xff] %v776
        %788 = vst [vmem:[%s785 + $0x10] sm:$0xff] %v768
        %789 = vst [vmem:[%s785 + $0x18] sm:$0xff] %v777
        %790 = vst [vmem:[%s785 + $0x20] sm:$0x3] %v769
        %791 = vst [vmem:[%s785 + $0x28] sm:$0x3] %v778
        %792 = vst [vmem:[%s785 + $0x30] sm:$0xff] %v770
        %793 = vst [vmem:[%s785 + $0x38] sm:$0xff] %v779
        %794 = vst [vmem:[%s785 + $0x40] sm:$0xff] %v771
        %795 = vst [vmem:[%s785 + $0x48] sm:$0xff] %v780
        %796 = vst [vmem:[%s785 + $0x50] sm:$0x3] %v772
        %797 = vst [vmem:[%s785 + $0x58] sm:$0x3] %v781
        %798 = vst [vmem:[%s785 + $0x60] sm:$0xff] %v773
        %799 = vst [vmem:[%s785 + $0x68] sm:$0xff] %v782
        %800 = vst [vmem:[%s785 + $0x70] sm:$0xff] %v774
        %801 = vst [vmem:[%s785 + $0x78] sm:$0xff] %v783
        %802 = vst [vmem:[%s785 + $0x80] sm:$0x3] %v775
        %803 = vst [vmem:[%s785 + $0x88] sm:$0x3] %v784
        %804 = vrot.lane.b32.xlu0 %v710, 126
        %v805 = vpop.permute.xlu0 %804
        %806 = vrot.lane.b32.xlu0 %v712, 126
        %v807 = vpop.permute.xlu0 %806
        %808 = vrot.lane.b32.xlu0 %v714, 126
        %v809 = vpop.permute.xlu0 %808
        %810 = vrot.lane.b32.xlu0 %v716, 126
        %v811 = vpop.permute.xlu0 %810
        %812 = vrot.lane.b32.xlu0 %v718, 126
        %v813 = vpop.permute.xlu0 %812
        %814 = vrot.lane.b32.xlu0 %v720, 126
        %v815 = vpop.permute.xlu0 %814
        %816 = vrot.lane.b32.xlu0 %v722, 126
        %v817 = vpop.permute.xlu0 %816
        %818 = vrot.lane.b32.xlu0 %v724, 126
        %v819 = vpop.permute.xlu0 %818
        %820 = vrot.lane.b32.xlu0 %v726, 126
        %v821 = vpop.permute.xlu0 %820
        %822 = vrot.lane.b32.xlu0 %v711, 126
        %v823 = vpop.permute.xlu0 %822
        %824 = vrot.lane.b32.xlu0 %v713, 126
        %v825 = vpop.permute.xlu0 %824
        %826 = vrot.lane.b32.xlu0 %v715, 126
        %v827 = vpop.permute.xlu0 %826
        %828 = vrot.lane.b32.xlu0 %v717, 126
        %v829 = vpop.permute.xlu0 %828
        %830 = vrot.lane.b32.xlu0 %v719, 126
        %v831 = vpop.permute.xlu0 %830
        %832 = vrot.lane.b32.xlu0 %v721, 126
        %v833 = vpop.permute.xlu0 %832
        %834 = vrot.lane.b32.xlu0 %v723, 126
        %v835 = vpop.permute.xlu0 %834
        %836 = vrot.lane.b32.xlu0 %v725, 126
        %v837 = vpop.permute.xlu0 %836
        %838 = vrot.lane.b32.xlu0 %v727, 126
        %v839 = vpop.permute.xlu0 %838
        %vm840 = vcmp.lt.s32.totalorder %v765, 126
        %v841 = vsel %vm840, %v805, %v823
        %v842 = vsel %vm840, %v807, %v825
        %v843 = vsel %vm840, %v809, %v827
        %v844 = vsel %vm840, %v811, %v829
        %v845 = vsel %vm840, %v813, %v831
        %v846 = vsel %vm840, %v815, %v833
        %v847 = vsel %vm840, %v817, %v835
        %v848 = vsel %vm840, %v819, %v837
        %v849 = vsel %vm840, %v821, %v839
        %v850 = vsel %vm840, %v823, %v805
        %v851 = vsel %vm840, %v825, %v807
        %v852 = vsel %vm840, %v827, %v809
        %v853 = vsel %vm840, %v829, %v811
        %v854 = vsel %vm840, %v831, %v813
        %v855 = vsel %vm840, %v833, %v815
        %v856 = vsel %vm840, %v835, %v817
        %v857 = vsel %vm840, %v837, %v819
        %v858 = vsel %vm840, %v839, %v821
        %s859 = scalar_lea.vmem [#allocation2], 288
        %860 = vst [vmem:[%s859] sm:$0xff] %v841
        %861 = vst [vmem:[%s859 + $0x8] sm:$0xff] %v850
        %862 = vst [vmem:[%s859 + $0x10] sm:$0xff] %v842
        %863 = vst [vmem:[%s859 + $0x18] sm:$0xff] %v851
        %864 = vst [vmem:[%s859 + $0x20] sm:$0x3] %v843
        %865 = vst [vmem:[%s859 + $0x28] sm:$0x3] %v852
        %866 = vst [vmem:[%s859 + $0x30] sm:$0xff] %v844
        %867 = vst [vmem:[%s859 + $0x38] sm:$0xff] %v853
        %868 = vst [vmem:[%s859 + $0x40] sm:$0xff] %v845
        %869 = vst [vmem:[%s859 + $0x48] sm:$0xff] %v854
        %870 = vst [vmem:[%s859 + $0x50] sm:$0x3] %v846
        %871 = vst [vmem:[%s859 + $0x58] sm:$0x3] %v855
        %872 = vst [vmem:[%s859 + $0x60] sm:$0xff] %v847
        %873 = vst [vmem:[%s859 + $0x68] sm:$0xff] %v856
        %874 = vst [vmem:[%s859 + $0x70] sm:$0xff] %v848
        %875 = vst [vmem:[%s859 + $0x78] sm:$0xff] %v857
        %876 = vst [vmem:[%s859 + $0x80] sm:$0x3] %v849
        %877 = vst [vmem:[%s859 + $0x88] sm:$0x3] %v858
        %s878 = sld [smem:[#allocation3]]
        %s879 = sld [smem:[#allocation3 + $0x1]]
        %s880 = sld [smem:[#allocation3 + $0x2]]
        %s881 = sld [smem:[#allocation3 + $0x3]]
        %s882 = sld [smem:[#allocation3 + $0x4]]
        %s883 = sld [smem:[#allocation3 + $0x5]]
        %s884 = sld [smem:[#allocation3 + $0x6]]
        %s885 = sld [smem:[#allocation3 + $0x7]]
        %s886 = sld [smem:[#allocation3 + $0x8]]
        %s887 = sld [smem:[#allocation3 + $0x9]]
        %s888 = sld [smem:[#allocation3 + $0xa]]
        %s889 = sld [smem:[#allocation3 + $0xb]]
        %s890 = sld [smem:[#allocation3 + $0xc]]
        %s891 = sld [smem:[#allocation3 + $0xd]]
        %s892 = sld [smem:[#allocation3 + $0xe]]
        %s893 = sld [smem:[#allocation3 + $0xf]]
        %s894 = sld [smem:[#allocation3 + $0x10]]
        %s895 = sld [smem:[#allocation3 + $0x11]]
        %s896 = sld [smem:[#allocation3 + $0x12]]
        %s897 = sld [smem:[#allocation3 + $0x13]]
        %s898 = sld [smem:[#allocation3 + $0x14]]
        %s899 = sld [smem:[#allocation3 + $0x15]]
        %s900 = sld [smem:[#allocation3 + $0x16]]
        %s901 = sld [smem:[#allocation3 + $0x17]]
        %s902 = sld [smem:[#allocation3 + $0x18]]
        %s903 = sld [smem:[#allocation3 + $0x19]]
        %s904 = sld [smem:[#allocation3 + $0x1a]]
        %s905 = sld [smem:[#allocation3 + $0x1b]]
        %s906 = sld [smem:[#allocation3 + $0x1c]]
        %s907 = sld [smem:[#allocation3 + $0x1d]]
        %s908 = sld [smem:[#allocation3 + $0x1e]]
        %s909 = sld [smem:[#allocation3 + $0x1f]]
        %s910 = sld [smem:[#allocation3 + $0x20]]
        %s911 = sld [smem:[#allocation3 + $0x21]]
        %s912 = sld [smem:[#allocation3 + $0x22]]
        %s913 = sld [smem:[#allocation3 + $0x23]]
        %s914 = sld [smem:[#allocation3 + $0x24]]
        %s915 = sld [smem:[#allocation3 + $0x25]]
        %s916 = sld [smem:[#allocation3 + $0x26]]
        %s917 = sld [smem:[#allocation3 + $0x27]]
        %s918 = sld [smem:[#allocation3 + $0x28]]
        %s919 = sld [smem:[#allocation3 + $0x29]]
        %s920 = sld [smem:[#allocation3 + $0x2a]]
        %s921 = sld [smem:[#allocation3 + $0x2b]]
        %s922 = sld [smem:[#allocation3 + $0x2c]]
        %s923 = sld [smem:[#allocation3 + $0x2d]]
        %s924 = sld [smem:[#allocation3 + $0x2e]]
        %s925 = sld [smem:[#allocation3 + $0x2f]]
        %s926 = sld [smem:[#allocation3 + $0x30]]
        %s927 = sld [smem:[#allocation3 + $0x31]]
        %s928 = sld [smem:[#allocation3 + $0x32]]
        %s929 = sld [smem:[#allocation3 + $0x33]]
        %s930 = sld [smem:[#allocation3 + $0x34]]
        %s931 = sld [smem:[#allocation3 + $0x35]]
        %s932 = sld [smem:[#allocation3 + $0x36]]
        %s933 = sld [smem:[#allocation3 + $0x37]]
        %s934 = sld [smem:[#allocation3 + $0x38]]
        %s935 = sld [smem:[#allocation3 + $0x39]]
        %s936 = sld [smem:[#allocation3 + $0x3a]]
        %s937 = sld [smem:[#allocation3 + $0x3b]]
        %s938 = sld [smem:[#allocation3 + $0x3c]]
        %s939 = sld [smem:[#allocation3 + $0x3d]]
        %s940 = sld [smem:[#allocation3 + $0x3e]]
        %s941 = sld [smem:[#allocation3 + $0x3f]]
        %s942 = sld [smem:[#allocation3 + $0x40]]
        %s943 = sld [smem:[#allocation3 + $0x41]]
        %s944 = sld [smem:[#allocation3 + $0x42]]
        %s945 = sld [smem:[#allocation3 + $0x43]]
        %s946 = sld [smem:[#allocation3 + $0x44]]
        %s947 = sld [smem:[#allocation3 + $0x45]]
        %s948 = sld [smem:[#allocation3 + $0x46]]
        %s949 = sld [smem:[#allocation3 + $0x47]]
        %s950 = sld [smem:[#allocation3 + $0x48]]
        %s951 = sld [smem:[#allocation3 + $0x49]]
        %s952 = sld [smem:[#allocation3 + $0x4a]]
        %s953 = sld [smem:[#allocation3 + $0x4b]]
        %s954 = sld [smem:[#allocation3 + $0x4c]]
        %s955 = sld [smem:[#allocation3 + $0x4d]]
        %s956 = sld [smem:[#allocation3 + $0x4e]]
        %s957 = sld [smem:[#allocation3 + $0x4f]]
        %s958 = sld [smem:[#allocation3 + $0x50]]
        %v959 = vld [vmem:[#allocation2] sm:$0xff]
        %v960 = vld [vmem:[#allocation2 + $0x8] sm:$0xff]
        %v961 = vld [vmem:[#allocation2 + $0x10] sm:$0xff]
        %v962 = vld [vmem:[#allocation2 + $0x18] sm:$0xff]
        %v963 = vld [vmem:[#allocation2 + $0x30] sm:$0xff]
        %v964 = vld [vmem:[#allocation2 + $0x38] sm:$0xff]
        %v965 = vld [vmem:[#allocation2 + $0x40] sm:$0xff]
        %v966 = vld [vmem:[#allocation2 + $0x48] sm:$0xff]
        %v967 = vld [vmem:[#allocation2 + $0x60] sm:$0xff]
        %v968 = vld [vmem:[#allocation2 + $0x68] sm:$0xff]
        %v969 = vld [vmem:[#allocation2 + $0x70] sm:$0xff]
        %v970 = vld [vmem:[#allocation2 + $0x78] sm:$0xff]
        %v971 = vstv %s878
        %v972 = vmul.f32 %v971, %v959
        %v973 = vmul.f32 %v971, %v960
        %v974 = vmul.f32 %v971, %v961
        %v975 = vmul.f32 %v971, %v962
        %v976 = vadd.f32 %v972, 0.0
        %v977 = vadd.f32 %v973, 0.0
        %v978 = vadd.f32 %v974, 0.0
        %v979 = vadd.f32 %v975, 0.0
        %v980 = vstv %s905
        %v981 = vmul.f32 %v980, %v959
        %v982 = vmul.f32 %v980, %v960
        %v983 = vmul.f32 %v980, %v961
        %v984 = vmul.f32 %v980, %v962
        %v985 = vadd.f32 %v981, 0.0
        %v986 = vadd.f32 %v982, 0.0
        %v987 = vadd.f32 %v983, 0.0
        %v988 = vadd.f32 %v984, 0.0
        %v989 = vstv %s932
        %v990 = vmul.f32 %v989, %v959
        %v991 = vmul.f32 %v989, %v960
        %v992 = vmul.f32 %v989, %v961
        %v993 = vmul.f32 %v989, %v962
        %v994 = vadd.f32 %v990, 0.0
        %v995 = vadd.f32 %v991, 0.0
        %v996 = vadd.f32 %v992, 0.0
        %v997 = vadd.f32 %v993, 0.0
        %v998 = vstv %s887
        %v999 = vmul.f32 %v998, %v963
        %v1000 = vmul.f32 %v998, %v964
        %v1001 = vmul.f32 %v998, %v965
        %v1002 = vmul.f32 %v998, %v966
        %v1003 = vadd.f32 %v976, %v999
        %v1004 = vadd.f32 %v977, %v1000
        %v1005 = vadd.f32 %v978, %v1001
        %v1006 = vadd.f32 %v979, %v1002
        %v1007 = vstv %s914
        %v1008 = vmul.f32 %v1007, %v963
        %v1009 = vmul.f32 %v1007, %v964
        %v1010 = vmul.f32 %v1007, %v965
        %v1011 = vmul.f32 %v1007, %v966
        %v1012 = vadd.f32 %v985, %v1008
        %v1013 = vadd.f32 %v986, %v1009
        %v1014 = vadd.f32 %v987, %v1010
        %v1015 = vadd.f32 %v988, %v1011
        %v1016 = vstv %s941
        %v1017 = vmul.f32 %v1016, %v963
        %v1018 = vmul.f32 %v1016, %v964
        %v1019 = vmul.f32 %v1016, %v965
        %v1020 = vmul.f32 %v1016, %v966
        %v1021 = vadd.f32 %v994, %v1017
        %v1022 = vadd.f32 %v995, %v1018
        %v1023 = vadd.f32 %v996, %v1019
        %v1024 = vadd.f32 %v997, %v1020
        %v1025 = vstv %s896
        %v1026 = vmul.f32 %v1025, %v967
        %v1027 = vmul.f32 %v1025, %v968
        %v1028 = vmul.f32 %v1025, %v969
        %v1029 = vmul.f32 %v1025, %v970
        %v1030 = vadd.f32 %v1003, %v1026
        %v1031 = vadd.f32 %v1004, %v1027
        %v1032 = vadd.f32 %v1005, %v1028
        %v1033 = vadd.f32 %v1006, %v1029
        %v1034 = vstv %s923
        %v1035 = vmul.f32 %v1034, %v967
        %v1036 = vmul.f32 %v1034, %v968
        %v1037 = vmul.f32 %v1034, %v969
        %v1038 = vmul.f32 %v1034, %v970
        %v1039 = vadd.f32 %v1012, %v1035
        %v1040 = vadd.f32 %v1013, %v1036
        %v1041 = vadd.f32 %v1014, %v1037
        %v1042 = vadd.f32 %v1015, %v1038
        %v1043 = vstv %s950
        %v1044 = vmul.f32 %v1043, %v967
        %v1045 = vmul.f32 %v1043, %v968
        %v1046 = vmul.f32 %v1043, %v969
        %v1047 = vmul.f32 %v1043, %v970
        %v1048 = vadd.f32 %v1021, %v1044
        %v1049 = vadd.f32 %v1022, %v1045
        %v1050 = vadd.f32 %v1023, %v1046
        %v1051 = vadd.f32 %v1024, %v1047
        %v1052 = vld [vmem:[%s785] sm:$0xff]
        %v1053 = vld [vmem:[%s785 + $0x8] sm:$0xff]
        %v1054 = vld [vmem:[%s785 + $0x10] sm:$0xff]
        %v1055 = vld [vmem:[%s785 + $0x18] sm:$0xff]
        %v1056 = vld [vmem:[%s785 + $0x30] sm:$0xff]
        %v1057 = vld [vmem:[%s785 + $0x38] sm:$0xff]
        %v1058 = vld [vmem:[%s785 + $0x40] sm:$0xff]
        %v1059 = vld [vmem:[%s785 + $0x48] sm:$0xff]
        %v1060 = vld [vmem:[%s785 + $0x60] sm:$0xff]
        %v1061 = vld [vmem:[%s785 + $0x68] sm:$0xff]
        %v1062 = vld [vmem:[%s785 + $0x70] sm:$0xff]
        %v1063 = vld [vmem:[%s785 + $0x78] sm:$0xff]
        %v1064 = vstv %s879
        %v1065 = vmul.f32 %v1064, %v1052
        %v1066 = vmul.f32 %v1064, %v1053
        %v1067 = vmul.f32 %v1064, %v1054
        %v1068 = vmul.f32 %v1064, %v1055
        %v1069 = vadd.f32 %v1030, %v1065
        %v1070 = vadd.f32 %v1031, %v1066
        %v1071 = vadd.f32 %v1032, %v1067
        %v1072 = vadd.f32 %v1033, %v1068
        %v1073 = vstv %s906
        %v1074 = vmul.f32 %v1073, %v1052
        %v1075 = vmul.f32 %v1073, %v1053
        %v1076 = vmul.f32 %v1073, %v1054
        %v1077 = vmul.f32 %v1073, %v1055
        %v1078 = vadd.f32 %v1039, %v1074
        %v1079 = vadd.f32 %v1040, %v1075
        %v1080 = vadd.f32 %v1041, %v1076
        %v1081 = vadd.f32 %v1042, %v1077
        %v1082 = vstv %s933
        %v1083 = vmul.f32 %v1082, %v1052
        %v1084 = vmul.f32 %v1082, %v1053
        %v1085 = vmul.f32 %v1082, %v1054
        %v1086 = vmul.f32 %v1082, %v1055
        %v1087 = vadd.f32 %v1048, %v1083
        %v1088 = vadd.f32 %v1049, %v1084
        %v1089 = vadd.f32 %v1050, %v1085
        %v1090 = vadd.f32 %v1051, %v1086
        %v1091 = vstv %s888
        %v1092 = vmul.f32 %v1091, %v1056
        %v1093 = vmul.f32 %v1091, %v1057
        %v1094 = vmul.f32 %v1091, %v1058
        %v1095 = vmul.f32 %v1091, %v1059
        %v1096 = vadd.f32 %v1069, %v1092
        %v1097 = vadd.f32 %v1070, %v1093
        %v1098 = vadd.f32 %v1071, %v1094
        %v1099 = vadd.f32 %v1072, %v1095
        %v1100 = vstv %s915
        %v1101 = vmul.f32 %v1100, %v1056
        %v1102 = vmul.f32 %v1100, %v1057
        %v1103 = vmul.f32 %v1100, %v1058
        %v1104 = vmul.f32 %v1100, %v1059
        %v1105 = vadd.f32 %v1078, %v1101
        %v1106 = vadd.f32 %v1079, %v1102
        %v1107 = vadd.f32 %v1080, %v1103
        %v1108 = vadd.f32 %v1081, %v1104
        %v1109 = vstv %s942
        %v1110 = vmul.f32 %v1109, %v1056
        %v1111 = vmul.f32 %v1109, %v1057
        %v1112 = vmul.f32 %v1109, %v1058
        %v1113 = vmul.f32 %v1109, %v1059
        %v1114 = vadd.f32 %v1087, %v1110
        %v1115 = vadd.f32 %v1088, %v1111
        %v1116 = vadd.f32 %v1089, %v1112
        %v1117 = vadd.f32 %v1090, %v1113
        %v1118 = vstv %s897
        %v1119 = vmul.f32 %v1118, %v1060
        %v1120 = vmul.f32 %v1118, %v1061
        %v1121 = vmul.f32 %v1118, %v1062
        %v1122 = vmul.f32 %v1118, %v1063
        %v1123 = vadd.f32 %v1096, %v1119
        %v1124 = vadd.f32 %v1097, %v1120
        %v1125 = vadd.f32 %v1098, %v1121
        %v1126 = vadd.f32 %v1099, %v1122
        %v1127 = vstv %s924
        %v1128 = vmul.f32 %v1127, %v1060
        %v1129 = vmul.f32 %v1127, %v1061
        %v1130 = vmul.f32 %v1127, %v1062
        %v1131 = vmul.f32 %v1127, %v1063
        %v1132 = vadd.f32 %v1105, %v1128
        %v1133 = vadd.f32 %v1106, %v1129
        %v1134 = vadd.f32 %v1107, %v1130
        %v1135 = vadd.f32 %v1108, %v1131
        %v1136 = vstv %s951
        %v1137 = vmul.f32 %v1136, %v1060
        %v1138 = vmul.f32 %v1136, %v1061
        %v1139 = vmul.f32 %v1136, %v1062
        %v1140 = vmul.f32 %v1136, %v1063
        %v1141 = vadd.f32 %v1114, %v1137
        %v1142 = vadd.f32 %v1115, %v1138
        %v1143 = vadd.f32 %v1116, %v1139
        %v1144 = vadd.f32 %v1117, %v1140
        %v1145 = vld [vmem:[%s859] sm:$0xff]
        %v1146 = vld [vmem:[%s859 + $0x8] sm:$0xff]
        %v1147 = vld [vmem:[%s859 + $0x10] sm:$0xff]
        %v1148 = vld [vmem:[%s859 + $0x18] sm:$0xff]
        %v1149 = vld [vmem:[%s859 + $0x30] sm:$0xff]
        %v1150 = vld [vmem:[%s859 + $0x38] sm:$0xff]
        %v1151 = vld [vmem:[%s859 + $0x40] sm:$0xff]
        %v1152 = vld [vmem:[%s859 + $0x48] sm:$0xff]
        %v1153 = vld [vmem:[%s859 + $0x60] sm:$0xff]
        %v1154 = vld [vmem:[%s859 + $0x68] sm:$0xff]
        %v1155 = vld [vmem:[%s859 + $0x70] sm:$0xff]
        %v1156 = vld [vmem:[%s859 + $0x78] sm:$0xff]
        %v1157 = vstv %s880
        %v1158 = vmul.f32 %v1157, %v1145
        %v1159 = vmul.f32 %v1157, %v1146
        %v1160 = vmul.f32 %v1157, %v1147
        %v1161 = vmul.f32 %v1157, %v1148
        %v1162 = vadd.f32 %v1123, %v1158
        %v1163 = vadd.f32 %v1124, %v1159
        %v1164 = vadd.f32 %v1125, %v1160
        %v1165 = vadd.f32 %v1126, %v1161
        %v1166 = vstv %s907
        %v1167 = vmul.f32 %v1166, %v1145
        %v1168 = vmul.f32 %v1166, %v1146
        %v1169 = vmul.f32 %v1166, %v1147
        %v1170 = vmul.f32 %v1166, %v1148
        %v1171 = vadd.f32 %v1132, %v1167
        %v1172 = vadd.f32 %v1133, %v1168
        %v1173 = vadd.f32 %v1134, %v1169
        %v1174 = vadd.f32 %v1135, %v1170
        %v1175 = vstv %s934
        %v1176 = vmul.f32 %v1175, %v1145
        %v1177 = vmul.f32 %v1175, %v1146
        %v1178 = vmul.f32 %v1175, %v1147
        %v1179 = vmul.f32 %v1175, %v1148
        %v1180 = vadd.f32 %v1141, %v1176
        %v1181 = vadd.f32 %v1142, %v1177
        %v1182 = vadd.f32 %v1143, %v1178
        %v1183 = vadd.f32 %v1144, %v1179
        %v1184 = vstv %s889
        %v1185 = vmul.f32 %v1184, %v1149
        %v1186 = vmul.f32 %v1184, %v1150
        %v1187 = vmul.f32 %v1184, %v1151
        %v1188 = vmul.f32 %v1184, %v1152
        %v1189 = vadd.f32 %v1162, %v1185
        %v1190 = vadd.f32 %v1163, %v1186
        %v1191 = vadd.f32 %v1164, %v1187
        %v1192 = vadd.f32 %v1165, %v1188
        %v1193 = vstv %s916
        %v1194 = vmul.f32 %v1193, %v1149
        %v1195 = vmul.f32 %v1193, %v1150
        %v1196 = vmul.f32 %v1193, %v1151
        %v1197 = vmul.f32 %v1193, %v1152
        %v1198 = vadd.f32 %v1171, %v1194
        %v1199 = vadd.f32 %v1172, %v1195
        %v1200 = vadd.f32 %v1173, %v1196
        %v1201 = vadd.f32 %v1174, %v1197
        %v1202 = vstv %s943
        %v1203 = vmul.f32 %v1202, %v1149
        %v1204 = vmul.f32 %v1202, %v1150
        %v1205 = vmul.f32 %v1202, %v1151
        %v1206 = vmul.f32 %v1202, %v1152
        %v1207 = vadd.f32 %v1180, %v1203
        %v1208 = vadd.f32 %v1181, %v1204
        %v1209 = vadd.f32 %v1182, %v1205
        %v1210 = vadd.f32 %v1183, %v1206
        %v1211 = vstv %s898
        %v1212 = vmul.f32 %v1211, %v1153
        %v1213 = vmul.f32 %v1211, %v1154
        %v1214 = vmul.f32 %v1211, %v1155
        %v1215 = vmul.f32 %v1211, %v1156
        %v1216 = vadd.f32 %v1189, %v1212
        %v1217 = vadd.f32 %v1190, %v1213
        %v1218 = vadd.f32 %v1191, %v1214
        %v1219 = vadd.f32 %v1192, %v1215
        %v1220 = vstv %s925
        %v1221 = vmul.f32 %v1220, %v1153
        %v1222 = vmul.f32 %v1220, %v1154
        %v1223 = vmul.f32 %v1220, %v1155
        %v1224 = vmul.f32 %v1220, %v1156
        %v1225 = vadd.f32 %v1198, %v1221
        %v1226 = vadd.f32 %v1199, %v1222
        %v1227 = vadd.f32 %v1200, %v1223
        %v1228 = vadd.f32 %v1201, %v1224
        %v1229 = vstv %s952
        %v1230 = vmul.f32 %v1229, %v1153
        %v1231 = vmul.f32 %v1229, %v1154
        %v1232 = vmul.f32 %v1229, %v1155
        %v1233 = vmul.f32 %v1229, %v1156
        %v1234 = vadd.f32 %v1207, %v1230
        %v1235 = vadd.f32 %v1208, %v1231
        %v1236 = vadd.f32 %v1209, %v1232
        %v1237 = vadd.f32 %v1210, %v1233
        %v1238 = vld [vmem:[#allocation2] sm:$0xfe]
        %v1239 = vld [vmem:[#allocation2 + $0x8] sm:$0xfe]
        %v1240 = vld [vmem:[#allocation2 + $0x20] sm:$0x1]
        %v1241 = vld [vmem:[#allocation2 + $0x28] sm:$0x1]
        %v1242 = vld [vmem:[#allocation2 + $0x30] sm:$0xfe]
        %v1243 = vld [vmem:[#allocation2 + $0x38] sm:$0xfe]
        %v1244 = vld [vmem:[#allocation2 + $0x50] sm:$0x1]
        %v1245 = vld [vmem:[#allocation2 + $0x58] sm:$0x1]
        %v1246 = vld [vmem:[#allocation2 + $0x60] sm:$0xfe]
        %v1247 = vld [vmem:[#allocation2 + $0x68] sm:$0xfe]
        %v1248 = vld [vmem:[#allocation2 + $0x80] sm:$0x1]
        %v1249 = vld [vmem:[#allocation2 + $0x88] sm:$0x1]
        %v1250 = vstv %s881
        %v1251 = vmul.f32 %v1250, %v1238
        %v1252 = vmul.f32 %v1250, %v1239
        %v1253 = vmul.f32 %v1250, %v961
        %v1254 = vmul.f32 %v1250, %v962
        %v1255 = vmul.f32 %v1250, %v1240
        %v1256 = vmul.f32 %v1250, %v1241
        %vm1263 = vcmask 1046528
        %v1264 = vrot.slane %v1251, 1
        %v1265 = vrot.slane %v1253, 1
        %v1266 = vsel %vm1263, %v1264, %v1265
        %v1267 = vrot.slane %v1252, 1
        %v1268 = vrot.slane %v1254, 1
        %v1269 = vsel %vm1263, %v1267, %v1268
        %v1270 = vrot.slane %v1255, 1
        %v1271 = vsel %vm1263, %v1265, %v1270
        %v1272 = vrot.slane %v1256, 1
        %v1273 = vsel %vm1263, %v1268, %v1272
        %v1278 = vadd.f32 %v1216, %v1266
        %v1279 = vadd.f32 %v1217, %v1269
        %v1280 = vadd.f32 %v1218, %v1271
        %v1281 = vadd.f32 %v1219, %v1273
        %v1282 = vstv %s908
        %v1283 = vmul.f32 %v1282, %v1238
        %v1284 = vmul.f32 %v1282, %v1239
        %v1285 = vmul.f32 %v1282, %v961
        %v1286 = vmul.f32 %v1282, %v962
        %v1287 = vmul.f32 %v1282, %v1240
        %v1288 = vmul.f32 %v1282, %v1241
        %v1295 = vrot.slane %v1283, 1
        %v1296 = vrot.slane %v1285, 1
        %v1297 = vsel %vm1263, %v1295, %v1296
        %v1298 = vrot.slane %v1284, 1
        %v1299 = vrot.slane %v1286, 1
        %v1300 = vsel %vm1263, %v1298, %v1299
        %v1301 = vrot.slane %v1287, 1
        %v1302 = vsel %vm1263, %v1296, %v1301
        %v1303 = vrot.slane %v1288, 1
        %v1304 = vsel %vm1263, %v1299, %v1303
        %v1309 = vadd.f32 %v1225, %v1297
        %v1310 = vadd.f32 %v1226, %v1300
        %v1311 = vadd.f32 %v1227, %v1302
        %v1312 = vadd.f32 %v1228, %v1304
        %v1313 = vstv %s935
        %v1314 = vmul.f32 %v1313, %v1238
        %v1315 = vmul.f32 %v1313, %v1239
        %v1316 = vmul.f32 %v1313, %v961
        %v1317 = vmul.f32 %v1313, %v962
        %v1318 = vmul.f32 %v1313, %v1240
        %v1319 = vmul.f32 %v1313, %v1241
        %v1326 = vrot.slane %v1314, 1
        %v1327 = vrot.slane %v1316, 1
        %v1328 = vsel %vm1263, %v1326, %v1327
        %v1329 = vrot.slane %v1315, 1
        %v1330 = vrot.slane %v1317, 1
        %v1331 = vsel %vm1263, %v1329, %v1330
        %v1332 = vrot.slane %v1318, 1
        %v1333 = vsel %vm1263, %v1327, %v1332
        %v1334 = vrot.slane %v1319, 1
        %v1335 = vsel %vm1263, %v1330, %v1334
        %v1340 = vadd.f32 %v1234, %v1328
        %v1341 = vadd.f32 %v1235, %v1331
        %v1342 = vadd.f32 %v1236, %v1333
        %v1343 = vadd.f32 %v1237, %v1335
        %v1344 = vstv %s890
        %v1345 = vmul.f32 %v1344, %v1242
        %v1346 = vmul.f32 %v1344, %v1243
        %v1347 = vmul.f32 %v1344, %v965
        %v1348 = vmul.f32 %v1344, %v966
        %v1349 = vmul.f32 %v1344, %v1244
        %v1350 = vmul.f32 %v1344, %v1245
        %v1357 = vrot.slane %v1345, 1
        %v1358 = vrot.slane %v1347, 1
        %v1359 = vsel %vm1263, %v1357, %v1358
        %v1360 = vrot.slane %v1346, 1
        %v1361 = vrot.slane %v1348, 1
        %v1362 = vsel %vm1263, %v1360, %v1361
        %v1363 = vrot.slane %v1349, 1
        %v1364 = vsel %vm1263, %v1358, %v1363
        %v1365 = vrot.slane %v1350, 1
        %v1366 = vsel %vm1263, %v1361, %v1365
        %v1371 = vadd.f32 %v1278, %v1359
        %v1372 = vadd.f32 %v1279, %v1362
        %v1373 = vadd.f32 %v1280, %v1364
        %v1374 = vadd.f32 %v1281, %v1366
        %v1375 = vstv %s917
        %v1376 = vmul.f32 %v1375, %v1242
        %v1377 = vmul.f32 %v1375, %v1243
        %v1378 = vmul.f32 %v1375, %v965
        %v1379 = vmul.f32 %v1375, %v966
        %v1380 = vmul.f32 %v1375, %v1244
        %v1381 = vmul.f32 %v1375, %v1245
        %v1388 = vrot.slane %v1376, 1
        %v1389 = vrot.slane %v1378, 1
        %v1390 = vsel %vm1263, %v1388, %v1389
        %v1391 = vrot.slane %v1377, 1
        %v1392 = vrot.slane %v1379, 1
        %v1393 = vsel %vm1263, %v1391, %v1392
        %v1394 = vrot.slane %v1380, 1
        %v1395 = vsel %vm1263, %v1389, %v1394
        %v1396 = vrot.slane %v1381, 1
        %v1397 = vsel %vm1263, %v1392, %v1396
        %v1402 = vadd.f32 %v1309, %v1390
        %v1403 = vadd.f32 %v1310, %v1393
        %v1404 = vadd.f32 %v1311, %v1395
        %v1405 = vadd.f32 %v1312, %v1397
        %v1406 = vstv %s944
        %v1407 = vmul.f32 %v1406, %v1242
        %v1408 = vmul.f32 %v1406, %v1243
        %v1409 = vmul.f32 %v1406, %v965
        %v1410 = vmul.f32 %v1406, %v966
        %v1411 = vmul.f32 %v1406, %v1244
        %v1412 = vmul.f32 %v1406, %v1245
        %v1419 = vrot.slane %v1407, 1
        %v1420 = vrot.slane %v1409, 1
        %v1421 = vsel %vm1263, %v1419, %v1420
        %v1422 = vrot.slane %v1408, 1
        %v1423 = vrot.slane %v1410, 1
        %v1424 = vsel %vm1263, %v1422, %v1423
        %v1425 = vrot.slane %v1411, 1
        %v1426 = vsel %vm1263, %v1420, %v1425
        %v1427 = vrot.slane %v1412, 1
        %v1428 = vsel %vm1263, %v1423, %v1427
        %v1433 = vadd.f32 %v1340, %v1421
        %v1434 = vadd.f32 %v1341, %v1424
        %v1435 = vadd.f32 %v1342, %v1426
        %v1436 = vadd.f32 %v1343, %v1428
        %v1437 = vstv %s899
        %v1438 = vmul.f32 %v1437, %v1246
        %v1439 = vmul.f32 %v1437, %v1247
        %v1440 = vmul.f32 %v1437, %v969
        %v1441 = vmul.f32 %v1437, %v970
        %v1442 = vmul.f32 %v1437, %v1248
        %v1443 = vmul.f32 %v1437, %v1249
        %v1450 = vrot.slane %v1438, 1
        %v1451 = vrot.slane %v1440, 1
        %v1452 = vsel %vm1263, %v1450, %v1451
        %v1453 = vrot.slane %v1439, 1
        %v1454 = vrot.slane %v1441, 1
        %v1455 = vsel %vm1263, %v1453, %v1454
        %v1456 = vrot.slane %v1442, 1
        %v1457 = vsel %vm1263, %v1451, %v1456
        %v1458 = vrot.slane %v1443, 1
        %v1459 = vsel %vm1263, %v1454, %v1458
        %v1464 = vadd.f32 %v1371, %v1452
        %v1465 = vadd.f32 %v1372, %v1455
        %v1466 = vadd.f32 %v1373, %v1457
        %v1467 = vadd.f32 %v1374, %v1459
        %v1468 = vstv %s926
        %v1469 = vmul.f32 %v1468, %v1246
        %v1470 = vmul.f32 %v1468, %v1247
        %v1471 = vmul.f32 %v1468, %v969
        %v1472 = vmul.f32 %v1468, %v970
        %v1473 = vmul.f32 %v1468, %v1248
        %v1474 = vmul.f32 %v1468, %v1249
        %v1481 = vrot.slane %v1469, 1
        %v1482 = vrot.slane %v1471, 1
        %v1483 = vsel %vm1263, %v1481, %v1482
        %v1484 = vrot.slane %v1470, 1
        %v1485 = vrot.slane %v1472, 1
        %v1486 = vsel %vm1263, %v1484, %v1485
        %v1487 = vrot.slane %v1473, 1
        %v1488 = vsel %vm1263, %v1482, %v1487
        %v1489 = vrot.slane %v1474, 1
        %v1490 = vsel %vm1263, %v1485, %v1489
        %v1495 = vadd.f32 %v1402, %v1483
        %v1496 = vadd.f32 %v1403, %v1486
        %v1497 = vadd.f32 %v1404, %v1488
        %v1498 = vadd.f32 %v1405, %v1490
        %v1499 = vstv %s953
        %v1500 = vmul.f32 %v1499, %v1246
        %v1501 = vmul.f32 %v1499, %v1247
        %v1502 = vmul.f32 %v1499, %v969
        %v1503 = vmul.f32 %v1499, %v970
        %v1504 = vmul.f32 %v1499, %v1248
        %v1505 = vmul.f32 %v1499, %v1249
        %v1512 = vrot.slane %v1500, 1
        %v1513 = vrot.slane %v1502, 1
        %v1514 = vsel %vm1263, %v1512, %v1513
        %v1515 = vrot.slane %v1501, 1
        %v1516 = vrot.slane %v1503, 1
        %v1517 = vsel %vm1263, %v1515, %v1516
        %v1518 = vrot.slane %v1504, 1
        %v1519 = vsel %vm1263, %v1513, %v1518
        %v1520 = vrot.slane %v1505, 1
        %v1521 = vsel %vm1263, %v1516, %v1520
        %v1526 = vadd.f32 %v1433, %v1514
        %v1527 = vadd.f32 %v1434, %v1517
        %v1528 = vadd.f32 %v1435, %v1519
        %v1529 = vadd.f32 %v1436, %v1521
        %v1530 = vld [vmem:[%s785] sm:$0xfe]
        %v1531 = vld [vmem:[%s785 + $0x8] sm:$0xfe]
        %v1532 = vld [vmem:[%s785 + $0x20] sm:$0x1]
        %v1533 = vld [vmem:[%s785 + $0x28] sm:$0x1]
        %v1534 = vld [vmem:[%s785 + $0x30] sm:$0xfe]
        %v1535 = vld [vmem:[%s785 + $0x38] sm:$0xfe]
        %v1536 = vld [vmem:[%s785 + $0x50] sm:$0x1]
        %v1537 = vld [vmem:[%s785 + $0x58] sm:$0x1]
        %v1538 = vld [vmem:[%s785 + $0x60] sm:$0xfe]
        %v1539 = vld [vmem:[%s785 + $0x68] sm:$0xfe]
        %v1540 = vld [vmem:[%s785 + $0x80] sm:$0x1]
        %v1541 = vld [vmem:[%s785 + $0x88] sm:$0x1]
        %v1542 = vstv %s882
        %v1543 = vmul.f32 %v1542, %v1530
        %v1544 = vmul.f32 %v1542, %v1531
        %v1545 = vmul.f32 %v1542, %v1054
        %v1546 = vmul.f32 %v1542, %v1055
        %v1547 = vmul.f32 %v1542, %v1532
        %v1548 = vmul.f32 %v1542, %v1533
        %v1555 = vrot.slane %v1543, 1
        %v1556 = vrot.slane %v1545, 1
        %v1557 = vsel %vm1263, %v1555, %v1556
        %v1558 = vrot.slane %v1544, 1
        %v1559 = vrot.slane %v1546, 1
        %v1560 = vsel %vm1263, %v1558, %v1559
        %v1561 = vrot.slane %v1547, 1
        %v1562 = vsel %vm1263, %v1556, %v1561
        %v1563 = vrot.slane %v1548, 1
        %v1564 = vsel %vm1263, %v1559, %v1563
        %v1569 = vadd.f32 %v1464, %v1557
        %v1570 = vadd.f32 %v1465, %v1560
        %v1571 = vadd.f32 %v1466, %v1562
        %v1572 = vadd.f32 %v1467, %v1564
        %v1573 = vstv %s909
        %v1574 = vmul.f32 %v1573, %v1530
        %v1575 = vmul.f32 %v1573, %v1531
        %v1576 = vmul.f32 %v1573, %v1054
        %v1577 = vmul.f32 %v1573, %v1055
        %v1578 = vmul.f32 %v1573, %v1532
        %v1579 = vmul.f32 %v1573, %v1533
        %v1586 = vrot.slane %v1574, 1
        %v1587 = vrot.slane %v1576, 1
        %v1588 = vsel %vm1263, %v1586, %v1587
        %v1589 = vrot.slane %v1575, 1
        %v1590 = vrot.slane %v1577, 1
        %v1591 = vsel %vm1263, %v1589, %v1590
        %v1592 = vrot.slane %v1578, 1
        %v1593 = vsel %vm1263, %v1587, %v1592
        %v1594 = vrot.slane %v1579, 1
        %v1595 = vsel %vm1263, %v1590, %v1594
        %v1600 = vadd.f32 %v1495, %v1588
        %v1601 = vadd.f32 %v1496, %v1591
        %v1602 = vadd.f32 %v1497, %v1593
        %v1603 = vadd.f32 %v1498, %v1595
        %v1604 = vstv %s936
        %v1605 = vmul.f32 %v1604, %v1530
        %v1606 = vmul.f32 %v1604, %v1531
        %v1607 = vmul.f32 %v1604, %v1054
        %v1608 = vmul.f32 %v1604, %v1055
        %v1609 = vmul.f32 %v1604, %v1532
        %v1610 = vmul.f32 %v1604, %v1533
        %v1617 = vrot.slane %v1605, 1
        %v1618 = vrot.slane %v1607, 1
        %v1619 = vsel %vm1263, %v1617, %v1618
        %v1620 = vrot.slane %v1606, 1
        %v1621 = vrot.slane %v1608, 1
        %v1622 = vsel %vm1263, %v1620, %v1621
        %v1623 = vrot.slane %v1609, 1
        %v1624 = vsel %vm1263, %v1618, %v1623
        %v1625 = vrot.slane %v1610, 1
        %v1626 = vsel %vm1263, %v1621, %v1625
        %v1631 = vadd.f32 %v1526, %v1619
        %v1632 = vadd.f32 %v1527, %v1622
        %v1633 = vadd.f32 %v1528, %v1624
        %v1634 = vadd.f32 %v1529, %v1626
        %v1635 = vstv %s891
        %v1636 = vmul.f32 %v1635, %v1534
        %v1637 = vmul.f32 %v1635, %v1535
        %v1638 = vmul.f32 %v1635, %v1058
        %v1639 = vmul.f32 %v1635, %v1059
        %v1640 = vmul.f32 %v1635, %v1536
        %v1641 = vmul.f32 %v1635, %v1537
        %v1648 = vrot.slane %v1636, 1
        %v1649 = vrot.slane %v1638, 1
        %v1650 = vsel %vm1263, %v1648, %v1649
        %v1651 = vrot.slane %v1637, 1
        %v1652 = vrot.slane %v1639, 1
        %v1653 = vsel %vm1263, %v1651, %v1652
        %v1654 = vrot.slane %v1640, 1
        %v1655 = vsel %vm1263, %v1649, %v1654
        %v1656 = vrot.slane %v1641, 1
        %v1657 = vsel %vm1263, %v1652, %v1656
        %v1662 = vadd.f32 %v1569, %v1650
        %v1663 = vadd.f32 %v1570, %v1653
        %v1664 = vadd.f32 %v1571, %v1655
        %v1665 = vadd.f32 %v1572, %v1657
        %v1666 = vstv %s918
        %v1667 = vmul.f32 %v1666, %v1534
        %v1668 = vmul.f32 %v1666, %v1535
        %v1669 = vmul.f32 %v1666, %v1058
        %v1670 = vmul.f32 %v1666, %v1059
        %v1671 = vmul.f32 %v1666, %v1536
        %v1672 = vmul.f32 %v1666, %v1537
        %v1679 = vrot.slane %v1667, 1
        %v1680 = vrot.slane %v1669, 1
        %v1681 = vsel %vm1263, %v1679, %v1680
        %v1682 = vrot.slane %v1668, 1
        %v1683 = vrot.slane %v1670, 1
        %v1684 = vsel %vm1263, %v1682, %v1683
        %v1685 = vrot.slane %v1671, 1
        %v1686 = vsel %vm1263, %v1680, %v1685
        %v1687 = vrot.slane %v1672, 1
        %v1688 = vsel %vm1263, %v1683, %v1687
        %v1693 = vadd.f32 %v1600, %v1681
        %v1694 = vadd.f32 %v1601, %v1684
        %v1695 = vadd.f32 %v1602, %v1686
        %v1696 = vadd.f32 %v1603, %v1688
        %v1697 = vstv %s945
        %v1698 = vmul.f32 %v1697, %v1534
        %v1699 = vmul.f32 %v1697, %v1535
        %v1700 = vmul.f32 %v1697, %v1058
        %v1701 = vmul.f32 %v1697, %v1059
        %v1702 = vmul.f32 %v1697, %v1536
        %v1703 = vmul.f32 %v1697, %v1537
        %v1710 = vrot.slane %v1698, 1
        %v1711 = vrot.slane %v1700, 1
        %v1712 = vsel %vm1263, %v1710, %v1711
        %v1713 = vrot.slane %v1699, 1
        %v1714 = vrot.slane %v1701, 1
        %v1715 = vsel %vm1263, %v1713, %v1714
        %v1716 = vrot.slane %v1702, 1
        %v1717 = vsel %vm1263, %v1711, %v1716
        %v1718 = vrot.slane %v1703, 1
        %v1719 = vsel %vm1263, %v1714, %v1718
        %v1724 = vadd.f32 %v1631, %v1712
        %v1725 = vadd.f32 %v1632, %v1715
        %v1726 = vadd.f32 %v1633, %v1717
        %v1727 = vadd.f32 %v1634, %v1719
        %v1728 = vstv %s900
        %v1729 = vmul.f32 %v1728, %v1538
        %v1730 = vmul.f32 %v1728, %v1539
        %v1731 = vmul.f32 %v1728, %v1062
        %v1732 = vmul.f32 %v1728, %v1063
        %v1733 = vmul.f32 %v1728, %v1540
        %v1734 = vmul.f32 %v1728, %v1541
        %v1741 = vrot.slane %v1729, 1
        %v1742 = vrot.slane %v1731, 1
        %v1743 = vsel %vm1263, %v1741, %v1742
        %v1744 = vrot.slane %v1730, 1
        %v1745 = vrot.slane %v1732, 1
        %v1746 = vsel %vm1263, %v1744, %v1745
        %v1747 = vrot.slane %v1733, 1
        %v1748 = vsel %vm1263, %v1742, %v1747
        %v1749 = vrot.slane %v1734, 1
        %v1750 = vsel %vm1263, %v1745, %v1749
        %v1755 = vadd.f32 %v1662, %v1743
        %v1756 = vadd.f32 %v1663, %v1746
        %v1757 = vadd.f32 %v1664, %v1748
        %v1758 = vadd.f32 %v1665, %v1750
        %v1759 = vstv %s927
        %v1760 = vmul.f32 %v1759, %v1538
        %v1761 = vmul.f32 %v1759, %v1539
        %v1762 = vmul.f32 %v1759, %v1062
        %v1763 = vmul.f32 %v1759, %v1063
        %v1764 = vmul.f32 %v1759, %v1540
        %v1765 = vmul.f32 %v1759, %v1541
        %v1772 = vrot.slane %v1760, 1
        %v1773 = vrot.slane %v1762, 1
        %v1774 = vsel %vm1263, %v1772, %v1773
        %v1775 = vrot.slane %v1761, 1
        %v1776 = vrot.slane %v1763, 1
        %v1777 = vsel %vm1263, %v1775, %v1776
        %v1778 = vrot.slane %v1764, 1
        %v1779 = vsel %vm1263, %v1773, %v1778
        %v1780 = vrot.slane %v1765, 1
        %v1781 = vsel %vm1263, %v1776, %v1780
        %v1786 = vadd.f32 %v1693, %v1774
        %v1787 = vadd.f32 %v1694, %v1777
        %v1788 = vadd.f32 %v1695, %v1779
        %v1789 = vadd.f32 %v1696, %v1781
        %v1790 = vstv %s954
        %v1791 = vmul.f32 %v1790, %v1538
        %v1792 = vmul.f32 %v1790, %v1539
        %v1793 = vmul.f32 %v1790, %v1062
        %v1794 = vmul.f32 %v1790, %v1063
        %v1795 = vmul.f32 %v1790, %v1540
        %v1796 = vmul.f32 %v1790, %v1541
        %v1803 = vrot.slane %v1791, 1
        %v1804 = vrot.slane %v1793, 1
        %v1805 = vsel %vm1263, %v1803, %v1804
        %v1806 = vrot.slane %v1792, 1
        %v1807 = vrot.slane %v1794, 1
        %v1808 = vsel %vm1263, %v1806, %v1807
        %v1809 = vrot.slane %v1795, 1
        %v1810 = vsel %vm1263, %v1804, %v1809
        %v1811 = vrot.slane %v1796, 1
        %v1812 = vsel %vm1263, %v1807, %v1811
        %v1817 = vadd.f32 %v1724, %v1805
        %v1818 = vadd.f32 %v1725, %v1808
        %v1819 = vadd.f32 %v1726, %v1810
        %v1820 = vadd.f32 %v1727, %v1812
        %v1821 = vld [vmem:[%s859] sm:$0xfe]
        %v1822 = vld [vmem:[%s859 + $0x8] sm:$0xfe]
        %v1823 = vld [vmem:[%s859 + $0x20] sm:$0x1]
        %v1824 = vld [vmem:[%s859 + $0x28] sm:$0x1]
        %v1825 = vld [vmem:[%s859 + $0x30] sm:$0xfe]
        %v1826 = vld [vmem:[%s859 + $0x38] sm:$0xfe]
        %v1827 = vld [vmem:[%s859 + $0x50] sm:$0x1]
        %v1828 = vld [vmem:[%s859 + $0x58] sm:$0x1]
        %v1829 = vld [vmem:[%s859 + $0x60] sm:$0xfe]
        %v1830 = vld [vmem:[%s859 + $0x68] sm:$0xfe]
        %v1831 = vld [vmem:[%s859 + $0x80] sm:$0x1]
        %v1832 = vld [vmem:[%s859 + $0x88] sm:$0x1]
        %v1833 = vstv %s883
        %v1834 = vmul.f32 %v1833, %v1821
        %v1835 = vmul.f32 %v1833, %v1822
        %v1836 = vmul.f32 %v1833, %v1147
        %v1837 = vmul.f32 %v1833, %v1148
        %v1838 = vmul.f32 %v1833, %v1823
        %v1839 = vmul.f32 %v1833, %v1824
        %v1846 = vrot.slane %v1834, 1
        %v1847 = vrot.slane %v1836, 1
        %v1848 = vsel %vm1263, %v1846, %v1847
        %v1849 = vrot.slane %v1835, 1
        %v1850 = vrot.slane %v1837, 1
        %v1851 = vsel %vm1263, %v1849, %v1850
        %v1852 = vrot.slane %v1838, 1
        %v1853 = vsel %vm1263, %v1847, %v1852
        %v1854 = vrot.slane %v1839, 1
        %v1855 = vsel %vm1263, %v1850, %v1854
        %v1860 = vadd.f32 %v1755, %v1848
        %v1861 = vadd.f32 %v1756, %v1851
        %v1862 = vadd.f32 %v1757, %v1853
        %v1863 = vadd.f32 %v1758, %v1855
        %v1864 = vstv %s910
        %v1865 = vmul.f32 %v1864, %v1821
        %v1866 = vmul.f32 %v1864, %v1822
        %v1867 = vmul.f32 %v1864, %v1147
        %v1868 = vmul.f32 %v1864, %v1148
        %v1869 = vmul.f32 %v1864, %v1823
        %v1870 = vmul.f32 %v1864, %v1824
        %v1877 = vrot.slane %v1865, 1
        %v1878 = vrot.slane %v1867, 1
        %v1879 = vsel %vm1263, %v1877, %v1878
        %v1880 = vrot.slane %v1866, 1
        %v1881 = vrot.slane %v1868, 1
        %v1882 = vsel %vm1263, %v1880, %v1881
        %v1883 = vrot.slane %v1869, 1
        %v1884 = vsel %vm1263, %v1878, %v1883
        %v1885 = vrot.slane %v1870, 1
        %v1886 = vsel %vm1263, %v1881, %v1885
        %v1891 = vadd.f32 %v1786, %v1879
        %v1892 = vadd.f32 %v1787, %v1882
        %v1893 = vadd.f32 %v1788, %v1884
        %v1894 = vadd.f32 %v1789, %v1886
        %v1895 = vstv %s937
        %v1896 = vmul.f32 %v1895, %v1821
        %v1897 = vmul.f32 %v1895, %v1822
        %v1898 = vmul.f32 %v1895, %v1147
        %v1899 = vmul.f32 %v1895, %v1148
        %v1900 = vmul.f32 %v1895, %v1823
        %v1901 = vmul.f32 %v1895, %v1824
        %v1908 = vrot.slane %v1896, 1
        %v1909 = vrot.slane %v1898, 1
        %v1910 = vsel %vm1263, %v1908, %v1909
        %v1911 = vrot.slane %v1897, 1
        %v1912 = vrot.slane %v1899, 1
        %v1913 = vsel %vm1263, %v1911, %v1912
        %v1914 = vrot.slane %v1900, 1
        %v1915 = vsel %vm1263, %v1909, %v1914
        %v1916 = vrot.slane %v1901, 1
        %v1917 = vsel %vm1263, %v1912, %v1916
        %v1922 = vadd.f32 %v1817, %v1910
        %v1923 = vadd.f32 %v1818, %v1913
        %v1924 = vadd.f32 %v1819, %v1915
        %v1925 = vadd.f32 %v1820, %v1917
        %v1926 = vstv %s892
        %v1927 = vmul.f32 %v1926, %v1825
        %v1928 = vmul.f32 %v1926, %v1826
        %v1929 = vmul.f32 %v1926, %v1151
        %v1930 = vmul.f32 %v1926, %v1152
        %v1931 = vmul.f32 %v1926, %v1827
        %v1932 = vmul.f32 %v1926, %v1828
        %v1939 = vrot.slane %v1927, 1
        %v1940 = vrot.slane %v1929, 1
        %v1941 = vsel %vm1263, %v1939, %v1940
        %v1942 = vrot.slane %v1928, 1
        %v1943 = vrot.slane %v1930, 1
        %v1944 = vsel %vm1263, %v1942, %v1943
        %v1945 = vrot.slane %v1931, 1
        %v1946 = vsel %vm1263, %v1940, %v1945
        %v1947 = vrot.slane %v1932, 1
        %v1948 = vsel %vm1263, %v1943, %v1947
        %v1953 = vadd.f32 %v1860, %v1941
        %v1954 = vadd.f32 %v1861, %v1944
        %v1955 = vadd.f32 %v1862, %v1946
        %v1956 = vadd.f32 %v1863, %v1948
        %v1957 = vstv %s919
        %v1958 = vmul.f32 %v1957, %v1825
        %v1959 = vmul.f32 %v1957, %v1826
        %v1960 = vmul.f32 %v1957, %v1151
        %v1961 = vmul.f32 %v1957, %v1152
        %v1962 = vmul.f32 %v1957, %v1827
        %v1963 = vmul.f32 %v1957, %v1828
        %v1970 = vrot.slane %v1958, 1
        %v1971 = vrot.slane %v1960, 1
        %v1972 = vsel %vm1263, %v1970, %v1971
        %v1973 = vrot.slane %v1959, 1
        %v1974 = vrot.slane %v1961, 1
        %v1975 = vsel %vm1263, %v1973, %v1974
        %v1976 = vrot.slane %v1962, 1
        %v1977 = vsel %vm1263, %v1971, %v1976
        %v1978 = vrot.slane %v1963, 1
        %v1979 = vsel %vm1263, %v1974, %v1978
        %v1984 = vadd.f32 %v1891, %v1972
        %v1985 = vadd.f32 %v1892, %v1975
        %v1986 = vadd.f32 %v1893, %v1977
        %v1987 = vadd.f32 %v1894, %v1979
        %v1988 = vstv %s946
        %v1989 = vmul.f32 %v1988, %v1825
        %v1990 = vmul.f32 %v1988, %v1826
        %v1991 = vmul.f32 %v1988, %v1151
        %v1992 = vmul.f32 %v1988, %v1152
        %v1993 = vmul.f32 %v1988, %v1827
        %v1994 = vmul.f32 %v1988, %v1828
        %v2001 = vrot.slane %v1989, 1
        %v2002 = vrot.slane %v1991, 1
        %v2003 = vsel %vm1263, %v2001, %v2002
        %v2004 = vrot.slane %v1990, 1
        %v2005 = vrot.slane %v1992, 1
        %v2006 = vsel %vm1263, %v2004, %v2005
        %v2007 = vrot.slane %v1993, 1
        %v2008 = vsel %vm1263, %v2002, %v2007
        %v2009 = vrot.slane %v1994, 1
        %v2010 = vsel %vm1263, %v2005, %v2009
        %v2015 = vadd.f32 %v1922, %v2003
        %v2016 = vadd.f32 %v1923, %v2006
        %v2017 = vadd.f32 %v1924, %v2008
        %v2018 = vadd.f32 %v1925, %v2010
        %v2019 = vstv %s901
        %v2020 = vmul.f32 %v2019, %v1829
        %v2021 = vmul.f32 %v2019, %v1830
        %v2022 = vmul.f32 %v2019, %v1155
        %v2023 = vmul.f32 %v2019, %v1156
        %v2024 = vmul.f32 %v2019, %v1831
        %v2025 = vmul.f32 %v2019, %v1832
        %v2032 = vrot.slane %v2020, 1
        %v2033 = vrot.slane %v2022, 1
        %v2034 = vsel %vm1263, %v2032, %v2033
        %v2035 = vrot.slane %v2021, 1
        %v2036 = vrot.slane %v2023, 1
        %v2037 = vsel %vm1263, %v2035, %v2036
        %v2038 = vrot.slane %v2024, 1
        %v2039 = vsel %vm1263, %v2033, %v2038
        %v2040 = vrot.slane %v2025, 1
        %v2041 = vsel %vm1263, %v2036, %v2040
        %v2046 = vadd.f32 %v1953, %v2034
        %v2047 = vadd.f32 %v1954, %v2037
        %v2048 = vadd.f32 %v1955, %v2039
        %v2049 = vadd.f32 %v1956, %v2041
        %v2050 = vstv %s928
        %v2051 = vmul.f32 %v2050, %v1829
        %v2052 = vmul.f32 %v2050, %v1830
        %v2053 = vmul.f32 %v2050, %v1155
        %v2054 = vmul.f32 %v2050, %v1156
        %v2055 = vmul.f32 %v2050, %v1831
        %v2056 = vmul.f32 %v2050, %v1832
        %v2063 = vrot.slane %v2051, 1
        %v2064 = vrot.slane %v2053, 1
        %v2065 = vsel %vm1263, %v2063, %v2064
        %v2066 = vrot.slane %v2052, 1
        %v2067 = vrot.slane %v2054, 1
        %v2068 = vsel %vm1263, %v2066, %v2067
        %v2069 = vrot.slane %v2055, 1
        %v2070 = vsel %vm1263, %v2064, %v2069
        %v2071 = vrot.slane %v2056, 1
        %v2072 = vsel %vm1263, %v2067, %v2071
        %v2077 = vadd.f32 %v1984, %v2065
        %v2078 = vadd.f32 %v1985, %v2068
        %v2079 = vadd.f32 %v1986, %v2070
        %v2080 = vadd.f32 %v1987, %v2072
        %v2081 = vstv %s955
        %v2082 = vmul.f32 %v2081, %v1829
        %v2083 = vmul.f32 %v2081, %v1830
        %v2084 = vmul.f32 %v2081, %v1155
        %v2085 = vmul.f32 %v2081, %v1156
        %v2086 = vmul.f32 %v2081, %v1831
        %v2087 = vmul.f32 %v2081, %v1832
        %v2094 = vrot.slane %v2082, 1
        %v2095 = vrot.slane %v2084, 1
        %v2096 = vsel %vm1263, %v2094, %v2095
        %v2097 = vrot.slane %v2083, 1
        %v2098 = vrot.slane %v2085, 1
        %v2099 = vsel %vm1263, %v2097, %v2098
        %v2100 = vrot.slane %v2086, 1
        %v2101 = vsel %vm1263, %v2095, %v2100
        %v2102 = vrot.slane %v2087, 1
        %v2103 = vsel %vm1263, %v2098, %v2102
        %v2108 = vadd.f32 %v2015, %v2096
        %v2109 = vadd.f32 %v2016, %v2099
        %v2110 = vadd.f32 %v2017, %v2101
        %v2111 = vadd.f32 %v2018, %v2103
        %v2112 = vld [vmem:[#allocation2] sm:$0xfc]
        %v2113 = vld [vmem:[#allocation2 + $0x8] sm:$0xfc]
        %v2114 = vld [vmem:[#allocation2 + $0x20] sm:$0x3]
        %v2115 = vld [vmem:[#allocation2 + $0x28] sm:$0x3]
        %v2116 = vld [vmem:[#allocation2 + $0x30] sm:$0xfc]
        %v2117 = vld [vmem:[#allocation2 + $0x38] sm:$0xfc]
        %v2118 = vld [vmem:[#allocation2 + $0x50] sm:$0x3]
        %v2119 = vld [vmem:[#allocation2 + $0x58] sm:$0x3]
        %v2120 = vld [vmem:[#allocation2 + $0x60] sm:$0xfc]
        %v2121 = vld [vmem:[#allocation2 + $0x68] sm:$0xfc]
        %v2122 = vld [vmem:[#allocation2 + $0x80] sm:$0x3]
        %v2123 = vld [vmem:[#allocation2 + $0x88] sm:$0x3]
        %v2124 = vstv %s884
        %v2125 = vmul.f32 %v2124, %v2112
        %v2126 = vmul.f32 %v2124, %v2113
        %v2127 = vmul.f32 %v2124, %v961
        %v2128 = vmul.f32 %v2124, %v962
        %v2129 = vmul.f32 %v2124, %v2114
        %v2130 = vmul.f32 %v2124, %v2115
        %vm2137 = vcmask 1045504
        %v2138 = vrot.slane %v2125, 2
        %v2139 = vrot.slane %v2127, 2
        %v2140 = vsel %vm2137, %v2138, %v2139
        %v2141 = vrot.slane %v2126, 2
        %v2142 = vrot.slane %v2128, 2
        %v2143 = vsel %vm2137, %v2141, %v2142
        %v2144 = vrot.slane %v2129, 2
        %v2145 = vsel %vm2137, %v2139, %v2144
        %v2146 = vrot.slane %v2130, 2
        %v2147 = vsel %vm2137, %v2142, %v2146
        %v2152 = vadd.f32 %v2046, %v2140
        %v2153 = vadd.f32 %v2047, %v2143
        %v2154 = vadd.f32 %v2048, %v2145
        %v2155 = vadd.f32 %v2049, %v2147
        %v2156 = vstv %s911
        %v2157 = vmul.f32 %v2156, %v2112
        %v2158 = vmul.f32 %v2156, %v2113
        %v2159 = vmul.f32 %v2156, %v961
        %v2160 = vmul.f32 %v2156, %v962
        %v2161 = vmul.f32 %v2156, %v2114
        %v2162 = vmul.f32 %v2156, %v2115
        %v2169 = vrot.slane %v2157, 2
        %v2170 = vrot.slane %v2159, 2
        %v2171 = vsel %vm2137, %v2169, %v2170
        %v2172 = vrot.slane %v2158, 2
        %v2173 = vrot.slane %v2160, 2
        %v2174 = vsel %vm2137, %v2172, %v2173
        %v2175 = vrot.slane %v2161, 2
        %v2176 = vsel %vm2137, %v2170, %v2175
        %v2177 = vrot.slane %v2162, 2
        %v2178 = vsel %vm2137, %v2173, %v2177
        %v2183 = vadd.f32 %v2077, %v2171
        %v2184 = vadd.f32 %v2078, %v2174
        %v2185 = vadd.f32 %v2079, %v2176
        %v2186 = vadd.f32 %v2080, %v2178
        %v2187 = vstv %s938
        %v2188 = vmul.f32 %v2187, %v2112
        %v2189 = vmul.f32 %v2187, %v2113
        %v2190 = vmul.f32 %v2187, %v961
        %v2191 = vmul.f32 %v2187, %v962
        %v2192 = vmul.f32 %v2187, %v2114
        %v2193 = vmul.f32 %v2187, %v2115
        %v2200 = vrot.slane %v2188, 2
        %v2201 = vrot.slane %v2190, 2
        %v2202 = vsel %vm2137, %v2200, %v2201
        %v2203 = vrot.slane %v2189, 2
        %v2204 = vrot.slane %v2191, 2
        %v2205 = vsel %vm2137, %v2203, %v2204
        %v2206 = vrot.slane %v2192, 2
        %v2207 = vsel %vm2137, %v2201, %v2206
        %v2208 = vrot.slane %v2193, 2
        %v2209 = vsel %vm2137, %v2204, %v2208
        %v2214 = vadd.f32 %v2108, %v2202
        %v2215 = vadd.f32 %v2109, %v2205
        %v2216 = vadd.f32 %v2110, %v2207
        %v2217 = vadd.f32 %v2111, %v2209
        %v2218 = vstv %s893
        %v2219 = vmul.f32 %v2218, %v2116
        %v2220 = vmul.f32 %v2218, %v2117
        %v2221 = vmul.f32 %v2218, %v965
        %v2222 = vmul.f32 %v2218, %v966
        %v2223 = vmul.f32 %v2218, %v2118
        %v2224 = vmul.f32 %v2218, %v2119
        %v2231 = vrot.slane %v2219, 2
        %v2232 = vrot.slane %v2221, 2
        %v2233 = vsel %vm2137, %v2231, %v2232
        %v2234 = vrot.slane %v2220, 2
        %v2235 = vrot.slane %v2222, 2
        %v2236 = vsel %vm2137, %v2234, %v2235
        %v2237 = vrot.slane %v2223, 2
        %v2238 = vsel %vm2137, %v2232, %v2237
        %v2239 = vrot.slane %v2224, 2
        %v2240 = vsel %vm2137, %v2235, %v2239
        %v2245 = vadd.f32 %v2152, %v2233
        %v2246 = vadd.f32 %v2153, %v2236
        %v2247 = vadd.f32 %v2154, %v2238
        %v2248 = vadd.f32 %v2155, %v2240
        %v2249 = vstv %s920
        %v2250 = vmul.f32 %v2249, %v2116
        %v2251 = vmul.f32 %v2249, %v2117
        %v2252 = vmul.f32 %v2249, %v965
        %v2253 = vmul.f32 %v2249, %v966
        %v2254 = vmul.f32 %v2249, %v2118
        %v2255 = vmul.f32 %v2249, %v2119
        %v2262 = vrot.slane %v2250, 2
        %v2263 = vrot.slane %v2252, 2
        %v2264 = vsel %vm2137, %v2262, %v2263
        %v2265 = vrot.slane %v2251, 2
        %v2266 = vrot.slane %v2253, 2
        %v2267 = vsel %vm2137, %v2265, %v2266
        %v2268 = vrot.slane %v2254, 2
        %v2269 = vsel %vm2137, %v2263, %v2268
        %v2270 = vrot.slane %v2255, 2
        %v2271 = vsel %vm2137, %v2266, %v2270
        %v2276 = vadd.f32 %v2183, %v2264
        %v2277 = vadd.f32 %v2184, %v2267
        %v2278 = vadd.f32 %v2185, %v2269
        %v2279 = vadd.f32 %v2186, %v2271
        %v2280 = vstv %s947
        %v2281 = vmul.f32 %v2280, %v2116
        %v2282 = vmul.f32 %v2280, %v2117
        %v2283 = vmul.f32 %v2280, %v965
        %v2284 = vmul.f32 %v2280, %v966
        %v2285 = vmul.f32 %v2280, %v2118
        %v2286 = vmul.f32 %v2280, %v2119
        %v2293 = vrot.slane %v2281, 2
        %v2294 = vrot.slane %v2283, 2
        %v2295 = vsel %vm2137, %v2293, %v2294
        %v2296 = vrot.slane %v2282, 2
        %v2297 = vrot.slane %v2284, 2
        %v2298 = vsel %vm2137, %v2296, %v2297
        %v2299 = vrot.slane %v2285, 2
        %v2300 = vsel %vm2137, %v2294, %v2299
        %v2301 = vrot.slane %v2286, 2
        %v2302 = vsel %vm2137, %v2297, %v2301
        %v2307 = vadd.f32 %v2214, %v2295
        %v2308 = vadd.f32 %v2215, %v2298
        %v2309 = vadd.f32 %v2216, %v2300
        %v2310 = vadd.f32 %v2217, %v2302
        %v2311 = vstv %s902
        %v2312 = vmul.f32 %v2311, %v2120
        %v2313 = vmul.f32 %v2311, %v2121
        %v2314 = vmul.f32 %v2311, %v969
        %v2315 = vmul.f32 %v2311, %v970
        %v2316 = vmul.f32 %v2311, %v2122
        %v2317 = vmul.f32 %v2311, %v2123
        %v2324 = vrot.slane %v2312, 2
        %v2325 = vrot.slane %v2314, 2
        %v2326 = vsel %vm2137, %v2324, %v2325
        %v2327 = vrot.slane %v2313, 2
        %v2328 = vrot.slane %v2315, 2
        %v2329 = vsel %vm2137, %v2327, %v2328
        %v2330 = vrot.slane %v2316, 2
        %v2331 = vsel %vm2137, %v2325, %v2330
        %v2332 = vrot.slane %v2317, 2
        %v2333 = vsel %vm2137, %v2328, %v2332
        %v2338 = vadd.f32 %v2245, %v2326
        %v2339 = vadd.f32 %v2246, %v2329
        %v2340 = vadd.f32 %v2247, %v2331
        %v2341 = vadd.f32 %v2248, %v2333
        %v2342 = vstv %s929
        %v2343 = vmul.f32 %v2342, %v2120
        %v2344 = vmul.f32 %v2342, %v2121
        %v2345 = vmul.f32 %v2342, %v969
        %v2346 = vmul.f32 %v2342, %v970
        %v2347 = vmul.f32 %v2342, %v2122
        %v2348 = vmul.f32 %v2342, %v2123
        %v2355 = vrot.slane %v2343, 2
        %v2356 = vrot.slane %v2345, 2
        %v2357 = vsel %vm2137, %v2355, %v2356
        %v2358 = vrot.slane %v2344, 2
        %v2359 = vrot.slane %v2346, 2
        %v2360 = vsel %vm2137, %v2358, %v2359
        %v2361 = vrot.slane %v2347, 2
        %v2362 = vsel %vm2137, %v2356, %v2361
        %v2363 = vrot.slane %v2348, 2
        %v2364 = vsel %vm2137, %v2359, %v2363
        %v2369 = vadd.f32 %v2276, %v2357
        %v2370 = vadd.f32 %v2277, %v2360
        %v2371 = vadd.f32 %v2278, %v2362
        %v2372 = vadd.f32 %v2279, %v2364
        %v2373 = vstv %s956
        %v2374 = vmul.f32 %v2373, %v2120
        %v2375 = vmul.f32 %v2373, %v2121
        %v2376 = vmul.f32 %v2373, %v969
        %v2377 = vmul.f32 %v2373, %v970
        %v2378 = vmul.f32 %v2373, %v2122
        %v2379 = vmul.f32 %v2373, %v2123
        %v2386 = vrot.slane %v2374, 2
        %v2387 = vrot.slane %v2376, 2
        %v2388 = vsel %vm2137, %v2386, %v2387
        %v2389 = vrot.slane %v2375, 2
        %v2390 = vrot.slane %v2377, 2
        %v2391 = vsel %vm2137, %v2389, %v2390
        %v2392 = vrot.slane %v2378, 2
        %v2393 = vsel %vm2137, %v2387, %v2392
        %v2394 = vrot.slane %v2379, 2
        %v2395 = vsel %vm2137, %v2390, %v2394
        %v2400 = vadd.f32 %v2307, %v2388
        %v2401 = vadd.f32 %v2308, %v2391
        %v2402 = vadd.f32 %v2309, %v2393
        %v2403 = vadd.f32 %v2310, %v2395
        %v2404 = vld [vmem:[%s785] sm:$0xfc]
        %v2405 = vld [vmem:[%s785 + $0x8] sm:$0xfc]
        %v2406 = vld [vmem:[%s785 + $0x20] sm:$0x3]
        %v2407 = vld [vmem:[%s785 + $0x28] sm:$0x3]
        %v2408 = vld [vmem:[%s785 + $0x30] sm:$0xfc]
        %v2409 = vld [vmem:[%s785 + $0x38] sm:$0xfc]
        %v2410 = vld [vmem:[%s785 + $0x50] sm:$0x3]
        %v2411 = vld [vmem:[%s785 + $0x58] sm:$0x3]
        %v2412 = vld [vmem:[%s785 + $0x60] sm:$0xfc]
        %v2413 = vld [vmem:[%s785 + $0x68] sm:$0xfc]
        %v2414 = vld [vmem:[%s785 + $0x80] sm:$0x3]
        %v2415 = vld [vmem:[%s785 + $0x88] sm:$0x3]
        %v2416 = vstv %s885
        %v2417 = vmul.f32 %v2416, %v2404
        %v2418 = vmul.f32 %v2416, %v2405
        %v2419 = vmul.f32 %v2416, %v1054
        %v2420 = vmul.f32 %v2416, %v1055
        %v2421 = vmul.f32 %v2416, %v2406
        %v2422 = vmul.f32 %v2416, %v2407
        %v2429 = vrot.slane %v2417, 2
        %v2430 = vrot.slane %v2419, 2
        %v2431 = vsel %vm2137, %v2429, %v2430
        %v2432 = vrot.slane %v2418, 2
        %v2433 = vrot.slane %v2420, 2
        %v2434 = vsel %vm2137, %v2432, %v2433
        %v2435 = vrot.slane %v2421, 2
        %v2436 = vsel %vm2137, %v2430, %v2435
        %v2437 = vrot.slane %v2422, 2
        %v2438 = vsel %vm2137, %v2433, %v2437
        %v2443 = vadd.f32 %v2338, %v2431
        %v2444 = vadd.f32 %v2339, %v2434
        %v2445 = vadd.f32 %v2340, %v2436
        %v2446 = vadd.f32 %v2341, %v2438
        %v2447 = vstv %s912
        %v2448 = vmul.f32 %v2447, %v2404
        %v2449 = vmul.f32 %v2447, %v2405
        %v2450 = vmul.f32 %v2447, %v1054
        %v2451 = vmul.f32 %v2447, %v1055
        %v2452 = vmul.f32 %v2447, %v2406
        %v2453 = vmul.f32 %v2447, %v2407
        %v2460 = vrot.slane %v2448, 2
        %v2461 = vrot.slane %v2450, 2
        %v2462 = vsel %vm2137, %v2460, %v2461
        %v2463 = vrot.slane %v2449, 2
        %v2464 = vrot.slane %v2451, 2
        %v2465 = vsel %vm2137, %v2463, %v2464
        %v2466 = vrot.slane %v2452, 2
        %v2467 = vsel %vm2137, %v2461, %v2466
        %v2468 = vrot.slane %v2453, 2
        %v2469 = vsel %vm2137, %v2464, %v2468
        %v2474 = vadd.f32 %v2369, %v2462
        %v2475 = vadd.f32 %v2370, %v2465
        %v2476 = vadd.f32 %v2371, %v2467
        %v2477 = vadd.f32 %v2372, %v2469
        %v2478 = vstv %s939
        %v2479 = vmul.f32 %v2478, %v2404
        %v2480 = vmul.f32 %v2478, %v2405
        %v2481 = vmul.f32 %v2478, %v1054
        %v2482 = vmul.f32 %v2478, %v1055
        %v2483 = vmul.f32 %v2478, %v2406
        %v2484 = vmul.f32 %v2478, %v2407
        %v2491 = vrot.slane %v2479, 2
        %v2492 = vrot.slane %v2481, 2
        %v2493 = vsel %vm2137, %v2491, %v2492
        %v2494 = vrot.slane %v2480, 2
        %v2495 = vrot.slane %v2482, 2
        %v2496 = vsel %vm2137, %v2494, %v2495
        %v2497 = vrot.slane %v2483, 2
        %v2498 = vsel %vm2137, %v2492, %v2497
        %v2499 = vrot.slane %v2484, 2
        %v2500 = vsel %vm2137, %v2495, %v2499
        %v2505 = vadd.f32 %v2400, %v2493
        %v2506 = vadd.f32 %v2401, %v2496
        %v2507 = vadd.f32 %v2402, %v2498
        %v2508 = vadd.f32 %v2403, %v2500
        %v2509 = vstv %s894
        %v2510 = vmul.f32 %v2509, %v2408
        %v2511 = vmul.f32 %v2509, %v2409
        %v2512 = vmul.f32 %v2509, %v1058
        %v2513 = vmul.f32 %v2509, %v1059
        %v2514 = vmul.f32 %v2509, %v2410
        %v2515 = vmul.f32 %v2509, %v2411
        %v2522 = vrot.slane %v2510, 2
        %v2523 = vrot.slane %v2512, 2
        %v2524 = vsel %vm2137, %v2522, %v2523
        %v2525 = vrot.slane %v2511, 2
        %v2526 = vrot.slane %v2513, 2
        %v2527 = vsel %vm2137, %v2525, %v2526
        %v2528 = vrot.slane %v2514, 2
        %v2529 = vsel %vm2137, %v2523, %v2528
        %v2530 = vrot.slane %v2515, 2
        %v2531 = vsel %vm2137, %v2526, %v2530
        %v2536 = vadd.f32 %v2443, %v2524
        %v2537 = vadd.f32 %v2444, %v2527
        %v2538 = vadd.f32 %v2445, %v2529
        %v2539 = vadd.f32 %v2446, %v2531
        %v2540 = vstv %s921
        %v2541 = vmul.f32 %v2540, %v2408
        %v2542 = vmul.f32 %v2540, %v2409
        %v2543 = vmul.f32 %v2540, %v1058
        %v2544 = vmul.f32 %v2540, %v1059
        %v2545 = vmul.f32 %v2540, %v2410
        %v2546 = vmul.f32 %v2540, %v2411
        %v2553 = vrot.slane %v2541, 2
        %v2554 = vrot.slane %v2543, 2
        %v2555 = vsel %vm2137, %v2553, %v2554
        %v2556 = vrot.slane %v2542, 2
        %v2557 = vrot.slane %v2544, 2
        %v2558 = vsel %vm2137, %v2556, %v2557
        %v2559 = vrot.slane %v2545, 2
        %v2560 = vsel %vm2137, %v2554, %v2559
        %v2561 = vrot.slane %v2546, 2
        %v2562 = vsel %vm2137, %v2557, %v2561
        %v2567 = vadd.f32 %v2474, %v2555
        %v2568 = vadd.f32 %v2475, %v2558
        %v2569 = vadd.f32 %v2476, %v2560
        %v2570 = vadd.f32 %v2477, %v2562
        %v2571 = vstv %s948
        %v2572 = vmul.f32 %v2571, %v2408
        %v2573 = vmul.f32 %v2571, %v2409
        %v2574 = vmul.f32 %v2571, %v1058
        %v2575 = vmul.f32 %v2571, %v1059
        %v2576 = vmul.f32 %v2571, %v2410
        %v2577 = vmul.f32 %v2571, %v2411
        %v2584 = vrot.slane %v2572, 2
        %v2585 = vrot.slane %v2574, 2
        %v2586 = vsel %vm2137, %v2584, %v2585
        %v2587 = vrot.slane %v2573, 2
        %v2588 = vrot.slane %v2575, 2
        %v2589 = vsel %vm2137, %v2587, %v2588
        %v2590 = vrot.slane %v2576, 2
        %v2591 = vsel %vm2137, %v2585, %v2590
        %v2592 = vrot.slane %v2577, 2
        %v2593 = vsel %vm2137, %v2588, %v2592
        %v2598 = vadd.f32 %v2505, %v2586
        %v2599 = vadd.f32 %v2506, %v2589
        %v2600 = vadd.f32 %v2507, %v2591
        %v2601 = vadd.f32 %v2508, %v2593
        %v2602 = vstv %s903
        %v2603 = vmul.f32 %v2602, %v2412
        %v2604 = vmul.f32 %v2602, %v2413
        %v2605 = vmul.f32 %v2602, %v1062
        %v2606 = vmul.f32 %v2602, %v1063
        %v2607 = vmul.f32 %v2602, %v2414
        %v2608 = vmul.f32 %v2602, %v2415
        %v2615 = vrot.slane %v2603, 2
        %v2616 = vrot.slane %v2605, 2
        %v2617 = vsel %vm2137, %v2615, %v2616
        %v2618 = vrot.slane %v2604, 2
        %v2619 = vrot.slane %v2606, 2
        %v2620 = vsel %vm2137, %v2618, %v2619
        %v2621 = vrot.slane %v2607, 2
        %v2622 = vsel %vm2137, %v2616, %v2621
        %v2623 = vrot.slane %v2608, 2
        %v2624 = vsel %vm2137, %v2619, %v2623
        %v2629 = vadd.f32 %v2536, %v2617
        %v2630 = vadd.f32 %v2537, %v2620
        %v2631 = vadd.f32 %v2538, %v2622
        %v2632 = vadd.f32 %v2539, %v2624
        %v2633 = vstv %s930
        %v2634 = vmul.f32 %v2633, %v2412
        %v2635 = vmul.f32 %v2633, %v2413
        %v2636 = vmul.f32 %v2633, %v1062
        %v2637 = vmul.f32 %v2633, %v1063
        %v2638 = vmul.f32 %v2633, %v2414
        %v2639 = vmul.f32 %v2633, %v2415
        %v2646 = vrot.slane %v2634, 2
        %v2647 = vrot.slane %v2636, 2
        %v2648 = vsel %vm2137, %v2646, %v2647
        %v2649 = vrot.slane %v2635, 2
        %v2650 = vrot.slane %v2637, 2
        %v2651 = vsel %vm2137, %v2649, %v2650
        %v2652 = vrot.slane %v2638, 2
        %v2653 = vsel %vm2137, %v2647, %v2652
        %v2654 = vrot.slane %v2639, 2
        %v2655 = vsel %vm2137, %v2650, %v2654
        %v2660 = vadd.f32 %v2567, %v2648
        %v2661 = vadd.f32 %v2568, %v2651
        %v2662 = vadd.f32 %v2569, %v2653
        %v2663 = vadd.f32 %v2570, %v2655
        %v2664 = vstv %s957
        %v2665 = vmul.f32 %v2664, %v2412
        %v2666 = vmul.f32 %v2664, %v2413
        %v2667 = vmul.f32 %v2664, %v1062
        %v2668 = vmul.f32 %v2664, %v1063
        %v2669 = vmul.f32 %v2664, %v2414
        %v2670 = vmul.f32 %v2664, %v2415
        %v2677 = vrot.slane %v2665, 2
        %v2678 = vrot.slane %v2667, 2
        %v2679 = vsel %vm2137, %v2677, %v2678
        %v2680 = vrot.slane %v2666, 2
        %v2681 = vrot.slane %v2668, 2
        %v2682 = vsel %vm2137, %v2680, %v2681
        %v2683 = vrot.slane %v2669, 2
        %v2684 = vsel %vm2137, %v2678, %v2683
        %v2685 = vrot.slane %v2670, 2
        %v2686 = vsel %vm2137, %v2681, %v2685
        %v2691 = vadd.f32 %v2598, %v2679
        %v2692 = vadd.f32 %v2599, %v2682
        %v2693 = vadd.f32 %v2600, %v2684
        %v2694 = vadd.f32 %v2601, %v2686
        %v2695 = vld [vmem:[%s859] sm:$0xfc]
        %v2696 = vld [vmem:[%s859 + $0x8] sm:$0xfc]
        %v2697 = vld [vmem:[%s859 + $0x20] sm:$0x3]
        %v2698 = vld [vmem:[%s859 + $0x28] sm:$0x3]
        %v2699 = vld [vmem:[%s859 + $0x30] sm:$0xfc]
        %v2700 = vld [vmem:[%s859 + $0x38] sm:$0xfc]
        %v2701 = vld [vmem:[%s859 + $0x50] sm:$0x3]
        %v2702 = vld [vmem:[%s859 + $0x58] sm:$0x3]
        %v2703 = vld [vmem:[%s859 + $0x60] sm:$0xfc]
        %v2704 = vld [vmem:[%s859 + $0x68] sm:$0xfc]
        %v2705 = vld [vmem:[%s859 + $0x80] sm:$0x3]
        %v2706 = vld [vmem:[%s859 + $0x88] sm:$0x3]
        %v2707 = vstv %s886
        %v2708 = vmul.f32 %v2707, %v2695
        %v2709 = vmul.f32 %v2707, %v2696
        %v2710 = vmul.f32 %v2707, %v1147
        %v2711 = vmul.f32 %v2707, %v1148
        %v2712 = vmul.f32 %v2707, %v2697
        %v2713 = vmul.f32 %v2707, %v2698
        %v2720 = vrot.slane %v2708, 2
        %v2721 = vrot.slane %v2710, 2
        %v2722 = vsel %vm2137, %v2720, %v2721
        %v2723 = vrot.slane %v2709, 2
        %v2724 = vrot.slane %v2711, 2
        %v2725 = vsel %vm2137, %v2723, %v2724
        %v2726 = vrot.slane %v2712, 2
        %v2727 = vsel %vm2137, %v2721, %v2726
        %v2728 = vrot.slane %v2713, 2
        %v2729 = vsel %vm2137, %v2724, %v2728
        %v2734 = vadd.f32 %v2629, %v2722
        %v2735 = vadd.f32 %v2630, %v2725
        %v2736 = vadd.f32 %v2631, %v2727
        %v2737 = vadd.f32 %v2632, %v2729
        %v2738 = vstv %s913
        %v2739 = vmul.f32 %v2738, %v2695
        %v2740 = vmul.f32 %v2738, %v2696
        %v2741 = vmul.f32 %v2738, %v1147
        %v2742 = vmul.f32 %v2738, %v1148
        %v2743 = vmul.f32 %v2738, %v2697
        %v2744 = vmul.f32 %v2738, %v2698
        %v2751 = vrot.slane %v2739, 2
        %v2752 = vrot.slane %v2741, 2
        %v2753 = vsel %vm2137, %v2751, %v2752
        %v2754 = vrot.slane %v2740, 2
        %v2755 = vrot.slane %v2742, 2
        %v2756 = vsel %vm2137, %v2754, %v2755
        %v2757 = vrot.slane %v2743, 2
        %v2758 = vsel %vm2137, %v2752, %v2757
        %v2759 = vrot.slane %v2744, 2
        %v2760 = vsel %vm2137, %v2755, %v2759
        %v2765 = vadd.f32 %v2660, %v2753
        %v2766 = vadd.f32 %v2661, %v2756
        %v2767 = vadd.f32 %v2662, %v2758
        %v2768 = vadd.f32 %v2663, %v2760
        %v2769 = vstv %s940
        %v2770 = vmul.f32 %v2769, %v2695
        %v2771 = vmul.f32 %v2769, %v2696
        %v2772 = vmul.f32 %v2769, %v1147
        %v2773 = vmul.f32 %v2769, %v1148
        %v2774 = vmul.f32 %v2769, %v2697
        %v2775 = vmul.f32 %v2769, %v2698
        %v2782 = vrot.slane %v2770, 2
        %v2783 = vrot.slane %v2772, 2
        %v2784 = vsel %vm2137, %v2782, %v2783
        %v2785 = vrot.slane %v2771, 2
        %v2786 = vrot.slane %v2773, 2
        %v2787 = vsel %vm2137, %v2785, %v2786
        %v2788 = vrot.slane %v2774, 2
        %v2789 = vsel %vm2137, %v2783, %v2788
        %v2790 = vrot.slane %v2775, 2
        %v2791 = vsel %vm2137, %v2786, %v2790
        %v2796 = vadd.f32 %v2691, %v2784
        %v2797 = vadd.f32 %v2692, %v2787
        %v2798 = vadd.f32 %v2693, %v2789
        %v2799 = vadd.f32 %v2694, %v2791
        %v2800 = vstv %s895
        %v2801 = vmul.f32 %v2800, %v2699
        %v2802 = vmul.f32 %v2800, %v2700
        %v2803 = vmul.f32 %v2800, %v1151
        %v2804 = vmul.f32 %v2800, %v1152
        %v2805 = vmul.f32 %v2800, %v2701
        %v2806 = vmul.f32 %v2800, %v2702
        %v2813 = vrot.slane %v2801, 2
        %v2814 = vrot.slane %v2803, 2
        %v2815 = vsel %vm2137, %v2813, %v2814
        %v2816 = vrot.slane %v2802, 2
        %v2817 = vrot.slane %v2804, 2
        %v2818 = vsel %vm2137, %v2816, %v2817
        %v2819 = vrot.slane %v2805, 2
        %v2820 = vsel %vm2137, %v2814, %v2819
        %v2821 = vrot.slane %v2806, 2
        %v2822 = vsel %vm2137, %v2817, %v2821
        %v2827 = vadd.f32 %v2734, %v2815
        %v2828 = vadd.f32 %v2735, %v2818
        %v2829 = vadd.f32 %v2736, %v2820
        %v2830 = vadd.f32 %v2737, %v2822
        %v2831 = vstv %s922
        %v2832 = vmul.f32 %v2831, %v2699
        %v2833 = vmul.f32 %v2831, %v2700
        %v2834 = vmul.f32 %v2831, %v1151
        %v2835 = vmul.f32 %v2831, %v1152
        %v2836 = vmul.f32 %v2831, %v2701
        %v2837 = vmul.f32 %v2831, %v2702
        %v2844 = vrot.slane %v2832, 2
        %v2845 = vrot.slane %v2834, 2
        %v2846 = vsel %vm2137, %v2844, %v2845
        %v2847 = vrot.slane %v2833, 2
        %v2848 = vrot.slane %v2835, 2
        %v2849 = vsel %vm2137, %v2847, %v2848
        %v2850 = vrot.slane %v2836, 2
        %v2851 = vsel %vm2137, %v2845, %v2850
        %v2852 = vrot.slane %v2837, 2
        %v2853 = vsel %vm2137, %v2848, %v2852
        %v2858 = vadd.f32 %v2765, %v2846
        %v2859 = vadd.f32 %v2766, %v2849
        %v2860 = vadd.f32 %v2767, %v2851
        %v2861 = vadd.f32 %v2768, %v2853
        %v2862 = vstv %s949
        %v2863 = vmul.f32 %v2862, %v2699
        %v2864 = vmul.f32 %v2862, %v2700
        %v2865 = vmul.f32 %v2862, %v1151
        %v2866 = vmul.f32 %v2862, %v1152
        %v2867 = vmul.f32 %v2862, %v2701
        %v2868 = vmul.f32 %v2862, %v2702
        %v2875 = vrot.slane %v2863, 2
        %v2876 = vrot.slane %v2865, 2
        %v2877 = vsel %vm2137, %v2875, %v2876
        %v2878 = vrot.slane %v2864, 2
        %v2879 = vrot.slane %v2866, 2
        %v2880 = vsel %vm2137, %v2878, %v2879
        %v2881 = vrot.slane %v2867, 2
        %v2882 = vsel %vm2137, %v2876, %v2881
        %v2883 = vrot.slane %v2868, 2
        %v2884 = vsel %vm2137, %v2879, %v2883
        %v2889 = vadd.f32 %v2796, %v2877
        %v2890 = vadd.f32 %v2797, %v2880
        %v2891 = vadd.f32 %v2798, %v2882
        %v2892 = vadd.f32 %v2799, %v2884
        %v2893 = vstv %s904
        %v2894 = vmul.f32 %v2893, %v2703
        %v2895 = vmul.f32 %v2893, %v2704
        %v2896 = vmul.f32 %v2893, %v1155
        %v2897 = vmul.f32 %v2893, %v1156
        %v2898 = vmul.f32 %v2893, %v2705
        %v2899 = vmul.f32 %v2893, %v2706
        %v2906 = vrot.slane %v2894, 2
        %v2907 = vrot.slane %v2896, 2
        %v2908 = vsel %vm2137, %v2906, %v2907
        %v2909 = vrot.slane %v2895, 2
        %v2910 = vrot.slane %v2897, 2
        %v2911 = vsel %vm2137, %v2909, %v2910
        %v2912 = vrot.slane %v2898, 2
        %v2913 = vsel %vm2137, %v2907, %v2912
        %v2914 = vrot.slane %v2899, 2
        %v2915 = vsel %vm2137, %v2910, %v2914
        %v2920 = vadd.f32 %v2827, %v2908
        %v2921 = vadd.f32 %v2828, %v2911
        %v2922 = vadd.f32 %v2829, %v2913
        %v2923 = vadd.f32 %v2830, %v2915
        %v2924 = vstv %s931
        %v2925 = vmul.f32 %v2924, %v2703
        %v2926 = vmul.f32 %v2924, %v2704
        %v2927 = vmul.f32 %v2924, %v1155
        %v2928 = vmul.f32 %v2924, %v1156
        %v2929 = vmul.f32 %v2924, %v2705
        %v2930 = vmul.f32 %v2924, %v2706
        %v2937 = vrot.slane %v2925, 2
        %v2938 = vrot.slane %v2927, 2
        %v2939 = vsel %vm2137, %v2937, %v2938
        %v2940 = vrot.slane %v2926, 2
        %v2941 = vrot.slane %v2928, 2
        %v2942 = vsel %vm2137, %v2940, %v2941
        %v2943 = vrot.slane %v2929, 2
        %v2944 = vsel %vm2137, %v2938, %v2943
        %v2945 = vrot.slane %v2930, 2
        %v2946 = vsel %vm2137, %v2941, %v2945
        %v2951 = vadd.f32 %v2858, %v2939
        %v2952 = vadd.f32 %v2859, %v2942
        %v2953 = vadd.f32 %v2860, %v2944
        %v2954 = vadd.f32 %v2861, %v2946
        %v2955 = vstv %s958
        %v2956 = vmul.f32 %v2955, %v2703
        %v2957 = vmul.f32 %v2955, %v2704
        %v2958 = vmul.f32 %v2955, %v1155
        %v2959 = vmul.f32 %v2955, %v1156
        %v2960 = vmul.f32 %v2955, %v2705
        %v2961 = vmul.f32 %v2955, %v2706
        %v2968 = vrot.slane %v2956, 2
        %v2969 = vrot.slane %v2958, 2
        %v2970 = vsel %vm2137, %v2968, %v2969
        %v2971 = vrot.slane %v2957, 2
        %v2972 = vrot.slane %v2959, 2
        %v2973 = vsel %vm2137, %v2971, %v2972
        %v2974 = vrot.slane %v2960, 2
        %v2975 = vsel %vm2137, %v2969, %v2974
        %v2976 = vrot.slane %v2961, 2
        %v2977 = vsel %vm2137, %v2972, %v2976
        %v2982 = vadd.f32 %v2889, %v2970
        %v2983 = vadd.f32 %v2890, %v2973
        %v2984 = vadd.f32 %v2891, %v2975
        %v2985 = vadd.f32 %v2892, %v2977
        %s2986 = sld [smem:[#allocation8]]
        %v2987 = vstv %s2986
        %v2988 = vadd.f32 %v2920, %v2987
        %v2989 = vadd.f32 %v2921, %v2987
        %v2990 = vadd.f32 %v2922, %v2987
        %v2991 = vadd.f32 %v2923, %v2987
        %s2992 = sld [smem:[#allocation8 + $0x1]]
        %v2993 = vstv %s2992
        %v2994 = vadd.f32 %v2951, %v2993
        %v2995 = vadd.f32 %v2952, %v2993
        %v2996 = vadd.f32 %v2953, %v2993
        %v2997 = vadd.f32 %v2954, %v2993
        %s2998 = sld [smem:[#allocation8 + $0x2]]
        %v2999 = vstv %s2998
        %v3000 = vadd.f32 %v2982, %v2999
        %v3001 = vadd.f32 %v2983, %v2999
        %v3002 = vadd.f32 %v2984, %v2999
        %v3003 = vadd.f32 %v2985, %v2999
        %vm3004 = vcmask 130048
        %v3006 = vsel %vm3004, %v2988, 0
        %v3009 = vsel %vm3004, %v2990, 0
        %v3012 = vsel %vm3004, %v2994, 0
        %v3015 = vsel %vm3004, %v2996, 0
        %3017 = vmatprep.subr.mxu0 0.0
        %3018 = vmatpush1.xpose.msra.mxu0 0.0
        %3019 = vmatprep.subr.mxu0 0.0
        %3020 = vmatpush1.xpose.msra.mxu0 0.0
        %3021 = vmatprep.subr.mxu0 0.0
        %3022 = vmatpush1.xpose.msra.mxu0 0.0
        %3023 = vmatprep.subr.mxu0 0.0
        %3024 = vmatpush1.xpose.msra.mxu0 0.0
        %3025 = vmatprep.subr.mxu0 0.0
        %3026 = vmatpush1.xpose.msra.mxu0 0.0
        %3027 = vmatprep.subr.mxu0 0.0
        %3028 = vmatpush1.xpose.msra.mxu0 0.0
        %3029 = vmatprep.subr.mxu0 0.0
        %3030 = vmatpush1.xpose.msra.mxu0 0.0
        %3031 = vmatprep.subr.mxu0 0.0
        %3032 = vmatpush1.xpose.msra.mxu0 0.0
        %3033 = vmatprep.subr.mxu0 0.0
        %3034 = vmatpush1.xpose.msra.mxu0 0.0
        %3035 = vmatprep.subr.mxu0 0.0
        %3036 = vmatpush1.xpose.msra.mxu0 0.0
        %3037 = vmatprep.subr.mxu0 0.0
        %3038 = vmatpush1.xpose.msra.mxu0 0.0
        %3039 = vmatprep.subr.mxu0 0.0
        %3040 = vmatpush1.xpose.msra.mxu0 0.0
        %3041 = vmatprep.subr.mxu0 0.0
        %3042 = vmatpush1.xpose.msra.mxu0 0.0
        %3043 = vmatprep.subr.mxu0 0.0
        %3044 = vmatpush1.xpose.msra.mxu0 0.0
        %3045 = vmatprep.subr.mxu0 0.0
        %3046 = vmatpush1.xpose.msra.mxu0 %v3015
        %3047 = vmatprep.subr.mxu0 0.0
        %3048 = vmatpush1.xpose.msra.mxu0 %v3012
        %3049 = vmatprep.subr.mxu0 0.0
        %3050 = vmatpush2.xpose.msra.mxu0 0.0
        %3051 = vmatprep.subr.mxu0 0.0
        %3052 = vmatpush2.xpose.msra.mxu0 0.0
        %3053 = vmatprep.subr.mxu0 0.0
        %3054 = vmatpush2.xpose.msra.mxu0 0.0
        %3055 = vmatprep.subr.mxu0 0.0
        %3056 = vmatpush2.xpose.msra.mxu0 0.0
        %3057 = vmatprep.subr.mxu0 0.0
        %3058 = vmatpush2.xpose.msra.mxu0 0.0
        %3059 = vmatprep.subr.mxu0 0.0
        %3060 = vmatpush2.xpose.msra.mxu0 0.0
        %3061 = vmatprep.subr.mxu0 0.0
        %3062 = vmatpush2.xpose.msra.mxu0 0.0
        %3063 = vmatprep.subr.mxu0 0.0
        %3064 = vmatpush2.xpose.msra.mxu0 0.0
        %3065 = vmatprep.subr.mxu0 0.0
        %3066 = vmatpush2.xpose.msra.mxu0 0.0
        %3067 = vmatprep.subr.mxu0 0.0
        %3068 = vmatpush2.xpose.msra.mxu0 0.0
        %3069 = vmatprep.subr.mxu0 0.0
        %3070 = vmatpush2.xpose.msra.mxu0 0.0
        %3071 = vmatprep.subr.mxu0 0.0
        %3072 = vmatpush2.xpose.msra.mxu0 0.0
        %3073 = vmatprep.subr.mxu0 0.0
        %3074 = vmatpush2.xpose.msra.mxu0 0.0
        %3075 = vmatprep.subr.mxu0 0.0
        %3076 = vmatpush2.xpose.msra.mxu0 0.0
        %3077 = vmatprep.subr.mxu0 0.0
        %3078 = vmatpush2.xpose.msra.mxu0 0.0
        %3079 = vmatprep.subr.mxu0 0.0
        %3080 = vmatpush2.xpose.msra.mxu0 0.0
        %3081 = vmatprep.mubr.f32.mxu0 0.0
        %3082 = vmatmul.mubr.f32.gmra.mxu0 %v3006
        %v3083 = vpop.f32.mrf.mxu0
        %v3084 = vadd.f32 0.0, %v3083
        %v3085 = vpop.f32.mrf.mxu0
        %3086 = vmatprep.mubr.f32.mxu0 0.0
        %3087 = vmatmul.mubr.f32.gmra.mxu0 %v3009
        %v3088 = vpop.f32.mrf.mxu0
        %v3089 = vadd.f32 0.0, %v3088
        %v3090 = vpop.f32.mrf.mxu0
        %3091 = vdwg.mxu0
        %v3092 = vsel %vm3004, %v3084, -inf
        %3093 = vmax.xlane.f32.xlu0 %v3092
        %v3094 = vpop.xlane.xlu0 %3093
        %v3095 = vsel %vm3004, %v3089, -inf
        %3096 = vmax.xlane.f32.xlu0 %v3095
        %v3097 = vpop.xlane.xlu0 %3096
        %v3098 = vsub.f32 %v3084, %v3094
        %v3099 = vsub.f32 %v3089, %v3097
        %v3100 = vmul.f32 %v3098, 1.442695
        %v3101 = vpow.pop %v3100
        %v3102 = vmul.f32 %v3099, 1.442695
        %v3103 = vpow.pop %v3102
        %v3104 = vsel %vm3004, %v3101, 0.0
        %3105 = vadd.xlane.f32.xlu0 %v3104
        %v3106 = vpop.xlane.xlu0 %3105
        %v3107 = vsel %vm3004, %v3103, 0.0
        %3108 = vadd.xlane.f32.xlu0 %v3107
        %v3109 = vpop.xlane.xlu0 %3108
        %v3110 = vrcp.pop %v3106
        %v3111 = vrcp.pop %v3109
        %v3112 = vmul.f32 %v3101, %v3110
        %v3113 = vmul.f32 %v3103, %v3111
        %v3115 = vsel %vm3004, %v3112, 0
        %v3118 = vsel %vm3004, %v3113, 0
        %3120 = vmatprep.subr.mxu0 0.0
        %3121 = vmatpush1.msra.mxu0 0.0
        %3122 = vmatprep.subr.mxu0 0.0
        %3123 = vmatpush1.msra.mxu0 0.0
        %3124 = vmatprep.subr.mxu0 0.0
        %3125 = vmatpush1.msra.mxu0 0.0
        %3126 = vmatprep.subr.mxu0 0.0
        %3127 = vmatpush1.msra.mxu0 0.0
        %3128 = vmatprep.subr.mxu0 0.0
        %3129 = vmatpush1.msra.mxu0 0.0
        %3130 = vmatprep.subr.mxu0 0.0
        %3131 = vmatpush1.msra.mxu0 0.0
        %3132 = vmatprep.subr.mxu0 0.0
        %3133 = vmatpush1.msra.mxu0 0.0
        %3134 = vmatprep.subr.mxu0 0.0
        %3135 = vmatpush1.msra.mxu0 0.0
        %3136 = vmatprep.subr.mxu0 0.0
        %3137 = vmatpush1.msra.mxu0 0.0
        %3138 = vmatprep.subr.mxu0 0.0
        %3139 = vmatpush1.msra.mxu0 0.0
        %3140 = vmatprep.subr.mxu0 0.0
        %3141 = vmatpush1.msra.mxu0 0.0
        %3142 = vmatprep.subr.mxu0 0.0
        %3143 = vmatpush1.msra.mxu0 0.0
        %3144 = vmatprep.subr.mxu0 0.0
        %3145 = vmatpush1.msra.mxu0 0.0
        %3146 = vmatprep.subr.mxu0 0.0
        %3147 = vmatpush1.msra.mxu0 0.0
        %3148 = vmatprep.subr.mxu0 0.0
        %3149 = vmatpush1.msra.mxu0 %v3002
        %3150 = vmatprep.subr.mxu0 0.0
        %3151 = vmatpush1.msra.mxu0 %v3000
        %3152 = vmatprep.subr.mxu0 0.0
        %3153 = vmatpush2.msra.mxu0 0.0
        %3154 = vmatprep.subr.mxu0 0.0
        %3155 = vmatpush2.msra.mxu0 0.0
        %3156 = vmatprep.subr.mxu0 0.0
        %3157 = vmatpush2.msra.mxu0 0.0
        %3158 = vmatprep.subr.mxu0 0.0
        %3159 = vmatpush2.msra.mxu0 0.0
        %3160 = vmatprep.subr.mxu0 0.0
        %3161 = vmatpush2.msra.mxu0 0.0
        %3162 = vmatprep.subr.mxu0 0.0
        %3163 = vmatpush2.msra.mxu0 0.0
        %3164 = vmatprep.subr.mxu0 0.0
        %3165 = vmatpush2.msra.mxu0 0.0
        %3166 = vmatprep.subr.mxu0 0.0
        %3167 = vmatpush2.msra.mxu0 0.0
        %3168 = vmatprep.subr.mxu0 0.0
        %3169 = vmatpush2.msra.mxu0 0.0
        %3170 = vmatprep.subr.mxu0 0.0
        %3171 = vmatpush2.msra.mxu0 0.0
        %3172 = vmatprep.subr.mxu0 0.0
        %3173 = vmatpush2.msra.mxu0 0.0
        %3174 = vmatprep.subr.mxu0 0.0
        %3175 = vmatpush2.msra.mxu0 0.0
        %3176 = vmatprep.subr.mxu0 0.0
        %3177 = vmatpush2.msra.mxu0 0.0
        %3178 = vmatprep.subr.mxu0 0.0
        %3179 = vmatpush2.msra.mxu0 0.0
        %3180 = vmatprep.subr.mxu0 0.0
        %3181 = vmatpush2.msra.mxu0 0.0
        %3182 = vmatprep.subr.mxu0 0.0
        %3183 = vmatpush2.msra.mxu0 0.0
        %3184 = vmatprep.mubr.f32.mxu0 0.0
        %3185 = vmatmul.mubr.f32.gmra.mxu0 %v3115
        %v3186 = vpop.f32.mrf.mxu0
        %v3187 = vadd.f32 0.0, %v3186
        %v3188 = vpop.f32.mrf.mxu0
        %3189 = vmatprep.mubr.f32.mxu0 0.0
        %3190 = vmatmul.mubr.f32.gmra.mxu0 %v3118
        %v3191 = vpop.f32.mrf.mxu0
        %v3192 = vadd.f32 0.0, %v3191
        %v3193 = vpop.f32.mrf.mxu0
        %3194 = vdwg.mxu0
        %3195 = vrot.lane.b32.xlu0 %v2988, 96
        %v3196 = vpop.permute.xlu0 %3195
        %3197 = vrot.lane.b32.xlu0 %v2990, 96
        %v3198 = vpop.permute.xlu0 %3197
        %3199 = vrot.lane.b32.xlu0 %v2994, 96
        %v3200 = vpop.permute.xlu0 %3199
        %3201 = vrot.lane.b32.xlu0 %v2996, 96
        %v3202 = vpop.permute.xlu0 %3201
        %v3203 = vsel %vm3004, %v3196, 0
        %v3205 = vsel %vm3004, %v3198, 0
        %v3207 = vsel %vm3004, %v3200, 0
        %v3209 = vsel %vm3004, %v3202, 0
        %3211 = vmatprep.subr.mxu0 0.0
        %3212 = vmatpush1.xpose.msra.mxu0 0.0
        %3213 = vmatprep.subr.mxu0 0.0
        %3214 = vmatpush1.xpose.msra.mxu0 0.0
        %3215 = vmatprep.subr.mxu0 0.0
        %3216 = vmatpush1.xpose.msra.mxu0 0.0
        %3217 = vmatprep.subr.mxu0 0.0
        %3218 = vmatpush1.xpose.msra.mxu0 0.0
        %3219 = vmatprep.subr.mxu0 0.0
        %3220 = vmatpush1.xpose.msra.mxu0 0.0
        %3221 = vmatprep.subr.mxu0 0.0
        %3222 = vmatpush1.xpose.msra.mxu0 0.0
        %3223 = vmatprep.subr.mxu0 0.0
        %3224 = vmatpush1.xpose.msra.mxu0 0.0
        %3225 = vmatprep.subr.mxu0 0.0
        %3226 = vmatpush1.xpose.msra.mxu0 0.0
        %3227 = vmatprep.subr.mxu0 0.0
        %3228 = vmatpush1.xpose.msra.mxu0 0.0
        %3229 = vmatprep.subr.mxu0 0.0
        %3230 = vmatpush1.xpose.msra.mxu0 0.0
        %3231 = vmatprep.subr.mxu0 0.0
        %3232 = vmatpush1.xpose.msra.mxu0 0.0
        %3233 = vmatprep.subr.mxu0 0.0
        %3234 = vmatpush1.xpose.msra.mxu0 0.0
        %3235 = vmatprep.subr.mxu0 0.0
        %3236 = vmatpush1.xpose.msra.mxu0 0.0
        %3237 = vmatprep.subr.mxu0 0.0
        %3238 = vmatpush1.xpose.msra.mxu0 0.0
        %3239 = vmatprep.subr.mxu0 0.0
        %3240 = vmatpush1.xpose.msra.mxu0 %v3209
        %3241 = vmatprep.subr.mxu0 0.0
        %3242 = vmatpush1.xpose.msra.mxu0 %v3207
        %3243 = vmatprep.subr.mxu0 0.0
        %3244 = vmatpush2.xpose.msra.mxu0 0.0
        %3245 = vmatprep.subr.mxu0 0.0
        %3246 = vmatpush2.xpose.msra.mxu0 0.0
        %3247 = vmatprep.subr.mxu0 0.0
        %3248 = vmatpush2.xpose.msra.mxu0 0.0
        %3249 = vmatprep.subr.mxu0 0.0
        %3250 = vmatpush2.xpose.msra.mxu0 0.0
        %3251 = vmatprep.subr.mxu0 0.0
        %3252 = vmatpush2.xpose.msra.mxu0 0.0
        %3253 = vmatprep.subr.mxu0 0.0
        %3254 = vmatpush2.xpose.msra.mxu0 0.0
        %3255 = vmatprep.subr.mxu0 0.0
        %3256 = vmatpush2.xpose.msra.mxu0 0.0
        %3257 = vmatprep.subr.mxu0 0.0
        %3258 = vmatpush2.xpose.msra.mxu0 0.0
        %3259 = vmatprep.subr.mxu0 0.0
        %3260 = vmatpush2.xpose.msra.mxu0 0.0
        %3261 = vmatprep.subr.mxu0 0.0
        %3262 = vmatpush2.xpose.msra.mxu0 0.0
        %3263 = vmatprep.subr.mxu0 0.0
        %3264 = vmatpush2.xpose.msra.mxu0 0.0
        %3265 = vmatprep.subr.mxu0 0.0
        %3266 = vmatpush2.xpose.msra.mxu0 0.0
        %3267 = vmatprep.subr.mxu0 0.0
        %3268 = vmatpush2.xpose.msra.mxu0 0.0
        %3269 = vmatprep.subr.mxu0 0.0
        %3270 = vmatpush2.xpose.msra.mxu0 0.0
        %3271 = vmatprep.subr.mxu0 0.0
        %3272 = vmatpush2.xpose.msra.mxu0 0.0
        %3273 = vmatprep.subr.mxu0 0.0
        %3274 = vmatpush2.xpose.msra.mxu0 0.0
        %3275 = vmatprep.mubr.f32.mxu0 0.0
        %3276 = vmatmul.mubr.f32.gmra.mxu0 %v3203
        %v3277 = vpop.f32.mrf.mxu0
        %v3278 = vadd.f32 0.0, %v3277
        %v3279 = vpop.f32.mrf.mxu0
        %3280 = vmatprep.mubr.f32.mxu0 0.0
        %3281 = vmatmul.mubr.f32.gmra.mxu0 %v3205
        %v3282 = vpop.f32.mrf.mxu0
        %v3283 = vadd.f32 0.0, %v3282
        %v3284 = vpop.f32.mrf.mxu0
        %3285 = vdwg.mxu0
        %v3286 = vsel %vm3004, %v3278, -inf
        %3287 = vmax.xlane.f32.xlu0 %v3286
        %v3288 = vpop.xlane.xlu0 %3287
        %v3289 = vsel %vm3004, %v3283, -inf
        %3290 = vmax.xlane.f32.xlu0 %v3289
        %v3291 = vpop.xlane.xlu0 %3290
        %v3292 = vsub.f32 %v3278, %v3288
        %v3293 = vsub.f32 %v3283, %v3291
        %v3294 = vmul.f32 %v3292, 1.442695
        %v3295 = vpow.pop %v3294
        %v3296 = vmul.f32 %v3293, 1.442695
        %v3297 = vpow.pop %v3296
        %v3298 = vsel %vm3004, %v3295, 0.0
        %3299 = vadd.xlane.f32.xlu0 %v3298
        %v3300 = vpop.xlane.xlu0 %3299
        %v3301 = vsel %vm3004, %v3297, 0.0
        %3302 = vadd.xlane.f32.xlu0 %v3301
        %v3303 = vpop.xlane.xlu0 %3302
        %v3304 = vrcp.pop %v3300
        %v3305 = vrcp.pop %v3303
        %v3306 = vmul.f32 %v3295, %v3304
        %v3307 = vmul.f32 %v3297, %v3305
        %3310 = vrot.lane.b32.xlu0 %v3000, 96
        %v3311 = vpop.permute.xlu0 %3310
        %3312 = vrot.lane.b32.xlu0 %v3002, 96
        %v3313 = vpop.permute.xlu0 %3312
        %v3317 = vsel %vm3004, %v3306, 0
        %v3320 = vsel %vm3004, %v3307, 0
        %3322 = vmatprep.subr.mxu0 0.0
        %3323 = vmatpush1.msra.mxu0 0.0
        %3324 = vmatprep.subr.mxu0 0.0
        %3325 = vmatpush1.msra.mxu0 0.0
        %3326 = vmatprep.subr.mxu0 0.0
        %3327 = vmatpush1.msra.mxu0 0.0
        %3328 = vmatprep.subr.mxu0 0.0
        %3329 = vmatpush1.msra.mxu0 0.0
        %3330 = vmatprep.subr.mxu0 0.0
        %3331 = vmatpush1.msra.mxu0 0.0
        %3332 = vmatprep.subr.mxu0 0.0
        %3333 = vmatpush1.msra.mxu0 0.0
        %3334 = vmatprep.subr.mxu0 0.0
        %3335 = vmatpush1.msra.mxu0 0.0
        %3336 = vmatprep.subr.mxu0 0.0
        %3337 = vmatpush1.msra.mxu0 0.0
        %3338 = vmatprep.subr.mxu0 0.0
        %3339 = vmatpush1.msra.mxu0 0.0
        %3340 = vmatprep.subr.mxu0 0.0
        %3341 = vmatpush1.msra.mxu0 0.0
        %3342 = vmatprep.subr.mxu0 0.0
        %3343 = vmatpush1.msra.mxu0 0.0
        %3344 = vmatprep.subr.mxu0 0.0
        %3345 = vmatpush1.msra.mxu0 0.0
        %3346 = vmatprep.subr.mxu0 0.0
        %3347 = vmatpush1.msra.mxu0 0.0
        %3348 = vmatprep.subr.mxu0 0.0
        %3349 = vmatpush1.msra.mxu0 0.0
        %3350 = vmatprep.subr.mxu0 0.0
        %3351 = vmatpush1.msra.mxu0 %v3313
        %3352 = vmatprep.subr.mxu0 0.0
        %3353 = vmatpush1.msra.mxu0 %v3311
        %3354 = vmatprep.subr.mxu0 0.0
        %3355 = vmatpush2.msra.mxu0 0.0
        %3356 = vmatprep.subr.mxu0 0.0
        %3357 = vmatpush2.msra.mxu0 0.0
        %3358 = vmatprep.subr.mxu0 0.0
        %3359 = vmatpush2.msra.mxu0 0.0
        %3360 = vmatprep.subr.mxu0 0.0
        %3361 = vmatpush2.msra.mxu0 0.0
        %3362 = vmatprep.subr.mxu0 0.0
        %3363 = vmatpush2.msra.mxu0 0.0
        %3364 = vmatprep.subr.mxu0 0.0
        %3365 = vmatpush2.msra.mxu0 0.0
        %3366 = vmatprep.subr.mxu0 0.0
        %3367 = vmatpush2.msra.mxu0 0.0
        %3368 = vmatprep.subr.mxu0 0.0
        %3369 = vmatpush2.msra.mxu0 0.0
        %3370 = vmatprep.subr.mxu0 0.0
        %3371 = vmatpush2.msra.mxu0 0.0
        %3372 = vmatprep.subr.mxu0 0.0
        %3373 = vmatpush2.msra.mxu0 0.0
        %3374 = vmatprep.subr.mxu0 0.0
        %3375 = vmatpush2.msra.mxu0 0.0
        %3376 = vmatprep.subr.mxu0 0.0
        %3377 = vmatpush2.msra.mxu0 0.0
        %3378 = vmatprep.subr.mxu0 0.0
        %3379 = vmatpush2.msra.mxu0 0.0
        %3380 = vmatprep.subr.mxu0 0.0
        %3381 = vmatpush2.msra.mxu0 0.0
        %3382 = vmatprep.subr.mxu0 0.0
        %3383 = vmatpush2.msra.mxu0 0.0
        %3384 = vmatprep.subr.mxu0 0.0
        %3385 = vmatpush2.msra.mxu0 0.0
        %3386 = vmatprep.mubr.f32.mxu0 0.0
        %3387 = vmatmul.mubr.f32.gmra.mxu0 %v3317
        %v3388 = vpop.f32.mrf.mxu0
        %v3389 = vadd.f32 0.0, %v3388
        %v3390 = vpop.f32.mrf.mxu0
        %3391 = vmatprep.mubr.f32.mxu0 0.0
        %3392 = vmatmul.mubr.f32.gmra.mxu0 %v3320
        %v3393 = vpop.f32.mrf.mxu0
        %v3394 = vadd.f32 0.0, %v3393
        %v3395 = vpop.f32.mrf.mxu0
        %3396 = vdwg.mxu0
        %3397 = vrot.lane.b32.xlu0 %v2988, 64
        %v3398 = vpop.permute.xlu0 %3397
        %3399 = vrot.lane.b32.xlu0 %v2990, 64
        %v3400 = vpop.permute.xlu0 %3399
        %3401 = vrot.lane.b32.xlu0 %v2994, 64
        %v3402 = vpop.permute.xlu0 %3401
        %3403 = vrot.lane.b32.xlu0 %v2996, 64
        %v3404 = vpop.permute.xlu0 %3403
        %v3405 = vsel %vm3004, %v3398, 0
        %v3407 = vsel %vm3004, %v3400, 0
        %v3409 = vsel %vm3004, %v3402, 0
        %v3411 = vsel %vm3004, %v3404, 0
        %3413 = vmatprep.subr.mxu0 0.0
        %3414 = vmatpush1.xpose.msra.mxu0 0.0
        %3415 = vmatprep.subr.mxu0 0.0
        %3416 = vmatpush1.xpose.msra.mxu0 0.0
        %3417 = vmatprep.subr.mxu0 0.0
        %3418 = vmatpush1.xpose.msra.mxu0 0.0
        %3419 = vmatprep.subr.mxu0 0.0
        %3420 = vmatpush1.xpose.msra.mxu0 0.0
        %3421 = vmatprep.subr.mxu0 0.0
        %3422 = vmatpush1.xpose.msra.mxu0 0.0
        %3423 = vmatprep.subr.mxu0 0.0
        %3424 = vmatpush1.xpose.msra.mxu0 0.0
        %3425 = vmatprep.subr.mxu0 0.0
        %3426 = vmatpush1.xpose.msra.mxu0 0.0
        %3427 = vmatprep.subr.mxu0 0.0
        %3428 = vmatpush1.xpose.msra.mxu0 0.0
        %3429 = vmatprep.subr.mxu0 0.0
        %3430 = vmatpush1.xpose.msra.mxu0 0.0
        %3431 = vmatprep.subr.mxu0 0.0
        %3432 = vmatpush1.xpose.msra.mxu0 0.0
        %3433 = vmatprep.subr.mxu0 0.0
        %3434 = vmatpush1.xpose.msra.mxu0 0.0
        %3435 = vmatprep.subr.mxu0 0.0
        %3436 = vmatpush1.xpose.msra.mxu0 0.0
        %3437 = vmatprep.subr.mxu0 0.0
        %3438 = vmatpush1.xpose.msra.mxu0 0.0
        %3439 = vmatprep.subr.mxu0 0.0
        %3440 = vmatpush1.xpose.msra.mxu0 0.0
        %3441 = vmatprep.subr.mxu0 0.0
        %3442 = vmatpush1.xpose.msra.mxu0 %v3411
        %3443 = vmatprep.subr.mxu0 0.0
        %3444 = vmatpush1.xpose.msra.mxu0 %v3409
        %3445 = vmatprep.subr.mxu0 0.0
        %3446 = vmatpush2.xpose.msra.mxu0 0.0
        %3447 = vmatprep.subr.mxu0 0.0
        %3448 = vmatpush2.xpose.msra.mxu0 0.0
        %3449 = vmatprep.subr.mxu0 0.0
        %3450 = vmatpush2.xpose.msra.mxu0 0.0
        %3451 = vmatprep.subr.mxu0 0.0
        %3452 = vmatpush2.xpose.msra.mxu0 0.0
        %3453 = vmatprep.subr.mxu0 0.0
        %3454 = vmatpush2.xpose.msra.mxu0 0.0
        %3455 = vmatprep.subr.mxu0 0.0
        %3456 = vmatpush2.xpose.msra.mxu0 0.0
        %3457 = vmatprep.subr.mxu0 0.0
        %3458 = vmatpush2.xpose.msra.mxu0 0.0
        %3459 = vmatprep.subr.mxu0 0.0
        %3460 = vmatpush2.xpose.msra.mxu0 0.0
        %3461 = vmatprep.subr.mxu0 0.0
        %3462 = vmatpush2.xpose.msra.mxu0 0.0
        %3463 = vmatprep.subr.mxu0 0.0
        %3464 = vmatpush2.xpose.msra.mxu0 0.0
        %3465 = vmatprep.subr.mxu0 0.0
        %3466 = vmatpush2.xpose.msra.mxu0 0.0
        %3467 = vmatprep.subr.mxu0 0.0
        %3468 = vmatpush2.xpose.msra.mxu0 0.0
        %3469 = vmatprep.subr.mxu0 0.0
        %3470 = vmatpush2.xpose.msra.mxu0 0.0
        %3471 = vmatprep.subr.mxu0 0.0
        %3472 = vmatpush2.xpose.msra.mxu0 0.0
        %3473 = vmatprep.subr.mxu0 0.0
        %3474 = vmatpush2.xpose.msra.mxu0 0.0
        %3475 = vmatprep.subr.mxu0 0.0
        %3476 = vmatpush2.xpose.msra.mxu0 0.0
        %3477 = vmatprep.mubr.f32.mxu0 0.0
        %3478 = vmatmul.mubr.f32.gmra.mxu0 %v3405
        %v3479 = vpop.f32.mrf.mxu0
        %v3480 = vadd.f32 0.0, %v3479
        %v3481 = vpop.f32.mrf.mxu0
        %3482 = vmatprep.mubr.f32.mxu0 0.0
        %3483 = vmatmul.mubr.f32.gmra.mxu0 %v3407
        %v3484 = vpop.f32.mrf.mxu0
        %v3485 = vadd.f32 0.0, %v3484
        %v3486 = vpop.f32.mrf.mxu0
        %3487 = vdwg.mxu0
        %v3488 = vsel %vm3004, %v3480, -inf
        %3489 = vmax.xlane.f32.xlu0 %v3488
        %v3490 = vpop.xlane.xlu0 %3489
        %v3491 = vsel %vm3004, %v3485, -inf
        %3492 = vmax.xlane.f32.xlu0 %v3491
        %v3493 = vpop.xlane.xlu0 %3492
        %v3494 = vsub.f32 %v3480, %v3490
        %v3495 = vsub.f32 %v3485, %v3493
        %v3496 = vmul.f32 %v3494, 1.442695
        %v3497 = vpow.pop %v3496
        %v3498 = vmul.f32 %v3495, 1.442695
        %v3499 = vpow.pop %v3498
        %v3500 = vsel %vm3004, %v3497, 0.0
        %3501 = vadd.xlane.f32.xlu0 %v3500
        %v3502 = vpop.xlane.xlu0 %3501
        %v3503 = vsel %vm3004, %v3499, 0.0
        %3504 = vadd.xlane.f32.xlu0 %v3503
        %v3505 = vpop.xlane.xlu0 %3504
        %v3506 = vrcp.pop %v3502
        %v3507 = vrcp.pop %v3505
        %v3508 = vmul.f32 %v3497, %v3506
        %v3509 = vmul.f32 %v3499, %v3507
        %3510 = vrot.lane.b32.xlu0 %v3000, 64
        %v3511 = vpop.permute.xlu0 %3510
        %3512 = vrot.lane.b32.xlu0 %v3002, 64
        %v3513 = vpop.permute.xlu0 %3512
        %v3517 = vsel %vm3004, %v3508, 0
        %v3520 = vsel %vm3004, %v3509, 0
        %3522 = vmatprep.subr.mxu0 0.0
        %3523 = vmatpush1.msra.mxu0 0.0
        %3524 = vmatprep.subr.mxu0 0.0
        %3525 = vmatpush1.msra.mxu0 0.0
        %3526 = vmatprep.subr.mxu0 0.0
        %3527 = vmatpush1.msra.mxu0 0.0
        %3528 = vmatprep.subr.mxu0 0.0
        %3529 = vmatpush1.msra.mxu0 0.0
        %3530 = vmatprep.subr.mxu0 0.0
        %3531 = vmatpush1.msra.mxu0 0.0
        %3532 = vmatprep.subr.mxu0 0.0
        %3533 = vmatpush1.msra.mxu0 0.0
        %3534 = vmatprep.subr.mxu0 0.0
        %3535 = vmatpush1.msra.mxu0 0.0
        %3536 = vmatprep.subr.mxu0 0.0
        %3537 = vmatpush1.msra.mxu0 0.0
        %3538 = vmatprep.subr.mxu0 0.0
        %3539 = vmatpush1.msra.mxu0 0.0
        %3540 = vmatprep.subr.mxu0 0.0
        %3541 = vmatpush1.msra.mxu0 0.0
        %3542 = vmatprep.subr.mxu0 0.0
        %3543 = vmatpush1.msra.mxu0 0.0
        %3544 = vmatprep.subr.mxu0 0.0
        %3545 = vmatpush1.msra.mxu0 0.0
        %3546 = vmatprep.subr.mxu0 0.0
        %3547 = vmatpush1.msra.mxu0 0.0
        %3548 = vmatprep.subr.mxu0 0.0
        %3549 = vmatpush1.msra.mxu0 0.0
        %3550 = vmatprep.subr.mxu0 0.0
        %3551 = vmatpush1.msra.mxu0 %v3513
        %3552 = vmatprep.subr.mxu0 0.0
        %3553 = vmatpush1.msra.mxu0 %v3511
        %3554 = vmatprep.subr.mxu0 0.0
        %3555 = vmatpush2.msra.mxu0 0.0
        %3556 = vmatprep.subr.mxu0 0.0
        %3557 = vmatpush2.msra.mxu0 0.0
        %3558 = vmatprep.subr.mxu0 0.0
        %3559 = vmatpush2.msra.mxu0 0.0
        %3560 = vmatprep.subr.mxu0 0.0
        %3561 = vmatpush2.msra.mxu0 0.0
        %3562 = vmatprep.subr.mxu0 0.0
        %3563 = vmatpush2.msra.mxu0 0.0
        %3564 = vmatprep.subr.mxu0 0.0
        %3565 = vmatpush2.msra.mxu0 0.0
        %3566 = vmatprep.subr.mxu0 0.0
        %3567 = vmatpush2.msra.mxu0 0.0
        %3568 = vmatprep.subr.mxu0 0.0
        %3569 = vmatpush2.msra.mxu0 0.0
        %3570 = vmatprep.subr.mxu0 0.0
        %3571 = vmatpush2.msra.mxu0 0.0
        %3572 = vmatprep.subr.mxu0 0.0
        %3573 = vmatpush2.msra.mxu0 0.0
        %3574 = vmatprep.subr.mxu0 0.0
        %3575 = vmatpush2.msra.mxu0 0.0
        %3576 = vmatprep.subr.mxu0 0.0
        %3577 = vmatpush2.msra.mxu0 0.0
        %3578 = vmatprep.subr.mxu0 0.0
        %3579 = vmatpush2.msra.mxu0 0.0
        %3580 = vmatprep.subr.mxu0 0.0
        %3581 = vmatpush2.msra.mxu0 0.0
        %3582 = vmatprep.subr.mxu0 0.0
        %3583 = vmatpush2.msra.mxu0 0.0
        %3584 = vmatprep.subr.mxu0 0.0
        %3585 = vmatpush2.msra.mxu0 0.0
        %3586 = vmatprep.mubr.f32.mxu0 0.0
        %3587 = vmatmul.mubr.f32.gmra.mxu0 %v3517
        %v3588 = vpop.f32.mrf.mxu0
        %v3589 = vadd.f32 0.0, %v3588
        %v3590 = vpop.f32.mrf.mxu0
        %3591 = vmatprep.mubr.f32.mxu0 0.0
        %3592 = vmatmul.mubr.f32.gmra.mxu0 %v3520
        %v3593 = vpop.f32.mrf.mxu0
        %v3594 = vadd.f32 0.0, %v3593
        %v3595 = vpop.f32.mrf.mxu0
        %3596 = vdwg.mxu0
        %3597 = vrot.lane.b32.xlu0 %v2988, 32
        %v3598 = vpop.permute.xlu0 %3597
        %3599 = vrot.lane.b32.xlu0 %v2990, 32
        %v3600 = vpop.permute.xlu0 %3599
        %3601 = vrot.lane.b32.xlu0 %v2994, 32
        %v3602 = vpop.permute.xlu0 %3601
        %3603 = vrot.lane.b32.xlu0 %v2996, 32
        %v3604 = vpop.permute.xlu0 %3603
        %v3605 = vsel %vm3004, %v3598, 0
        %v3607 = vsel %vm3004, %v3600, 0
        %v3609 = vsel %vm3004, %v3602, 0
        %v3611 = vsel %vm3004, %v3604, 0
        %3613 = vmatprep.subr.mxu0 0.0
        %3614 = vmatpush1.xpose.msra.mxu0 0.0
        %3615 = vmatprep.subr.mxu0 0.0
        %3616 = vmatpush1.xpose.msra.mxu0 0.0
        %3617 = vmatprep.subr.mxu0 0.0
        %3618 = vmatpush1.xpose.msra.mxu0 0.0
        %3619 = vmatprep.subr.mxu0 0.0
        %3620 = vmatpush1.xpose.msra.mxu0 0.0
        %3621 = vmatprep.subr.mxu0 0.0
        %3622 = vmatpush1.xpose.msra.mxu0 0.0
        %3623 = vmatprep.subr.mxu0 0.0
        %3624 = vmatpush1.xpose.msra.mxu0 0.0
        %3625 = vmatprep.subr.mxu0 0.0
        %3626 = vmatpush1.xpose.msra.mxu0 0.0
        %3627 = vmatprep.subr.mxu0 0.0
        %3628 = vmatpush1.xpose.msra.mxu0 0.0
        %3629 = vmatprep.subr.mxu0 0.0
        %3630 = vmatpush1.xpose.msra.mxu0 0.0
        %3631 = vmatprep.subr.mxu0 0.0
        %3632 = vmatpush1.xpose.msra.mxu0 0.0
        %3633 = vmatprep.subr.mxu0 0.0
        %3634 = vmatpush1.xpose.msra.mxu0 0.0
        %3635 = vmatprep.subr.mxu0 0.0
        %3636 = vmatpush1.xpose.msra.mxu0 0.0
        %3637 = vmatprep.subr.mxu0 0.0
        %3638 = vmatpush1.xpose.msra.mxu0 0.0
        %3639 = vmatprep.subr.mxu0 0.0
        %3640 = vmatpush1.xpose.msra.mxu0 0.0
        %3641 = vmatprep.subr.mxu0 0.0
        %3642 = vmatpush1.xpose.msra.mxu0 %v3611
        %3643 = vmatprep.subr.mxu0 0.0
        %3644 = vmatpush1.xpose.msra.mxu0 %v3609
        %3645 = vmatprep.subr.mxu0 0.0
        %3646 = vmatpush2.xpose.msra.mxu0 0.0
        %3647 = vmatprep.subr.mxu0 0.0
        %3648 = vmatpush2.xpose.msra.mxu0 0.0
        %3649 = vmatprep.subr.mxu0 0.0
        %3650 = vmatpush2.xpose.msra.mxu0 0.0
        %3651 = vmatprep.subr.mxu0 0.0
        %3652 = vmatpush2.xpose.msra.mxu0 0.0
        %3653 = vmatprep.subr.mxu0 0.0
        %3654 = vmatpush2.xpose.msra.mxu0 0.0
        %3655 = vmatprep.subr.mxu0 0.0
        %3656 = vmatpush2.xpose.msra.mxu0 0.0
        %3657 = vmatprep.subr.mxu0 0.0
        %3658 = vmatpush2.xpose.msra.mxu0 0.0
        %3659 = vmatprep.subr.mxu0 0.0
        %3660 = vmatpush2.xpose.msra.mxu0 0.0
        %3661 = vmatprep.subr.mxu0 0.0
        %3662 = vmatpush2.xpose.msra.mxu0 0.0
        %3663 = vmatprep.subr.mxu0 0.0
        %3664 = vmatpush2.xpose.msra.mxu0 0.0
        %3665 = vmatprep.subr.mxu0 0.0
        %3666 = vmatpush2.xpose.msra.mxu0 0.0
        %3667 = vmatprep.subr.mxu0 0.0
        %3668 = vmatpush2.xpose.msra.mxu0 0.0
        %3669 = vmatprep.subr.mxu0 0.0
        %3670 = vmatpush2.xpose.msra.mxu0 0.0
        %3671 = vmatprep.subr.mxu0 0.0
        %3672 = vmatpush2.xpose.msra.mxu0 0.0
        %3673 = vmatprep.subr.mxu0 0.0
        %3674 = vmatpush2.xpose.msra.mxu0 0.0
        %3675 = vmatprep.subr.mxu0 0.0
        %3676 = vmatpush2.xpose.msra.mxu0 0.0
        %3677 = vmatprep.mubr.f32.mxu0 0.0
        %3678 = vmatmul.mubr.f32.gmra.mxu0 %v3605
        %v3679 = vpop.f32.mrf.mxu0
        %v3680 = vadd.f32 0.0, %v3679
        %v3681 = vpop.f32.mrf.mxu0
        %3682 = vmatprep.mubr.f32.mxu0 0.0
        %3683 = vmatmul.mubr.f32.gmra.mxu0 %v3607
        %v3684 = vpop.f32.mrf.mxu0
        %v3685 = vadd.f32 0.0, %v3684
        %v3686 = vpop.f32.mrf.mxu0
        %3687 = vdwg.mxu0
        %v3688 = vsel %vm3004, %v3680, -inf
        %3689 = vmax.xlane.f32.xlu0 %v3688
        %v3690 = vpop.xlane.xlu0 %3689
        %v3691 = vsel %vm3004, %v3685, -inf
        %3692 = vmax.xlane.f32.xlu0 %v3691
        %v3693 = vpop.xlane.xlu0 %3692
        %v3694 = vsub.f32 %v3680, %v3690
        %v3695 = vsub.f32 %v3685, %v3693
        %v3696 = vmul.f32 %v3694, 1.442695
        %v3697 = vpow.pop %v3696
        %v3698 = vmul.f32 %v3695, 1.442695
        %v3699 = vpow.pop %v3698
        %v3700 = vsel %vm3004, %v3697, 0.0
        %3701 = vadd.xlane.f32.xlu0 %v3700
        %v3702 = vpop.xlane.xlu0 %3701
        %v3703 = vsel %vm3004, %v3699, 0.0
        %3704 = vadd.xlane.f32.xlu0 %v3703
        %v3705 = vpop.xlane.xlu0 %3704
        %v3706 = vrcp.pop %v3702
        %v3707 = vrcp.pop %v3705
        %v3708 = vmul.f32 %v3697, %v3706
        %v3709 = vmul.f32 %v3699, %v3707
        %3710 = vrot.lane.b32.xlu0 %v3000, 32
        %v3711 = vpop.permute.xlu0 %3710
        %3712 = vrot.lane.b32.xlu0 %v3002, 32
        %v3713 = vpop.permute.xlu0 %3712
        %v3717 = vsel %vm3004, %v3708, 0
        %v3720 = vsel %vm3004, %v3709, 0
        %3722 = vmatprep.subr.mxu0 0.0
        %3723 = vmatpush1.msra.mxu0 0.0
        %3724 = vmatprep.subr.mxu0 0.0
        %3725 = vmatpush1.msra.mxu0 0.0
        %3726 = vmatprep.subr.mxu0 0.0
        %3727 = vmatpush1.msra.mxu0 0.0
        %3728 = vmatprep.subr.mxu0 0.0
        %3729 = vmatpush1.msra.mxu0 0.0
        %3730 = vmatprep.subr.mxu0 0.0
        %3731 = vmatpush1.msra.mxu0 0.0
        %3732 = vmatprep.subr.mxu0 0.0
        %3733 = vmatpush1.msra.mxu0 0.0
        %3734 = vmatprep.subr.mxu0 0.0
        %3735 = vmatpush1.msra.mxu0 0.0
        %3736 = vmatprep.subr.mxu0 0.0
        %3737 = vmatpush1.msra.mxu0 0.0
        %3738 = vmatprep.subr.mxu0 0.0
        %3739 = vmatpush1.msra.mxu0 0.0
        %3740 = vmatprep.subr.mxu0 0.0
        %3741 = vmatpush1.msra.mxu0 0.0
        %3742 = vmatprep.subr.mxu0 0.0
        %3743 = vmatpush1.msra.mxu0 0.0
        %3744 = vmatprep.subr.mxu0 0.0
        %3745 = vmatpush1.msra.mxu0 0.0
        %3746 = vmatprep.subr.mxu0 0.0
        %3747 = vmatpush1.msra.mxu0 0.0
        %3748 = vmatprep.subr.mxu0 0.0
        %3749 = vmatpush1.msra.mxu0 0.0
        %3750 = vmatprep.subr.mxu0 0.0
        %3751 = vmatpush1.msra.mxu0 %v3713
        %3752 = vmatprep.subr.mxu0 0.0
        %3753 = vmatpush1.msra.mxu0 %v3711
        %3754 = vmatprep.subr.mxu0 0.0
        %3755 = vmatpush2.msra.mxu0 0.0
        %3756 = vmatprep.subr.mxu0 0.0
        %3757 = vmatpush2.msra.mxu0 0.0
        %3758 = vmatprep.subr.mxu0 0.0
        %3759 = vmatpush2.msra.mxu0 0.0
        %3760 = vmatprep.subr.mxu0 0.0
        %3761 = vmatpush2.msra.mxu0 0.0
        %3762 = vmatprep.subr.mxu0 0.0
        %3763 = vmatpush2.msra.mxu0 0.0
        %3764 = vmatprep.subr.mxu0 0.0
        %3765 = vmatpush2.msra.mxu0 0.0
        %3766 = vmatprep.subr.mxu0 0.0
        %3767 = vmatpush2.msra.mxu0 0.0
        %3768 = vmatprep.subr.mxu0 0.0
        %3769 = vmatpush2.msra.mxu0 0.0
        %3770 = vmatprep.subr.mxu0 0.0
        %3771 = vmatpush2.msra.mxu0 0.0
        %3772 = vmatprep.subr.mxu0 0.0
        %3773 = vmatpush2.msra.mxu0 0.0
        %3774 = vmatprep.subr.mxu0 0.0
        %3775 = vmatpush2.msra.mxu0 0.0
        %3776 = vmatprep.subr.mxu0 0.0
        %3777 = vmatpush2.msra.mxu0 0.0
        %3778 = vmatprep.subr.mxu0 0.0
        %3779 = vmatpush2.msra.mxu0 0.0
        %3780 = vmatprep.subr.mxu0 0.0
        %3781 = vmatpush2.msra.mxu0 0.0
        %3782 = vmatprep.subr.mxu0 0.0
        %3783 = vmatpush2.msra.mxu0 0.0
        %3784 = vmatprep.subr.mxu0 0.0
        %3785 = vmatpush2.msra.mxu0 0.0
        %3786 = vmatprep.mubr.f32.mxu0 0.0
        %3787 = vmatmul.mubr.f32.gmra.mxu0 %v3717
        %v3788 = vpop.f32.mrf.mxu0
        %v3789 = vadd.f32 0.0, %v3788
        %v3790 = vpop.f32.mrf.mxu0
        %3791 = vmatprep.mubr.f32.mxu0 0.0
        %3792 = vmatmul.mubr.f32.gmra.mxu0 %v3720
        %v3793 = vpop.f32.mrf.mxu0
        %v3794 = vadd.f32 0.0, %v3793
        %v3795 = vpop.f32.mrf.mxu0
        %3796 = vdwg.mxu0
        %v3798 = vsel %vm3004, %v2989, 0
        %v3801 = vsel %vm3004, %v2991, 0
        %v3804 = vsel %vm3004, %v2995, 0
        %v3807 = vsel %vm3004, %v2997, 0
        %3809 = vmatprep.subr.mxu0 0.0
        %3810 = vmatpush1.xpose.msra.mxu0 0.0
        %3811 = vmatprep.subr.mxu0 0.0
        %3812 = vmatpush1.xpose.msra.mxu0 0.0
        %3813 = vmatprep.subr.mxu0 0.0
        %3814 = vmatpush1.xpose.msra.mxu0 0.0
        %3815 = vmatprep.subr.mxu0 0.0
        %3816 = vmatpush1.xpose.msra.mxu0 0.0
        %3817 = vmatprep.subr.mxu0 0.0
        %3818 = vmatpush1.xpose.msra.mxu0 0.0
        %3819 = vmatprep.subr.mxu0 0.0
        %3820 = vmatpush1.xpose.msra.mxu0 0.0
        %3821 = vmatprep.subr.mxu0 0.0
        %3822 = vmatpush1.xpose.msra.mxu0 0.0
        %3823 = vmatprep.subr.mxu0 0.0
        %3824 = vmatpush1.xpose.msra.mxu0 0.0
        %3825 = vmatprep.subr.mxu0 0.0
        %3826 = vmatpush1.xpose.msra.mxu0 0.0
        %3827 = vmatprep.subr.mxu0 0.0
        %3828 = vmatpush1.xpose.msra.mxu0 0.0
        %3829 = vmatprep.subr.mxu0 0.0
        %3830 = vmatpush1.xpose.msra.mxu0 0.0
        %3831 = vmatprep.subr.mxu0 0.0
        %3832 = vmatpush1.xpose.msra.mxu0 0.0
        %3833 = vmatprep.subr.mxu0 0.0
        %3834 = vmatpush1.xpose.msra.mxu0 0.0
        %3835 = vmatprep.subr.mxu0 0.0
        %3836 = vmatpush1.xpose.msra.mxu0 0.0
        %3837 = vmatprep.subr.mxu0 0.0
        %3838 = vmatpush1.xpose.msra.mxu0 %v3807
        %3839 = vmatprep.subr.mxu0 0.0
        %3840 = vmatpush1.xpose.msra.mxu0 %v3804
        %3841 = vmatprep.subr.mxu0 0.0
        %3842 = vmatpush2.xpose.msra.mxu0 0.0
        %3843 = vmatprep.subr.mxu0 0.0
        %3844 = vmatpush2.xpose.msra.mxu0 0.0
        %3845 = vmatprep.subr.mxu0 0.0
        %3846 = vmatpush2.xpose.msra.mxu0 0.0
        %3847 = vmatprep.subr.mxu0 0.0
        %3848 = vmatpush2.xpose.msra.mxu0 0.0
        %3849 = vmatprep.subr.mxu0 0.0
        %3850 = vmatpush2.xpose.msra.mxu0 0.0
        %3851 = vmatprep.subr.mxu0 0.0
        %3852 = vmatpush2.xpose.msra.mxu0 0.0
        %3853 = vmatprep.subr.mxu0 0.0
        %3854 = vmatpush2.xpose.msra.mxu0 0.0
        %3855 = vmatprep.subr.mxu0 0.0
        %3856 = vmatpush2.xpose.msra.mxu0 0.0
        %3857 = vmatprep.subr.mxu0 0.0
        %3858 = vmatpush2.xpose.msra.mxu0 0.0
        %3859 = vmatprep.subr.mxu0 0.0
        %3860 = vmatpush2.xpose.msra.mxu0 0.0
        %3861 = vmatprep.subr.mxu0 0.0
        %3862 = vmatpush2.xpose.msra.mxu0 0.0
        %3863 = vmatprep.subr.mxu0 0.0
        %3864 = vmatpush2.xpose.msra.mxu0 0.0
        %3865 = vmatprep.subr.mxu0 0.0
        %3866 = vmatpush2.xpose.msra.mxu0 0.0
        %3867 = vmatprep.subr.mxu0 0.0
        %3868 = vmatpush2.xpose.msra.mxu0 0.0
        %3869 = vmatprep.subr.mxu0 0.0
        %3870 = vmatpush2.xpose.msra.mxu0 0.0
        %3871 = vmatprep.subr.mxu0 0.0
        %3872 = vmatpush2.xpose.msra.mxu0 0.0
        %3873 = vmatprep.mubr.f32.mxu0 0.0
        %3874 = vmatmul.mubr.f32.gmra.mxu0 %v3798
        %v3875 = vpop.f32.mrf.mxu0
        %v3876 = vadd.f32 0.0, %v3875
        %v3877 = vpop.f32.mrf.mxu0
        %3878 = vmatprep.mubr.f32.mxu0 0.0
        %3879 = vmatmul.mubr.f32.gmra.mxu0 %v3801
        %v3880 = vpop.f32.mrf.mxu0
        %v3881 = vadd.f32 0.0, %v3880
        %v3882 = vpop.f32.mrf.mxu0
        %3883 = vdwg.mxu0
        %v3884 = vsel %vm3004, %v3876, -inf
        %3885 = vmax.xlane.f32.xlu0 %v3884
        %v3886 = vpop.xlane.xlu0 %3885
        %v3887 = vsel %vm3004, %v3881, -inf
        %3888 = vmax.xlane.f32.xlu0 %v3887
        %v3889 = vpop.xlane.xlu0 %3888
        %v3890 = vsub.f32 %v3876, %v3886
        %v3891 = vsub.f32 %v3881, %v3889
        %v3892 = vmul.f32 %v3890, 1.442695
        %v3893 = vpow.pop %v3892
        %v3894 = vmul.f32 %v3891, 1.442695
        %v3895 = vpow.pop %v3894
        %v3896 = vsel %vm3004, %v3893, 0.0
        %3897 = vadd.xlane.f32.xlu0 %v3896
        %v3898 = vpop.xlane.xlu0 %3897
        %v3899 = vsel %vm3004, %v3895, 0.0
        %3900 = vadd.xlane.f32.xlu0 %v3899
        %v3901 = vpop.xlane.xlu0 %3900
        %v3902 = vrcp.pop %v3898
        %v3903 = vrcp.pop %v3901
        %v3904 = vmul.f32 %v3893, %v3902
        %v3905 = vmul.f32 %v3895, %v3903
        %v3907 = vsel %vm3004, %v3904, 0
        %v3910 = vsel %vm3004, %v3905, 0
        %3912 = vmatprep.subr.mxu0 0.0
        %3913 = vmatpush1.msra.mxu0 0.0
        %3914 = vmatprep.subr.mxu0 0.0
        %3915 = vmatpush1.msra.mxu0 0.0
        %3916 = vmatprep.subr.mxu0 0.0
        %3917 = vmatpush1.msra.mxu0 0.0
        %3918 = vmatprep.subr.mxu0 0.0
        %3919 = vmatpush1.msra.mxu0 0.0
        %3920 = vmatprep.subr.mxu0 0.0
        %3921 = vmatpush1.msra.mxu0 0.0
        %3922 = vmatprep.subr.mxu0 0.0
        %3923 = vmatpush1.msra.mxu0 0.0
        %3924 = vmatprep.subr.mxu0 0.0
        %3925 = vmatpush1.msra.mxu0 0.0
        %3926 = vmatprep.subr.mxu0 0.0
        %3927 = vmatpush1.msra.mxu0 0.0
        %3928 = vmatprep.subr.mxu0 0.0
        %3929 = vmatpush1.msra.mxu0 0.0
        %3930 = vmatprep.subr.mxu0 0.0
        %3931 = vmatpush1.msra.mxu0 0.0
        %3932 = vmatprep.subr.mxu0 0.0
        %3933 = vmatpush1.msra.mxu0 0.0
        %3934 = vmatprep.subr.mxu0 0.0
        %3935 = vmatpush1.msra.mxu0 0.0
        %3936 = vmatprep.subr.mxu0 0.0
        %3937 = vmatpush1.msra.mxu0 0.0
        %3938 = vmatprep.subr.mxu0 0.0
        %3939 = vmatpush1.msra.mxu0 0.0
        %3940 = vmatprep.subr.mxu0 0.0
        %3941 = vmatpush1.msra.mxu0 %v3003
        %3942 = vmatprep.subr.mxu0 0.0
        %3943 = vmatpush1.msra.mxu0 %v3001
        %3944 = vmatprep.subr.mxu0 0.0
        %3945 = vmatpush2.msra.mxu0 0.0
        %3946 = vmatprep.subr.mxu0 0.0
        %3947 = vmatpush2.msra.mxu0 0.0
        %3948 = vmatprep.subr.mxu0 0.0
        %3949 = vmatpush2.msra.mxu0 0.0
        %3950 = vmatprep.subr.mxu0 0.0
        %3951 = vmatpush2.msra.mxu0 0.0
        %3952 = vmatprep.subr.mxu0 0.0
        %3953 = vmatpush2.msra.mxu0 0.0
        %3954 = vmatprep.subr.mxu0 0.0
        %3955 = vmatpush2.msra.mxu0 0.0
        %3956 = vmatprep.subr.mxu0 0.0
        %3957 = vmatpush2.msra.mxu0 0.0
        %3958 = vmatprep.subr.mxu0 0.0
        %3959 = vmatpush2.msra.mxu0 0.0
        %3960 = vmatprep.subr.mxu0 0.0
        %3961 = vmatpush2.msra.mxu0 0.0
        %3962 = vmatprep.subr.mxu0 0.0
        %3963 = vmatpush2.msra.mxu0 0.0
        %3964 = vmatprep.subr.mxu0 0.0
        %3965 = vmatpush2.msra.mxu0 0.0
        %3966 = vmatprep.subr.mxu0 0.0
        %3967 = vmatpush2.msra.mxu0 0.0
        %3968 = vmatprep.subr.mxu0 0.0
        %3969 = vmatpush2.msra.mxu0 0.0
        %3970 = vmatprep.subr.mxu0 0.0
        %3971 = vmatpush2.msra.mxu0 0.0
        %3972 = vmatprep.subr.mxu0 0.0
        %3973 = vmatpush2.msra.mxu0 0.0
        %3974 = vmatprep.subr.mxu0 0.0
        %3975 = vmatpush2.msra.mxu0 0.0
        %3976 = vmatprep.mubr.f32.mxu0 0.0
        %3977 = vmatmul.mubr.f32.gmra.mxu0 %v3907
        %v3978 = vpop.f32.mrf.mxu0
        %v3979 = vadd.f32 0.0, %v3978
        %v3980 = vpop.f32.mrf.mxu0
        %3981 = vmatprep.mubr.f32.mxu0 0.0
        %3982 = vmatmul.mubr.f32.gmra.mxu0 %v3910
        %v3983 = vpop.f32.mrf.mxu0
        %v3984 = vadd.f32 0.0, %v3983
        %v3985 = vpop.f32.mrf.mxu0
        %3986 = vdwg.mxu0
        %3987 = vrot.lane.b32.xlu0 %v2989, 96
        %v3988 = vpop.permute.xlu0 %3987
        %3989 = vrot.lane.b32.xlu0 %v2991, 96
        %v3990 = vpop.permute.xlu0 %3989
        %3991 = vrot.lane.b32.xlu0 %v2995, 96
        %v3992 = vpop.permute.xlu0 %3991
        %3993 = vrot.lane.b32.xlu0 %v2997, 96
        %v3994 = vpop.permute.xlu0 %3993
        %v3995 = vsel %vm3004, %v3988, 0
        %v3997 = vsel %vm3004, %v3990, 0
        %v3999 = vsel %vm3004, %v3992, 0
        %v4001 = vsel %vm3004, %v3994, 0
        %4003 = vmatprep.subr.mxu0 0.0
        %4004 = vmatpush1.xpose.msra.mxu0 0.0
        %4005 = vmatprep.subr.mxu0 0.0
        %4006 = vmatpush1.xpose.msra.mxu0 0.0
        %4007 = vmatprep.subr.mxu0 0.0
        %4008 = vmatpush1.xpose.msra.mxu0 0.0
        %4009 = vmatprep.subr.mxu0 0.0
        %4010 = vmatpush1.xpose.msra.mxu0 0.0
        %4011 = vmatprep.subr.mxu0 0.0
        %4012 = vmatpush1.xpose.msra.mxu0 0.0
        %4013 = vmatprep.subr.mxu0 0.0
        %4014 = vmatpush1.xpose.msra.mxu0 0.0
        %4015 = vmatprep.subr.mxu0 0.0
        %4016 = vmatpush1.xpose.msra.mxu0 0.0
        %4017 = vmatprep.subr.mxu0 0.0
        %4018 = vmatpush1.xpose.msra.mxu0 0.0
        %4019 = vmatprep.subr.mxu0 0.0
        %4020 = vmatpush1.xpose.msra.mxu0 0.0
        %4021 = vmatprep.subr.mxu0 0.0
        %4022 = vmatpush1.xpose.msra.mxu0 0.0
        %4023 = vmatprep.subr.mxu0 0.0
        %4024 = vmatpush1.xpose.msra.mxu0 0.0
        %4025 = vmatprep.subr.mxu0 0.0
        %4026 = vmatpush1.xpose.msra.mxu0 0.0
        %4027 = vmatprep.subr.mxu0 0.0
        %4028 = vmatpush1.xpose.msra.mxu0 0.0
        %4029 = vmatprep.subr.mxu0 0.0
        %4030 = vmatpush1.xpose.msra.mxu0 0.0
        %4031 = vmatprep.subr.mxu0 0.0
        %4032 = vmatpush1.xpose.msra.mxu0 %v4001
        %4033 = vmatprep.subr.mxu0 0.0
        %4034 = vmatpush1.xpose.msra.mxu0 %v3999
        %4035 = vmatprep.subr.mxu0 0.0
        %4036 = vmatpush2.xpose.msra.mxu0 0.0
        %4037 = vmatprep.subr.mxu0 0.0
        %4038 = vmatpush2.xpose.msra.mxu0 0.0
        %4039 = vmatprep.subr.mxu0 0.0
        %4040 = vmatpush2.xpose.msra.mxu0 0.0
        %4041 = vmatprep.subr.mxu0 0.0
        %4042 = vmatpush2.xpose.msra.mxu0 0.0
        %4043 = vmatprep.subr.mxu0 0.0
        %4044 = vmatpush2.xpose.msra.mxu0 0.0
        %4045 = vmatprep.subr.mxu0 0.0
        %4046 = vmatpush2.xpose.msra.mxu0 0.0
        %4047 = vmatprep.subr.mxu0 0.0
        %4048 = vmatpush2.xpose.msra.mxu0 0.0
        %4049 = vmatprep.subr.mxu0 0.0
        %4050 = vmatpush2.xpose.msra.mxu0 0.0
        %4051 = vmatprep.subr.mxu0 0.0
        %4052 = vmatpush2.xpose.msra.mxu0 0.0
        %4053 = vmatprep.subr.mxu0 0.0
        %4054 = vmatpush2.xpose.msra.mxu0 0.0
        %4055 = vmatprep.subr.mxu0 0.0
        %4056 = vmatpush2.xpose.msra.mxu0 0.0
        %4057 = vmatprep.subr.mxu0 0.0
        %4058 = vmatpush2.xpose.msra.mxu0 0.0
        %4059 = vmatprep.subr.mxu0 0.0
        %4060 = vmatpush2.xpose.msra.mxu0 0.0
        %4061 = vmatprep.subr.mxu0 0.0
        %4062 = vmatpush2.xpose.msra.mxu0 0.0
        %4063 = vmatprep.subr.mxu0 0.0
        %4064 = vmatpush2.xpose.msra.mxu0 0.0
        %4065 = vmatprep.subr.mxu0 0.0
        %4066 = vmatpush2.xpose.msra.mxu0 0.0
        %4067 = vmatprep.mubr.f32.mxu0 0.0
        %4068 = vmatmul.mubr.f32.gmra.mxu0 %v3995
        %v4069 = vpop.f32.mrf.mxu0
        %v4070 = vadd.f32 0.0, %v4069
        %v4071 = vpop.f32.mrf.mxu0
        %4072 = vmatprep.mubr.f32.mxu0 0.0
        %4073 = vmatmul.mubr.f32.gmra.mxu0 %v3997
        %v4074 = vpop.f32.mrf.mxu0
        %v4075 = vadd.f32 0.0, %v4074
        %v4076 = vpop.f32.mrf.mxu0
        %4077 = vdwg.mxu0
        %v4078 = vsel %vm3004, %v4070, -inf
        %4079 = vmax.xlane.f32.xlu0 %v4078
        %v4080 = vpop.xlane.xlu0 %4079
        %v4081 = vsel %vm3004, %v4075, -inf
        %4082 = vmax.xlane.f32.xlu0 %v4081
        %v4083 = vpop.xlane.xlu0 %4082
        %v4084 = vsub.f32 %v4070, %v4080
        %v4085 = vsub.f32 %v4075, %v4083
        %v4086 = vmul.f32 %v4084, 1.442695
        %v4087 = vpow.pop %v4086
        %v4088 = vmul.f32 %v4085, 1.442695
        %v4089 = vpow.pop %v4088
        %v4090 = vsel %vm3004, %v4087, 0.0
        %4091 = vadd.xlane.f32.xlu0 %v4090
        %v4092 = vpop.xlane.xlu0 %4091
        %v4093 = vsel %vm3004, %v4089, 0.0
        %4094 = vadd.xlane.f32.xlu0 %v4093
        %v4095 = vpop.xlane.xlu0 %4094
        %v4096 = vrcp.pop %v4092
        %v4097 = vrcp.pop %v4095
        %v4098 = vmul.f32 %v4087, %v4096
        %v4099 = vmul.f32 %v4089, %v4097
        %4102 = vrot.lane.b32.xlu0 %v3001, 96
        %v4103 = vpop.permute.xlu0 %4102
        %4104 = vrot.lane.b32.xlu0 %v3003, 96
        %v4105 = vpop.permute.xlu0 %4104
        %v4109 = vsel %vm3004, %v4098, 0
        %v4112 = vsel %vm3004, %v4099, 0
        %4114 = vmatprep.subr.mxu0 0.0
        %4115 = vmatpush1.msra.mxu0 0.0
        %4116 = vmatprep.subr.mxu0 0.0
        %4117 = vmatpush1.msra.mxu0 0.0
        %4118 = vmatprep.subr.mxu0 0.0
        %4119 = vmatpush1.msra.mxu0 0.0
        %4120 = vmatprep.subr.mxu0 0.0
        %4121 = vmatpush1.msra.mxu0 0.0
        %4122 = vmatprep.subr.mxu0 0.0
        %4123 = vmatpush1.msra.mxu0 0.0
        %4124 = vmatprep.subr.mxu0 0.0
        %4125 = vmatpush1.msra.mxu0 0.0
        %4126 = vmatprep.subr.mxu0 0.0
        %4127 = vmatpush1.msra.mxu0 0.0
        %4128 = vmatprep.subr.mxu0 0.0
        %4129 = vmatpush1.msra.mxu0 0.0
        %4130 = vmatprep.subr.mxu0 0.0
        %4131 = vmatpush1.msra.mxu0 0.0
        %4132 = vmatprep.subr.mxu0 0.0
        %4133 = vmatpush1.msra.mxu0 0.0
        %4134 = vmatprep.subr.mxu0 0.0
        %4135 = vmatpush1.msra.mxu0 0.0
        %4136 = vmatprep.subr.mxu0 0.0
        %4137 = vmatpush1.msra.mxu0 0.0
        %4138 = vmatprep.subr.mxu0 0.0
        %4139 = vmatpush1.msra.mxu0 0.0
        %4140 = vmatprep.subr.mxu0 0.0
        %4141 = vmatpush1.msra.mxu0 0.0
        %4142 = vmatprep.subr.mxu0 0.0
        %4143 = vmatpush1.msra.mxu0 %v4105
        %4144 = vmatprep.subr.mxu0 0.0
        %4145 = vmatpush1.msra.mxu0 %v4103
        %4146 = vmatprep.subr.mxu0 0.0
        %4147 = vmatpush2.msra.mxu0 0.0
        %4148 = vmatprep.subr.mxu0 0.0
        %4149 = vmatpush2.msra.mxu0 0.0
        %4150 = vmatprep.subr.mxu0 0.0
        %4151 = vmatpush2.msra.mxu0 0.0
        %4152 = vmatprep.subr.mxu0 0.0
        %4153 = vmatpush2.msra.mxu0 0.0
        %4154 = vmatprep.subr.mxu0 0.0
        %4155 = vmatpush2.msra.mxu0 0.0
        %4156 = vmatprep.subr.mxu0 0.0
        %4157 = vmatpush2.msra.mxu0 0.0
        %4158 = vmatprep.subr.mxu0 0.0
        %4159 = vmatpush2.msra.mxu0 0.0
        %4160 = vmatprep.subr.mxu0 0.0
        %4161 = vmatpush2.msra.mxu0 0.0
        %4162 = vmatprep.subr.mxu0 0.0
        %4163 = vmatpush2.msra.mxu0 0.0
        %4164 = vmatprep.subr.mxu0 0.0
        %4165 = vmatpush2.msra.mxu0 0.0
        %4166 = vmatprep.subr.mxu0 0.0
        %4167 = vmatpush2.msra.mxu0 0.0
        %4168 = vmatprep.subr.mxu0 0.0
        %4169 = vmatpush2.msra.mxu0 0.0
        %4170 = vmatprep.subr.mxu0 0.0
        %4171 = vmatpush2.msra.mxu0 0.0
        %4172 = vmatprep.subr.mxu0 0.0
        %4173 = vmatpush2.msra.mxu0 0.0
        %4174 = vmatprep.subr.mxu0 0.0
        %4175 = vmatpush2.msra.mxu0 0.0
        %4176 = vmatprep.subr.mxu0 0.0
        %4177 = vmatpush2.msra.mxu0 0.0
        %4178 = vmatprep.mubr.f32.mxu0 0.0
        %4179 = vmatmul.mubr.f32.gmra.mxu0 %v4109
        %v4180 = vpop.f32.mrf.mxu0
        %v4181 = vadd.f32 0.0, %v4180
        %v4182 = vpop.f32.mrf.mxu0
        %4183 = vmatprep.mubr.f32.mxu0 0.0
        %4184 = vmatmul.mubr.f32.gmra.mxu0 %v4112
        %v4185 = vpop.f32.mrf.mxu0
        %v4186 = vadd.f32 0.0, %v4185
        %v4187 = vpop.f32.mrf.mxu0
        %4188 = vdwg.mxu0
        %4189 = vrot.lane.b32.xlu0 %v2989, 64
        %v4190 = vpop.permute.xlu0 %4189
        %4191 = vrot.lane.b32.xlu0 %v2991, 64
        %v4192 = vpop.permute.xlu0 %4191
        %4193 = vrot.lane.b32.xlu0 %v2995, 64
        %v4194 = vpop.permute.xlu0 %4193
        %4195 = vrot.lane.b32.xlu0 %v2997, 64
        %v4196 = vpop.permute.xlu0 %4195
        %v4197 = vsel %vm3004, %v4190, 0
        %v4199 = vsel %vm3004, %v4192, 0
        %v4201 = vsel %vm3004, %v4194, 0
        %v4203 = vsel %vm3004, %v4196, 0
        %4205 = vmatprep.subr.mxu0 0.0
        %4206 = vmatpush1.xpose.msra.mxu0 0.0
        %4207 = vmatprep.subr.mxu0 0.0
        %4208 = vmatpush1.xpose.msra.mxu0 0.0
        %4209 = vmatprep.subr.mxu0 0.0
        %4210 = vmatpush1.xpose.msra.mxu0 0.0
        %4211 = vmatprep.subr.mxu0 0.0
        %4212 = vmatpush1.xpose.msra.mxu0 0.0
        %4213 = vmatprep.subr.mxu0 0.0
        %4214 = vmatpush1.xpose.msra.mxu0 0.0
        %4215 = vmatprep.subr.mxu0 0.0
        %4216 = vmatpush1.xpose.msra.mxu0 0.0
        %4217 = vmatprep.subr.mxu0 0.0
        %4218 = vmatpush1.xpose.msra.mxu0 0.0
        %4219 = vmatprep.subr.mxu0 0.0
        %4220 = vmatpush1.xpose.msra.mxu0 0.0
        %4221 = vmatprep.subr.mxu0 0.0
        %4222 = vmatpush1.xpose.msra.mxu0 0.0
        %4223 = vmatprep.subr.mxu0 0.0
        %4224 = vmatpush1.xpose.msra.mxu0 0.0
        %4225 = vmatprep.subr.mxu0 0.0
        %4226 = vmatpush1.xpose.msra.mxu0 0.0
        %4227 = vmatprep.subr.mxu0 0.0
        %4228 = vmatpush1.xpose.msra.mxu0 0.0
        %4229 = vmatprep.subr.mxu0 0.0
        %4230 = vmatpush1.xpose.msra.mxu0 0.0
        %4231 = vmatprep.subr.mxu0 0.0
        %4232 = vmatpush1.xpose.msra.mxu0 0.0
        %4233 = vmatprep.subr.mxu0 0.0
        %4234 = vmatpush1.xpose.msra.mxu0 %v4203
        %4235 = vmatprep.subr.mxu0 0.0
        %4236 = vmatpush1.xpose.msra.mxu0 %v4201
        %4237 = vmatprep.subr.mxu0 0.0
        %4238 = vmatpush2.xpose.msra.mxu0 0.0
        %4239 = vmatprep.subr.mxu0 0.0
        %4240 = vmatpush2.xpose.msra.mxu0 0.0
        %4241 = vmatprep.subr.mxu0 0.0
        %4242 = vmatpush2.xpose.msra.mxu0 0.0
        %4243 = vmatprep.subr.mxu0 0.0
        %4244 = vmatpush2.xpose.msra.mxu0 0.0
        %4245 = vmatprep.subr.mxu0 0.0
        %4246 = vmatpush2.xpose.msra.mxu0 0.0
        %4247 = vmatprep.subr.mxu0 0.0
        %4248 = vmatpush2.xpose.msra.mxu0 0.0
        %4249 = vmatprep.subr.mxu0 0.0
        %4250 = vmatpush2.xpose.msra.mxu0 0.0
        %4251 = vmatprep.subr.mxu0 0.0
        %4252 = vmatpush2.xpose.msra.mxu0 0.0
        %4253 = vmatprep.subr.mxu0 0.0
        %4254 = vmatpush2.xpose.msra.mxu0 0.0
        %4255 = vmatprep.subr.mxu0 0.0
        %4256 = vmatpush2.xpose.msra.mxu0 0.0
        %4257 = vmatprep.subr.mxu0 0.0
        %4258 = vmatpush2.xpose.msra.mxu0 0.0
        %4259 = vmatprep.subr.mxu0 0.0
        %4260 = vmatpush2.xpose.msra.mxu0 0.0
        %4261 = vmatprep.subr.mxu0 0.0
        %4262 = vmatpush2.xpose.msra.mxu0 0.0
        %4263 = vmatprep.subr.mxu0 0.0
        %4264 = vmatpush2.xpose.msra.mxu0 0.0
        %4265 = vmatprep.subr.mxu0 0.0
        %4266 = vmatpush2.xpose.msra.mxu0 0.0
        %4267 = vmatprep.subr.mxu0 0.0
        %4268 = vmatpush2.xpose.msra.mxu0 0.0
        %4269 = vmatprep.mubr.f32.mxu0 0.0
        %4270 = vmatmul.mubr.f32.gmra.mxu0 %v4197
        %v4271 = vpop.f32.mrf.mxu0
        %v4272 = vadd.f32 0.0, %v4271
        %v4273 = vpop.f32.mrf.mxu0
        %4274 = vmatprep.mubr.f32.mxu0 0.0
        %4275 = vmatmul.mubr.f32.gmra.mxu0 %v4199
        %v4276 = vpop.f32.mrf.mxu0
        %v4277 = vadd.f32 0.0, %v4276
        %v4278 = vpop.f32.mrf.mxu0
        %4279 = vdwg.mxu0
        %v4280 = vsel %vm3004, %v4272, -inf
        %4281 = vmax.xlane.f32.xlu0 %v4280
        %v4282 = vpop.xlane.xlu0 %4281
        %v4283 = vsel %vm3004, %v4277, -inf
        %4284 = vmax.xlane.f32.xlu0 %v4283
        %v4285 = vpop.xlane.xlu0 %4284
        %v4286 = vsub.f32 %v4272, %v4282
        %v4287 = vsub.f32 %v4277, %v4285
        %v4288 = vmul.f32 %v4286, 1.442695
        %v4289 = vpow.pop %v4288
        %v4290 = vmul.f32 %v4287, 1.442695
        %v4291 = vpow.pop %v4290
        %v4292 = vsel %vm3004, %v4289, 0.0
        %4293 = vadd.xlane.f32.xlu0 %v4292
        %v4294 = vpop.xlane.xlu0 %4293
        %v4295 = vsel %vm3004, %v4291, 0.0
        %4296 = vadd.xlane.f32.xlu0 %v4295
        %v4297 = vpop.xlane.xlu0 %4296
        %v4298 = vrcp.pop %v4294
        %v4299 = vrcp.pop %v4297
        %v4300 = vmul.f32 %v4289, %v4298
        %v4301 = vmul.f32 %v4291, %v4299
        %4302 = vrot.lane.b32.xlu0 %v3001, 64
        %v4303 = vpop.permute.xlu0 %4302
        %4304 = vrot.lane.b32.xlu0 %v3003, 64
        %v4305 = vpop.permute.xlu0 %4304
        %v4309 = vsel %vm3004, %v4300, 0
        %v4312 = vsel %vm3004, %v4301, 0
        %4314 = vmatprep.subr.mxu0 0.0
        %4315 = vmatpush1.msra.mxu0 0.0
        %4316 = vmatprep.subr.mxu0 0.0
        %4317 = vmatpush1.msra.mxu0 0.0
        %4318 = vmatprep.subr.mxu0 0.0
        %4319 = vmatpush1.msra.mxu0 0.0
        %4320 = vmatprep.subr.mxu0 0.0
        %4321 = vmatpush1.msra.mxu0 0.0
        %4322 = vmatprep.subr.mxu0 0.0
        %4323 = vmatpush1.msra.mxu0 0.0
        %4324 = vmatprep.subr.mxu0 0.0
        %4325 = vmatpush1.msra.mxu0 0.0
        %4326 = vmatprep.subr.mxu0 0.0
        %4327 = vmatpush1.msra.mxu0 0.0
        %4328 = vmatprep.subr.mxu0 0.0
        %4329 = vmatpush1.msra.mxu0 0.0
        %4330 = vmatprep.subr.mxu0 0.0
        %4331 = vmatpush1.msra.mxu0 0.0
        %4332 = vmatprep.subr.mxu0 0.0
        %4333 = vmatpush1.msra.mxu0 0.0
        %4334 = vmatprep.subr.mxu0 0.0
        %4335 = vmatpush1.msra.mxu0 0.0
        %4336 = vmatprep.subr.mxu0 0.0
        %4337 = vmatpush1.msra.mxu0 0.0
        %4338 = vmatprep.subr.mxu0 0.0
        %4339 = vmatpush1.msra.mxu0 0.0
        %4340 = vmatprep.subr.mxu0 0.0
        %4341 = vmatpush1.msra.mxu0 0.0
        %4342 = vmatprep.subr.mxu0 0.0
        %4343 = vmatpush1.msra.mxu0 %v4305
        %4344 = vmatprep.subr.mxu0 0.0
        %4345 = vmatpush1.msra.mxu0 %v4303
        %4346 = vmatprep.subr.mxu0 0.0
        %4347 = vmatpush2.msra.mxu0 0.0
        %4348 = vmatprep.subr.mxu0 0.0
        %4349 = vmatpush2.msra.mxu0 0.0
        %4350 = vmatprep.subr.mxu0 0.0
        %4351 = vmatpush2.msra.mxu0 0.0
        %4352 = vmatprep.subr.mxu0 0.0
        %4353 = vmatpush2.msra.mxu0 0.0
        %4354 = vmatprep.subr.mxu0 0.0
        %4355 = vmatpush2.msra.mxu0 0.0
        %4356 = vmatprep.subr.mxu0 0.0
        %4357 = vmatpush2.msra.mxu0 0.0
        %4358 = vmatprep.subr.mxu0 0.0
        %4359 = vmatpush2.msra.mxu0 0.0
        %4360 = vmatprep.subr.mxu0 0.0
        %4361 = vmatpush2.msra.mxu0 0.0
        %4362 = vmatprep.subr.mxu0 0.0
        %4363 = vmatpush2.msra.mxu0 0.0
        %4364 = vmatprep.subr.mxu0 0.0
        %4365 = vmatpush2.msra.mxu0 0.0
        %4366 = vmatprep.subr.mxu0 0.0
        %4367 = vmatpush2.msra.mxu0 0.0
        %4368 = vmatprep.subr.mxu0 0.0
        %4369 = vmatpush2.msra.mxu0 0.0
        %4370 = vmatprep.subr.mxu0 0.0
        %4371 = vmatpush2.msra.mxu0 0.0
        %4372 = vmatprep.subr.mxu0 0.0
        %4373 = vmatpush2.msra.mxu0 0.0
        %4374 = vmatprep.subr.mxu0 0.0
        %4375 = vmatpush2.msra.mxu0 0.0
        %4376 = vmatprep.subr.mxu0 0.0
        %4377 = vmatpush2.msra.mxu0 0.0
        %4378 = vmatprep.mubr.f32.mxu0 0.0
        %4379 = vmatmul.mubr.f32.gmra.mxu0 %v4309
        %v4380 = vpop.f32.mrf.mxu0
        %v4381 = vadd.f32 0.0, %v4380
        %v4382 = vpop.f32.mrf.mxu0
        %4383 = vmatprep.mubr.f32.mxu0 0.0
        %4384 = vmatmul.mubr.f32.gmra.mxu0 %v4312
        %v4385 = vpop.f32.mrf.mxu0
        %v4386 = vadd.f32 0.0, %v4385
        %v4387 = vpop.f32.mrf.mxu0
        %4388 = vdwg.mxu0
        %4389 = vrot.lane.b32.xlu0 %v2989, 32
        %v4390 = vpop.permute.xlu0 %4389
        %4391 = vrot.lane.b32.xlu0 %v2991, 32
        %v4392 = vpop.permute.xlu0 %4391
        %4393 = vrot.lane.b32.xlu0 %v2995, 32
        %v4394 = vpop.permute.xlu0 %4393
        %4395 = vrot.lane.b32.xlu0 %v2997, 32
        %v4396 = vpop.permute.xlu0 %4395
        %v4397 = vsel %vm3004, %v4390, 0
        %v4399 = vsel %vm3004, %v4392, 0
        %v4401 = vsel %vm3004, %v4394, 0
        %v4403 = vsel %vm3004, %v4396, 0
        %4405 = vmatprep.subr.mxu0 0.0
        %4406 = vmatpush1.xpose.msra.mxu0 0.0
        %4407 = vmatprep.subr.mxu0 0.0
        %4408 = vmatpush1.xpose.msra.mxu0 0.0
        %4409 = vmatprep.subr.mxu0 0.0
        %4410 = vmatpush1.xpose.msra.mxu0 0.0
        %4411 = vmatprep.subr.mxu0 0.0
        %4412 = vmatpush1.xpose.msra.mxu0 0.0
        %4413 = vmatprep.subr.mxu0 0.0
        %4414 = vmatpush1.xpose.msra.mxu0 0.0
        %4415 = vmatprep.subr.mxu0 0.0
        %4416 = vmatpush1.xpose.msra.mxu0 0.0
        %4417 = vmatprep.subr.mxu0 0.0
        %4418 = vmatpush1.xpose.msra.mxu0 0.0
        %4419 = vmatprep.subr.mxu0 0.0
        %4420 = vmatpush1.xpose.msra.mxu0 0.0
        %4421 = vmatprep.subr.mxu0 0.0
        %4422 = vmatpush1.xpose.msra.mxu0 0.0
        %4423 = vmatprep.subr.mxu0 0.0
        %4424 = vmatpush1.xpose.msra.mxu0 0.0
        %4425 = vmatprep.subr.mxu0 0.0
        %4426 = vmatpush1.xpose.msra.mxu0 0.0
        %4427 = vmatprep.subr.mxu0 0.0
        %4428 = vmatpush1.xpose.msra.mxu0 0.0
        %4429 = vmatprep.subr.mxu0 0.0
        %4430 = vmatpush1.xpose.msra.mxu0 0.0
        %4431 = vmatprep.subr.mxu0 0.0
        %4432 = vmatpush1.xpose.msra.mxu0 0.0
        %4433 = vmatprep.subr.mxu0 0.0
        %4434 = vmatpush1.xpose.msra.mxu0 %v4403
        %4435 = vmatprep.subr.mxu0 0.0
        %4436 = vmatpush1.xpose.msra.mxu0 %v4401
        %4437 = vmatprep.subr.mxu0 0.0
        %4438 = vmatpush2.xpose.msra.mxu0 0.0
        %4439 = vmatprep.subr.mxu0 0.0
        %4440 = vmatpush2.xpose.msra.mxu0 0.0
        %4441 = vmatprep.subr.mxu0 0.0
        %4442 = vmatpush2.xpose.msra.mxu0 0.0
        %4443 = vmatprep.subr.mxu0 0.0
        %4444 = vmatpush2.xpose.msra.mxu0 0.0
        %4445 = vmatprep.subr.mxu0 0.0
        %4446 = vmatpush2.xpose.msra.mxu0 0.0
        %4447 = vmatprep.subr.mxu0 0.0
        %4448 = vmatpush2.xpose.msra.mxu0 0.0
        %4449 = vmatprep.subr.mxu0 0.0
        %4450 = vmatpush2.xpose.msra.mxu0 0.0
        %4451 = vmatprep.subr.mxu0 0.0
        %4452 = vmatpush2.xpose.msra.mxu0 0.0
        %4453 = vmatprep.subr.mxu0 0.0
        %4454 = vmatpush2.xpose.msra.mxu0 0.0
        %4455 = vmatprep.subr.mxu0 0.0
        %4456 = vmatpush2.xpose.msra.mxu0 0.0
        %4457 = vmatprep.subr.mxu0 0.0
        %4458 = vmatpush2.xpose.msra.mxu0 0.0
        %4459 = vmatprep.subr.mxu0 0.0
        %4460 = vmatpush2.xpose.msra.mxu0 0.0
        %4461 = vmatprep.subr.mxu0 0.0
        %4462 = vmatpush2.xpose.msra.mxu0 0.0
        %4463 = vmatprep.subr.mxu0 0.0
        %4464 = vmatpush2.xpose.msra.mxu0 0.0
        %4465 = vmatprep.subr.mxu0 0.0
        %4466 = vmatpush2.xpose.msra.mxu0 0.0
        %4467 = vmatprep.subr.mxu0 0.0
        %4468 = vmatpush2.xpose.msra.mxu0 0.0
        %4469 = vmatprep.mubr.f32.mxu0 0.0
        %4470 = vmatmul.mubr.f32.gmra.mxu0 %v4397
        %v4471 = vpop.f32.mrf.mxu0
        %v4472 = vadd.f32 0.0, %v4471
        %v4473 = vpop.f32.mrf.mxu0
        %4474 = vmatprep.mubr.f32.mxu0 0.0
        %4475 = vmatmul.mubr.f32.gmra.mxu0 %v4399
        %v4476 = vpop.f32.mrf.mxu0
        %v4477 = vadd.f32 0.0, %v4476
        %v4478 = vpop.f32.mrf.mxu0
        %4479 = vdwg.mxu0
        %v4480 = vsel %vm3004, %v4472, -inf
        %4481 = vmax.xlane.f32.xlu0 %v4480
        %v4482 = vpop.xlane.xlu0 %4481
        %v4483 = vsel %vm3004, %v4477, -inf
        %4484 = vmax.xlane.f32.xlu0 %v4483
        %v4485 = vpop.xlane.xlu0 %4484
        %v4486 = vsub.f32 %v4472, %v4482
        %v4487 = vsub.f32 %v4477, %v4485
        %v4488 = vmul.f32 %v4486, 1.442695
        %v4489 = vpow.pop %v4488
        %v4490 = vmul.f32 %v4487, 1.442695
        %v4491 = vpow.pop %v4490
        %v4492 = vsel %vm3004, %v4489, 0.0
        %4493 = vadd.xlane.f32.xlu0 %v4492
        %v4494 = vpop.xlane.xlu0 %4493
        %v4495 = vsel %vm3004, %v4491, 0.0
        %4496 = vadd.xlane.f32.xlu0 %v4495
        %v4497 = vpop.xlane.xlu0 %4496
        %v4498 = vrcp.pop %v4494
        %v4499 = vrcp.pop %v4497
        %v4500 = vmul.f32 %v4489, %v4498
        %v4501 = vmul.f32 %v4491, %v4499
        %4502 = vrot.lane.b32.xlu0 %v3001, 32
        %v4503 = vpop.permute.xlu0 %4502
        %4504 = vrot.lane.b32.xlu0 %v3003, 32
        %v4505 = vpop.permute.xlu0 %4504
        %v4509 = vsel %vm3004, %v4500, 0
        %v4512 = vsel %vm3004, %v4501, 0
        %4514 = vmatprep.subr.mxu0 0.0
        %4515 = vmatpush1.msra.mxu0 0.0
        %4516 = vmatprep.subr.mxu0 0.0
        %4517 = vmatpush1.msra.mxu0 0.0
        %4518 = vmatprep.subr.mxu0 0.0
        %4519 = vmatpush1.msra.mxu0 0.0
        %4520 = vmatprep.subr.mxu0 0.0
        %4521 = vmatpush1.msra.mxu0 0.0
        %4522 = vmatprep.subr.mxu0 0.0
        %4523 = vmatpush1.msra.mxu0 0.0
        %4524 = vmatprep.subr.mxu0 0.0
        %4525 = vmatpush1.msra.mxu0 0.0
        %4526 = vmatprep.subr.mxu0 0.0
        %4527 = vmatpush1.msra.mxu0 0.0
        %4528 = vmatprep.subr.mxu0 0.0
        %4529 = vmatpush1.msra.mxu0 0.0
        %4530 = vmatprep.subr.mxu0 0.0
        %4531 = vmatpush1.msra.mxu0 0.0
        %4532 = vmatprep.subr.mxu0 0.0
        %4533 = vmatpush1.msra.mxu0 0.0
        %4534 = vmatprep.subr.mxu0 0.0
        %4535 = vmatpush1.msra.mxu0 0.0
        %4536 = vmatprep.subr.mxu0 0.0
        %4537 = vmatpush1.msra.mxu0 0.0
        %4538 = vmatprep.subr.mxu0 0.0
        %4539 = vmatpush1.msra.mxu0 0.0
        %4540 = vmatprep.subr.mxu0 0.0
        %4541 = vmatpush1.msra.mxu0 0.0
        %4542 = vmatprep.subr.mxu0 0.0
        %4543 = vmatpush1.msra.mxu0 %v4505
        %4544 = vmatprep.subr.mxu0 0.0
        %4545 = vmatpush1.msra.mxu0 %v4503
        %4546 = vmatprep.subr.mxu0 0.0
        %4547 = vmatpush2.msra.mxu0 0.0
        %4548 = vmatprep.subr.mxu0 0.0
        %4549 = vmatpush2.msra.mxu0 0.0
        %4550 = vmatprep.subr.mxu0 0.0
        %4551 = vmatpush2.msra.mxu0 0.0
        %4552 = vmatprep.subr.mxu0 0.0
        %4553 = vmatpush2.msra.mxu0 0.0
        %4554 = vmatprep.subr.mxu0 0.0
        %4555 = vmatpush2.msra.mxu0 0.0
        %4556 = vmatprep.subr.mxu0 0.0
        %4557 = vmatpush2.msra.mxu0 0.0
        %4558 = vmatprep.subr.mxu0 0.0
        %4559 = vmatpush2.msra.mxu0 0.0
        %4560 = vmatprep.subr.mxu0 0.0
        %4561 = vmatpush2.msra.mxu0 0.0
        %4562 = vmatprep.subr.mxu0 0.0
        %4563 = vmatpush2.msra.mxu0 0.0
        %4564 = vmatprep.subr.mxu0 0.0
        %4565 = vmatpush2.msra.mxu0 0.0
        %4566 = vmatprep.subr.mxu0 0.0
        %4567 = vmatpush2.msra.mxu0 0.0
        %4568 = vmatprep.subr.mxu0 0.0
        %4569 = vmatpush2.msra.mxu0 0.0
        %4570 = vmatprep.subr.mxu0 0.0
        %4571 = vmatpush2.msra.mxu0 0.0
        %4572 = vmatprep.subr.mxu0 0.0
        %4573 = vmatpush2.msra.mxu0 0.0
        %4574 = vmatprep.subr.mxu0 0.0
        %4575 = vmatpush2.msra.mxu0 0.0
        %4576 = vmatprep.subr.mxu0 0.0
        %4577 = vmatpush2.msra.mxu0 0.0
        %4578 = vmatprep.mubr.f32.mxu0 0.0
        %4579 = vmatmul.mubr.f32.gmra.mxu0 %v4509
        %v4580 = vpop.f32.mrf.mxu0
        %v4581 = vadd.f32 0.0, %v4580
        %v4582 = vpop.f32.mrf.mxu0
        %4583 = vmatprep.mubr.f32.mxu0 0.0
        %4584 = vmatmul.mubr.f32.gmra.mxu0 %v4512
        %v4585 = vpop.f32.mrf.mxu0
        %v4586 = vadd.f32 0.0, %v4585
        %v4587 = vpop.f32.mrf.mxu0
        %4588 = vdwg.mxu0
        %4591 = vrot.lane.b32.xlu0 %v3389, 16
        %v4592 = vpop.permute.xlu0 %4591
        %4593 = vrot.lane.b32.xlu0 %v3394, 16
        %v4594 = vpop.permute.xlu0 %4593
        %4599 = vrot.lane.b32.xlu0 %v3589, 32
        %v4600 = vpop.permute.xlu0 %4599
        %4601 = vrot.lane.b32.xlu0 %v3594, 32
        %v4602 = vpop.permute.xlu0 %4601
        %4607 = vrot.lane.b32.xlu0 %v3789, 48
        %v4608 = vpop.permute.xlu0 %4607
        %4609 = vrot.lane.b32.xlu0 %v3794, 48
        %v4610 = vpop.permute.xlu0 %4609
        %4615 = vrot.lane.b32.xlu0 %v3979, 64
        %v4616 = vpop.permute.xlu0 %4615
        %4617 = vrot.lane.b32.xlu0 %v3984, 64
        %v4618 = vpop.permute.xlu0 %4617
        %4623 = vrot.lane.b32.xlu0 %v4181, 80
        %v4624 = vpop.permute.xlu0 %4623
        %4625 = vrot.lane.b32.xlu0 %v4186, 80
        %v4626 = vpop.permute.xlu0 %4625
        %4631 = vrot.lane.b32.xlu0 %v4381, 96
        %v4632 = vpop.permute.xlu0 %4631
        %4633 = vrot.lane.b32.xlu0 %v4386, 96
        %v4634 = vpop.permute.xlu0 %4633
        %4639 = vrot.lane.b32.xlu0 %v4581, 112
        %v4640 = vpop.permute.xlu0 %4639
        %4641 = vrot.lane.b32.xlu0 %v4586, 112
        %v4642 = vpop.permute.xlu0 %4641
        %v4645 = vsel %vm3004, %v3187, %v4592
        %v4646 = vsel %vm3004, %v3192, %v4594
        %vm4647 = vcmask 261120
        %v4648 = vsel %vm4647, %v4645, %v4600
        %v4649 = vsel %vm4647, %v4646, %v4602
        %vm4650 = vcmask 392192
        %v4651 = vsel %vm4650, %v4648, %v4608
        %v4652 = vsel %vm4650, %v4649, %v4610
        %vm4653 = vcmask 523264
        %v4654 = vsel %vm4653, %v4651, %v4616
        %v4655 = vsel %vm4653, %v4652, %v4618
        %vm4656 = vcmask 654336
        %v4657 = vsel %vm4656, %v4654, %v4624
        %v4658 = vsel %vm4656, %v4655, %v4626
        %vm4659 = vcmask 785408
        %v4660 = vsel %vm4659, %v4657, %v4632
        %v4661 = vsel %vm4659, %v4658, %v4634
        %vm4662 = vcmask 916480
        %v4663 = vsel %vm4662, %v4660, %v4640
        %v4664 = vsel %vm4662, %v4661, %v4642
        %4665 = vst [vmem:[%s214] sm:$0xff] %v4663
        %4666 = vst [vmem:[%s214 + $0x8] sm:$0xff] %v4664
        %s4667 = sand.u32 %s98, 1
        %s4668 = scalar_lea.sflag [#allocation5], %s4667
        %s4669 = sand.u32 %s98, 1
        %s4670 = smul.addr %s4669, 16
        %s4671 = scalar_lea.vmem [#allocation10], %s4670
        // Predicated region
        $region45: #{tpu_custom_call.1} parent=31 // pred_check
          %p4672 = pneg %p108
        $region46: #{tpu_custom_call.1} parent=31 // pred_check_branch
          %4674 = sbr.rel (%p4672) target = $region48
        $region47: #{tpu_custom_call.1} parent=31 // pred_region
          %s4676 = ssub.s32 256, 256
          %4677 = vsyncadd %s4668, %s4676
          %s4678 = smul.addr %s22, 2
          %s4679 = smul.addr %s4678, 128
          %s4680 = scalar_lea.hbm %s3, %s4679
          %s4681 = sshll.u32 %s4671, 4
          %s4682 = int_to_ptr.vmem [resolvable:$true] %s4681
          %4687 = dma.vmem_to_hbm [thread:$0]  %s4682, 256, %s4680, %s4668, 128, 128, 8
        $region48: #{tpu_custom_call.1} parent=31 // pred_fallthru
          _
      $region32: #{tpu_custom_call.1} parent=5 // pred_fallthru
        _
      %p4688 = scmp.le.s32.totalorder 2, %s17
      // Predicated region
      $region49: #{tpu_custom_call.1} parent=5 // pred_check
        %p4689 = pneg %p4688
      $region50: #{tpu_custom_call.1} parent=5 // pred_check_branch
        %4691 = sbr.rel (%p4689) target = $region52
      $region51: #{tpu_custom_call.1} parent=5 // pred_region
        %s4692 = ssub.s32 %s17, 2
        // Predicated region
        $region53: #{tpu_custom_call.1} parent=51 // pred_check
          %p4693 = pneg %p114
        $region54: #{tpu_custom_call.1} parent=51 // pred_check_branch
          %4695 = sbr.rel (%p4693) target = $region56
        $region55: #{tpu_custom_call.1} parent=51 // pred_region
          %s4696 = sand.u32 %s99, 1
          %s4697 = scalar_lea.sflag [#allocation5], %s4696
          %s4698 = sand.u32 %s99, 1
          %s4699 = smul.addr %s4698, 16
          %s4700 = scalar_lea.vmem [#allocation10], %s4699
          %4701 = dma.done %s4697, 256
        $region56: #{tpu_custom_call.1} parent=51 // pred_fallthru
          _
      $region52: #{tpu_custom_call.1} parent=5 // pred_fallthru
        _
    $region6: #{tpu_custom_call.1} parent=1 // loop_footer
      %s21 = sadd.s32 1, %s17
    $region7: #{tpu_custom_call.1} parent=1 // loop_footer_branch
      %16 = sbr.rel target = $region3
    $region8: #{tpu_custom_call.1} parent=1 // loop_exit
      _
    %4702 = vsyncpa [#allocation4], 1
    %s4703 = scalar_lea.sflag [#allocation4], 1
    %4704 = vsyncpa %s4703, 1
    %4705 = vsyncpa [#allocation5], 1
    %s4706 = scalar_lea.sflag [#allocation5], 1
    %4707 = vsyncpa %s4706, 1
    %4708 = vsyncpa [#allocation6], 1
    %s4709 = scalar_lea.sflag [#allocation6], 1
    %4710 = vsyncpa %s4709, 1
    %4711 = vsyncpa [#allocation7], 1
    %s4712 = scalar_lea.sflag [#allocation7], 1
    %4713 = vsyncpa %s4712, 1

</llo_original>
